<compile_context>
chip_gen: v6e
topology: v6e:2x2x1
jax: 0.10.0
libtpu: 0.0.40
codegen_flags: <defaults>
</compile_context>

<pallas_src>
import functools

import jax
import jax.numpy as jnp
import numpy as np
from jax.experimental import pallas as pl
from jax.experimental.pallas import tpu as pltpu

# Shapes implied by the torch module (fc1 = 16*5*5 => 3x32x32 CIFAR-like input).
_K = 5                       # conv kernel size
_C0, _C1, _C2 = 3, 6, 16     # channels: input, conv1, conv2
_H0 = 32                     # input spatial
_H1 = _H0 - _K + 1           # 28  (conv1 out)
_P1 = _H1 // 2               # 14  (pool1 out)
_H2 = _P1 - _K + 1           # 10  (conv2 out)
_P2 = _H2 // 2               # 5   (pool2 out)
_F1, _F2 = 120, 84
_FC_PAD = 128                # lane-dense width for fc1/fc2/fc3 outputs

_L_IN = _H0 * _C0            # 96   input row lanes  (w*3 + c)
_L_C1 = _H1 * _C1            # 168  conv1 row lanes  (ow*6 + co)
_L_P1 = _P1 * _C1            # 84   pool1 row lanes
_L_C2 = _H2 * _C2            # 160  conv2 row lanes
_L_P2 = _P2 * _C2            # 80   pool2 row lanes


def _round_up(v, m):
    return ((v + m - 1) // m) * m


# ----------------------------------------------------------------------------
# Fused kernel: one batch block per grid step, everything VMEM resident.
# ----------------------------------------------------------------------------
def _lenet_kernel(x_ref, m1_ref, m2_ref, s1e_ref, s1o_ref, s2e_ref, s2o_ref,
                  b1_ref, b2_ref, g1_ref, fc1b_ref, fc2w_ref, fc2b_ref,
                  fc3w_ref, fc3b_ref, out_ref):
    f32 = jnp.float32
    bb = x_ref.shape[1]          # images in this block (multiple of 8 => free reshapes)

    def conv_rows(get_rows, n_rows, taps_ref, in_lanes):
        # Banded-weight conv: out[oh, b, :] = sum_i rows[oh + i, b, :] @ taps[i].
        # One matmul per kernel row with M = n_rows * bb (no im2col, no lane concat).
        acc = None
        for i in range(_K):
            lhs = get_rows(i, n_rows).reshape(n_rows * bb, in_lanes)
            y = jnp.dot(lhs, taps_ref[i], preferred_element_type=f32)
            acc = y if acc is None else acc + y
        return acc               # (n_rows * bb, out_lanes)

    def pool_bias_relu(y, n_pool, in_lanes, out_lanes, se_ref, so_ref, bias_ref):
        # 2x2 max-pool: rows via elementwise max, cols via exact 0/1 selector matmuls.
        # bias + relu applied after the max (monotonic, so equivalent to torch's order).
        y = y.reshape(n_pool, 2, bb, in_lanes)
        rm = jnp.maximum(y[:, 0], y[:, 1]).reshape(n_pool * bb, in_lanes)
        z = jnp.maximum(jnp.dot(rm, se_ref[...], preferred_element_type=f32),
                        jnp.dot(rm, so_ref[...], preferred_element_type=f32))
        z = jnp.maximum(z + bias_ref[...], 0.0)
        return z.reshape(n_pool, bb, out_lanes)

    # ---- conv1 + relu + 2x2 maxpool: (32, bb, 96) -> (14, bb, 84) ----
    c1 = conv_rows(lambda i, r: x_ref[pl.ds(i, r)], _H1, m1_ref, _L_IN)
    p1 = pool_bias_relu(c1, _P1, _L_C1, _L_P1, s1e_ref, s1o_ref, b1_ref)

    # ---- conv2 + relu + 2x2 maxpool: (14, bb, 84) -> (5, bb, 80) ----
    c2 = conv_rows(lambda i, r: p1[i:i + r], _H2, m2_ref, _L_P1)
    p2 = pool_bias_relu(c2, _P2, _L_C2, _L_P2, s2e_ref, s2o_ref, b2_ref)

    # ---- FC head, batched.  torch's NCHW flatten is folded into per-pool-row fc1 weight
    #      blocks g1[h] (80, 128): the "flatten" is 5 accumulating matmuls, no lane concat.
    h1 = None
    for h in range(_P2):
        y = jnp.dot(p2[h], g1_ref[h], preferred_element_type=f32)
        h1 = y if h1 is None else h1 + y
    h1 = jnp.maximum(h1 + fc1b_ref[...], 0.0)                               # (bb, 128)
    h2 = jnp.maximum(jnp.dot(h1, fc2w_ref[...], preferred_element_type=f32)
                     + fc2b_ref[...], 0.0)                                  # (bb, 128)
    out_ref[...] = (jnp.dot(h2, fc3w_ref[...], preferred_element_type=f32)
                    + fc3b_ref[...])                                        # (bb, ncp)


# ----------------------------------------------------------------------------
# Wrapper / one-time host-side parameter prep
# ----------------------------------------------------------------------------
def prepare_params(params, num_classes):
    """Banded conv weights, pool selectors, tiled biases, lane-padded FC weights."""
    w1 = np.asarray(params["conv1_w"], np.float32)    # (6, 3, 5, 5)   (co, ci, i, j)
    w2 = np.asarray(params["conv2_w"], np.float32)    # (16, 6, 5, 5)

    def banded(w, out_w, cin, cout):
        # m[i, (ow+j)*cin + ci, ow*cout + co] = w[co, ci, i, j]
        m = np.zeros((_K, (out_w + _K - 1) * cin, out_w * cout), np.float32)
        for i in range(_K):
            for j in range(_K):
                blk = w[:, :, i, j].T                 # (cin, cout)
                for ow in range(out_w):
                    m[i, (ow + j) * cin:(ow + j + 1) * cin,
                      ow * cout:(ow + 1) * cout] = blk
        return m

    def pool_selectors(n_pool, ch):
        se = np.zeros((2 * n_pool * ch, n_pool * ch), np.float32)
        so = np.zeros_like(se)
        eye = np.eye(ch, dtype=np.float32)
        for q in range(n_pool):
            se[(2 * q) * ch:(2 * q + 1) * ch, q * ch:(q + 1) * ch] = eye
            so[(2 * q + 1) * ch:(2 * q + 2) * ch, q * ch:(q + 1) * ch] = eye
        return se, so

    s1e, s1o = pool_selectors(_P1, _C1)               # (168, 84)
    s2e, s2o = pool_selectors(_P2, _C2)               # (160, 80)

    # fc1 with torch's (c*25 + h*5 + w) flatten folded in, split per pool row h, padded to 128.
    fc1 = np.asarray(params["fc1_w"], np.float32).reshape(_F1, _C2, _P2, _P2)
    g1 = np.zeros((_P2, _L_P2, _FC_PAD), np.float32)
    g1[:, :, :_F1] = fc1.transpose(2, 3, 1, 0).reshape(_P2, _L_P2, _F1)
    fc1b = np.zeros((1, _FC_PAD), np.float32)
    fc1b[0, :_F1] = np.asarray(params["fc1_b"], np.float32)

    fc2w = np.zeros((_FC_PAD, _FC_PAD), np.float32)
    fc2w[:_F1, :_F2] = np.asarray(params["fc2_w"], np.float32).T
    fc2b = np.zeros((1, _FC_PAD), np.float32)
    fc2b[0, :_F2] = np.asarray(params["fc2_b"], np.float32)

    ncp = _round_up(max(num_classes, _FC_PAD), _FC_PAD)
    fc3w = np.zeros((_FC_PAD, ncp), np.float32)
    fc3w[:_F2, :num_classes] = np.asarray(params["fc3_w"], np.float32).T
    fc3b = np.zeros((1, ncp), np.float32)
    fc3b[0, :num_classes] = np.asarray(params["fc3_b"], np.float32)

    return {
        "m1": jnp.asarray(banded(w1, _H1, _C0, _C1)),          # (5, 96, 168)
        "m2": jnp.asarray(banded(w2, _H2, _C1, _C2)),          # (5, 84, 160)
        "s1e": jnp.asarray(s1e), "s1o": jnp.asarray(s1o),
        "s2e": jnp.asarray(s2e), "s2o": jnp.asarray(s2o),
        "b1": jnp.asarray(np.tile(np.asarray(params["conv1_b"], np.float32), _P1)[None, :]),
        "b2": jnp.asarray(np.tile(np.asarray(params["conv2_b"], np.float32), _P2)[None, :]),
        "g1": jnp.asarray(g1), "fc1_b": jnp.asarray(fc1b),
        "fc2_w": jnp.asarray(fc2w), "fc2_b": jnp.asarray(fc2b),
        "fc3_w": jnp.asarray(fc3w), "fc3_b": jnp.asarray(fc3b),
    }


def net_forward(x_nchw, p, num_classes, block_b=128):
    # block_b default keeps per-step VMEM well under v7x's 64 MiB (input block
    # double-buffered + weights + intermediates ~= 10-12 MB at block_b=128).
    n = x_nchw.shape[0]
    bb = _round_up(min(block_b, n), 8)        # batch block; multiple of 8 (sublane tile)
    n_pad = _round_up(n, bb)
    x = x_nchw.astype(jnp.float32)
    if n_pad != n:
        x = jnp.pad(x, ((0, n_pad - n), (0, 0), (0, 0), (0, 0)))
    # Single wrapper-side relayout to the kernel layout (H, N, W*C): batch on sublanes,
    # (w, c) merged on lanes -> every in-kernel matmul is lane-dense with M = rows * bb.
    xk = jnp.transpose(x, (2, 0, 3, 1)).reshape(_H0, n_pad, _L_IN)

    ncp = p["fc3_w"].shape[1]

    def const_spec(a):
        idx = (0,) * a.ndim
        return pl.BlockSpec(a.shape, lambda b, idx=idx: idx)

    weights = (p["m1"], p["m2"], p["s1e"], p["s1o"], p["s2e"], p["s2o"],
               p["b1"], p["b2"], p["g1"], p["fc1_b"], p["fc2_w"], p["fc2_b"],
               p["fc3_w"], p["fc3_b"])

    out = pl.pallas_call(
        _lenet_kernel,
        out_shape=jax.ShapeDtypeStruct((n_pad, ncp), jnp.float32),
        grid=(n_pad // bb,),
        in_specs=[pl.BlockSpec((_H0, bb, _L_IN), lambda b: (0, b, 0))]
                 + [const_spec(w) for w in weights],
        out_specs=pl.BlockSpec((bb, ncp), lambda b: (b, 0)),   # lane-dense 2-D slab store
        compiler_params=pltpu.CompilerParams(
            dimension_semantics=("parallel",),                 # batch blocks shard across TCs
            vmem_limit_bytes=48 * 1024 * 1024),
    )(xk, *weights)
    return out[:n, :num_classes]


# ----------------------------------------------------------------------------
# Pure-JAX reference (mirrors the PyTorch module) + deterministic init
# ----------------------------------------------------------------------------
def net_reference(x_nchw, params):
    dn = ("NCHW", "OIHW", "NCHW")
    x = jax.lax.conv_general_dilated(x_nchw, params["conv1_w"], (1, 1), "VALID",
                                     dimension_numbers=dn)
    x = jax.nn.relu(x + params["conv1_b"][None, :, None, None])
    x = jax.lax.reduce_window(x, -jnp.inf, jax.lax.max, (1, 1, 2, 2), (1, 1, 2, 2), "VALID")
    x = jax.lax.conv_general_dilated(x, params["conv2_w"], (1, 1), "VALID",
                                     dimension_numbers=dn)
    x = jax.nn.relu(x + params["conv2_b"][None, :, None, None])
    x = jax.lax.reduce_window(x, -jnp.inf, jax.lax.max, (1, 1, 2, 2), (1, 1, 2, 2), "VALID")
    x = x.reshape(x.shape[0], -1)                       # NCHW flatten, like torch .view
    x = jax.nn.relu(x @ params["fc1_w"].T + params["fc1_b"])
    x = jax.nn.relu(x @ params["fc2_w"].T + params["fc2_b"])
    return x @ params["fc3_w"].T + params["fc3_b"]


def init_params(key, num_classes):
    def uniform(k, shape, fan_in):
        bound = 1.0 / jnp.sqrt(float(fan_in))
        return jax.random.uniform(k, shape, jnp.float32, -bound, bound)

    ks = jax.random.split(key, 10)
    return {
        "conv1_w": uniform(ks[0], (_C1, _C0, _K, _K), _C0 * _K * _K),
        "conv1_b": uniform(ks[1], (_C1,), _C0 * _K * _K),
        "conv2_w": uniform(ks[2], (_C2, _C1, _K, _K), _C1 * _K * _K),
        "conv2_b": uniform(ks[3], (_C2,), _C1 * _K * _K),
        "fc1_w": uniform(ks[4], (_F1, _C2 * _P2 * _P2), _C2 * _P2 * _P2),
        "fc1_b": uniform(ks[5], (_F1,), _C2 * _P2 * _P2),
        "fc2_w": uniform(ks[6], (_F2, _F1), _F1),
        "fc2_b": uniform(ks[7], (_F2,), _F1),
        "fc3_w": uniform(ks[8], (num_classes, _F2), _F2),
        "fc3_b": uniform(ks[9], (num_classes,), _F2),
    }


if __name__ == "__main__":
    num_classes = 10
    key = jax.random.PRNGKey(0)
    k_x, k_p = jax.random.split(key)

    # Net's forward implies 3x32x32 inputs: 32 -> 28 -> 14 -> 10 -> 5 ; 16*5*5 = 400
    x = jax.random.normal(k_x, (16, 3, 32, 32), jnp.float32)
    params = init_params(k_p, num_classes)
    prepped = prepare_params(params, num_classes)

    # Small batch block here so the ("parallel",) grid still has several steps at toy batch.
    fwd = jax.jit(functools.partial(net_forward, num_classes=num_classes, block_b=8))
    out = jax.block_until_ready(fwd(x, prepped))
    assert out.shape == (16, num_classes), out.shape

    ref = jax.block_until_ready(jax.jit(net_reference)(x, params))
    max_err = float(jnp.max(jnp.abs(out - ref)))
    assert max_err < 5e-3, f"kernel/reference mismatch: max abs err {max_err}"

    print("KERNEL_OK")
</pallas_src>

<mosaic_0001>
module attributes {stable_mosaic.version = 11 : i64} {
  func.func @_lenet_kernel(%arg0: i32, %arg1: memref<32x8x96xf32, #tpu.memory_space<vmem>>, %arg2: memref<5x96x168xf32, #tpu.memory_space<vmem>>, %arg3: memref<5x84x160xf32, #tpu.memory_space<vmem>>, %arg4: memref<168x84xf32, #tpu.memory_space<vmem>>, %arg5: memref<168x84xf32, #tpu.memory_space<vmem>>, %arg6: memref<160x80xf32, #tpu.memory_space<vmem>>, %arg7: memref<160x80xf32, #tpu.memory_space<vmem>>, %arg8: memref<1x84xf32, #tpu.memory_space<vmem>>, %arg9: memref<1x80xf32, #tpu.memory_space<vmem>>, %arg10: memref<5x80x128xf32, #tpu.memory_space<vmem>>, %arg11: memref<1x128xf32, #tpu.memory_space<vmem>>, %arg12: memref<128x128xf32, #tpu.memory_space<vmem>>, %arg13: memref<1x128xf32, #tpu.memory_space<vmem>>, %arg14: memref<128x128xf32, #tpu.memory_space<vmem>>, %arg15: memref<1x128xf32, #tpu.memory_space<vmem>>, %arg16: memref<8x128xf32, #tpu.memory_space<vmem>>) attributes {dimension_semantics = [#tpu.dimension_semantics<parallel>], iteration_bounds = array<i64: 2>, scalar_prefetch = 0 : i64, scratch_operands = 0 : i64, tpu.core_type = #tpu.core_type<tc>, window_params = [{transform_indices = @transform_0, window_bounds = array<i64: 32, 8, 96>}, {pipeline_mode = #tpu.pipeline_mode<synchronous>, transform_indices = @transform_1, window_bounds = array<i64: 5, 96, 168>}, {pipeline_mode = #tpu.pipeline_mode<synchronous>, transform_indices = @transform_2, window_bounds = array<i64: 5, 84, 160>}, {pipeline_mode = #tpu.pipeline_mode<synchronous>, transform_indices = @transform_3, window_bounds = array<i64: 168, 84>}, {pipeline_mode = #tpu.pipeline_mode<synchronous>, transform_indices = @transform_4, window_bounds = array<i64: 168, 84>}, {pipeline_mode = #tpu.pipeline_mode<synchronous>, transform_indices = @transform_5, window_bounds = array<i64: 160, 80>}, {pipeline_mode = #tpu.pipeline_mode<synchronous>, transform_indices = @transform_6, window_bounds = array<i64: 160, 80>}, {pipeline_mode = #tpu.pipeline_mode<synchronous>, transform_indices = @transform_7, window_bounds = array<i64: 1, 84>}, {pipeline_mode = #tpu.pipeline_mode<synchronous>, transform_indices = @transform_8, window_bounds = array<i64: 1, 80>}, {pipeline_mode = #tpu.pipeline_mode<synchronous>, transform_indices = @transform_9, window_bounds = array<i64: 5, 80, 128>}, {pipeline_mode = #tpu.pipeline_mode<synchronous>, transform_indices = @transform_10, window_bounds = array<i64: 1, 128>}, {pipeline_mode = #tpu.pipeline_mode<synchronous>, transform_indices = @transform_11, window_bounds = array<i64: 128, 128>}, {pipeline_mode = #tpu.pipeline_mode<synchronous>, transform_indices = @transform_12, window_bounds = array<i64: 1, 128>}, {pipeline_mode = #tpu.pipeline_mode<synchronous>, transform_indices = @transform_13, window_bounds = array<i64: 128, 128>}, {pipeline_mode = #tpu.pipeline_mode<synchronous>, transform_indices = @transform_14, window_bounds = array<i64: 1, 128>}, {transform_indices = @transform_15, window_bounds = array<i64: 8, 128>}]} {
    %c0 = arith.constant 0 : index
    %c0_0 = arith.constant 0 : index
    %c0_1 = arith.constant 0 : index
    %0 = vector.load %arg1[%c0, %c0_0, %c0_1] : memref<32x8x96xf32, #tpu.memory_space<vmem>>, vector<28x8x96xf32>
    %1 = vector.shape_cast %0 : vector<28x8x96xf32> to vector<224x96xf32>
    %c0_2 = arith.constant 0 : index
    %c0_3 = arith.constant 0 : index
    %c0_4 = arith.constant 0 : index
    %2 = vector.load %arg2[%c0_2, %c0_3, %c0_4] : memref<5x96x168xf32, #tpu.memory_space<vmem>>, vector<1x96x168xf32>
    %3 = vector.shape_cast %2 : vector<1x96x168xf32> to vector<96x168xf32>
    %cst = arith.constant dense<0.000000e+00> : vector<224x168xf32>
    %4 = tpu.matmul %1, %3, %cst {dimension_numbers = #tpu.dot_dimension_numbers<[1], [0], [0], [1], [0, 0, 1, 1], [], []>} : vector<224x96xf32>, vector<96x168xf32>, vector<224x168xf32> -> vector<224x168xf32>
    %c1 = arith.constant 1 : index
    %c0_5 = arith.constant 0 : index
    %c0_6 = arith.constant 0 : index
    %5 = vector.load %arg1[%c1, %c0_5, %c0_6] : memref<32x8x96xf32, #tpu.memory_space<vmem>>, vector<28x8x96xf32>
    %6 = vector.shape_cast %5 : vector<28x8x96xf32> to vector<224x96xf32>
    %c1_7 = arith.constant 1 : index
    %c0_8 = arith.constant 0 : index
    %c0_9 = arith.constant 0 : index
    %7 = vector.load %arg2[%c1_7, %c0_8, %c0_9] : memref<5x96x168xf32, #tpu.memory_space<vmem>>, vector<1x96x168xf32>
    %8 = vector.shape_cast %7 : vector<1x96x168xf32> to vector<96x168xf32>
    %cst_10 = arith.constant dense<0.000000e+00> : vector<224x168xf32>
    %9 = tpu.matmul %6, %8, %cst_10 {dimension_numbers = #tpu.dot_dimension_numbers<[1], [0], [0], [1], [0, 0, 1, 1], [], []>} : vector<224x96xf32>, vector<96x168xf32>, vector<224x168xf32> -> vector<224x168xf32>
    %10 = arith.addf %4, %9 : vector<224x168xf32>
    %c2 = arith.constant 2 : index
    %c0_11 = arith.constant 0 : index
    %c0_12 = arith.constant 0 : index
    %11 = vector.load %arg1[%c2, %c0_11, %c0_12] : memref<32x8x96xf32, #tpu.memory_space<vmem>>, vector<28x8x96xf32>
    %12 = vector.shape_cast %11 : vector<28x8x96xf32> to vector<224x96xf32>
    %c2_13 = arith.constant 2 : index
    %c0_14 = arith.constant 0 : index
    %c0_15 = arith.constant 0 : index
    %13 = vector.load %arg2[%c2_13, %c0_14, %c0_15] : memref<5x96x168xf32, #tpu.memory_space<vmem>>, vector<1x96x168xf32>
    %14 = vector.shape_cast %13 : vector<1x96x168xf32> to vector<96x168xf32>
    %cst_16 = arith.constant dense<0.000000e+00> : vector<224x168xf32>
    %15 = tpu.matmul %12, %14, %cst_16 {dimension_numbers = #tpu.dot_dimension_numbers<[1], [0], [0], [1], [0, 0, 1, 1], [], []>} : vector<224x96xf32>, vector<96x168xf32>, vector<224x168xf32> -> vector<224x168xf32>
    %16 = arith.addf %10, %15 : vector<224x168xf32>
    %c3 = arith.constant 3 : index
    %c0_17 = arith.constant 0 : index
    %c0_18 = arith.constant 0 : index
    %17 = vector.load %arg1[%c3, %c0_17, %c0_18] : memref<32x8x96xf32, #tpu.memory_space<vmem>>, vector<28x8x96xf32>
    %18 = vector.shape_cast %17 : vector<28x8x96xf32> to vector<224x96xf32>
    %c3_19 = arith.constant 3 : index
    %c0_20 = arith.constant 0 : index
    %c0_21 = arith.constant 0 : index
    %19 = vector.load %arg2[%c3_19, %c0_20, %c0_21] : memref<5x96x168xf32, #tpu.memory_space<vmem>>, vector<1x96x168xf32>
    %20 = vector.shape_cast %19 : vector<1x96x168xf32> to vector<96x168xf32>
    %cst_22 = arith.constant dense<0.000000e+00> : vector<224x168xf32>
    %21 = tpu.matmul %18, %20, %cst_22 {dimension_numbers = #tpu.dot_dimension_numbers<[1], [0], [0], [1], [0, 0, 1, 1], [], []>} : vector<224x96xf32>, vector<96x168xf32>, vector<224x168xf32> -> vector<224x168xf32>
    %22 = arith.addf %16, %21 : vector<224x168xf32>
    %c4 = arith.constant 4 : index
    %c0_23 = arith.constant 0 : index
    %c0_24 = arith.constant 0 : index
    %23 = vector.load %arg1[%c4, %c0_23, %c0_24] : memref<32x8x96xf32, #tpu.memory_space<vmem>>, vector<28x8x96xf32>
    %24 = vector.shape_cast %23 : vector<28x8x96xf32> to vector<224x96xf32>
    %c4_25 = arith.constant 4 : index
    %c0_26 = arith.constant 0 : index
    %c0_27 = arith.constant 0 : index
    %25 = vector.load %arg2[%c4_25, %c0_26, %c0_27] : memref<5x96x168xf32, #tpu.memory_space<vmem>>, vector<1x96x168xf32>
    %26 = vector.shape_cast %25 : vector<1x96x168xf32> to vector<96x168xf32>
    %cst_28 = arith.constant dense<0.000000e+00> : vector<224x168xf32>
    %27 = tpu.matmul %24, %26, %cst_28 {dimension_numbers = #tpu.dot_dimension_numbers<[1], [0], [0], [1], [0, 0, 1, 1], [], []>} : vector<224x96xf32>, vector<96x168xf32>, vector<224x168xf32> -> vector<224x168xf32>
    %28 = arith.addf %22, %27 : vector<224x168xf32>
    %29 = vector.shape_cast %28 : vector<224x168xf32> to vector<14x2x8x168xf32>
    %30 = vector.extract_strided_slice %29 {offsets = [0, 0, 0, 0], sizes = [14, 1, 8, 168], strides = [1, 1, 1, 1]} : vector<14x2x8x168xf32> to vector<14x1x8x168xf32>
    %31 = vector.shape_cast %30 : vector<14x1x8x168xf32> to vector<14x8x168xf32>
    %32 = vector.extract_strided_slice %29 {offsets = [0, 1, 0, 0], sizes = [14, 1, 8, 168], strides = [1, 1, 1, 1]} : vector<14x2x8x168xf32> to vector<14x1x8x168xf32>
    %33 = vector.shape_cast %32 : vector<14x1x8x168xf32> to vector<14x8x168xf32>
    %34 = arith.maximumf %31, %33 : vector<14x8x168xf32>
    %35 = vector.shape_cast %34 : vector<14x8x168xf32> to vector<112x168xf32>
    %c0_29 = arith.constant 0 : index
    %c0_30 = arith.constant 0 : index
    %36 = vector.load %arg4[%c0_29, %c0_30] : memref<168x84xf32, #tpu.memory_space<vmem>>, vector<168x84xf32>
    %cst_31 = arith.constant dense<0.000000e+00> : vector<112x84xf32>
    %37 = tpu.matmul %35, %36, %cst_31 {dimension_numbers = #tpu.dot_dimension_numbers<[1], [0], [0], [1], [0, 0, 1, 1], [], []>} : vector<112x168xf32>, vector<168x84xf32>, vector<112x84xf32> -> vector<112x84xf32>
    %c0_32 = arith.constant 0 : index
    %c0_33 = arith.constant 0 : index
    %38 = vector.load %arg5[%c0_32, %c0_33] : memref<168x84xf32, #tpu.memory_space<vmem>>, vector<168x84xf32>
    %cst_34 = arith.constant dense<0.000000e+00> : vector<112x84xf32>
    %39 = tpu.matmul %35, %38, %cst_34 {dimension_numbers = #tpu.dot_dimension_numbers<[1], [0], [0], [1], [0, 0, 1, 1], [], []>} : vector<112x168xf32>, vector<168x84xf32>, vector<112x84xf32> -> vector<112x84xf32>
    %40 = arith.maximumf %37, %39 : vector<112x84xf32>
    %c0_35 = arith.constant 0 : index
    %c0_36 = arith.constant 0 : index
    %41 = vector.load %arg8[%c0_35, %c0_36] : memref<1x84xf32, #tpu.memory_space<vmem>>, vector<1x84xf32>
    %42 = vector.broadcast %41 : vector<1x84xf32> to vector<112x84xf32>
    %43 = arith.addf %40, %42 : vector<112x84xf32>
    %cst_37 = arith.constant 0.000000e+00 : f32
    %44 = vector.broadcast %cst_37 : f32 to vector<112x84xf32>
    %45 = arith.maximumf %43, %44 : vector<112x84xf32>
    %46 = vector.shape_cast %45 : vector<112x84xf32> to vector<14x8x84xf32>
    %47 = vector.extract_strided_slice %46 {offsets = [0, 0, 0], sizes = [10, 8, 84], strides = [1, 1, 1]} : vector<14x8x84xf32> to vector<10x8x84xf32>
    %48 = vector.shape_cast %47 : vector<10x8x84xf32> to vector<80x84xf32>
    %c0_38 = arith.constant 0 : index
    %c0_39 = arith.constant 0 : index
    %c0_40 = arith.constant 0 : index
    %49 = vector.load %arg3[%c0_38, %c0_39, %c0_40] : memref<5x84x160xf32, #tpu.memory_space<vmem>>, vector<1x84x160xf32>
    %50 = vector.shape_cast %49 : vector<1x84x160xf32> to vector<84x160xf32>
    %cst_41 = arith.constant dense<0.000000e+00> : vector<80x160xf32>
    %51 = tpu.matmul %48, %50, %cst_41 {dimension_numbers = #tpu.dot_dimension_numbers<[1], [0], [0], [1], [0, 0, 1, 1], [], []>} : vector<80x84xf32>, vector<84x160xf32>, vector<80x160xf32> -> vector<80x160xf32>
    %52 = vector.extract_strided_slice %46 {offsets = [1, 0, 0], sizes = [10, 8, 84], strides = [1, 1, 1]} : vector<14x8x84xf32> to vector<10x8x84xf32>
    %53 = vector.shape_cast %52 : vector<10x8x84xf32> to vector<80x84xf32>
    %c1_42 = arith.constant 1 : index
    %c0_43 = arith.constant 0 : index
    %c0_44 = arith.constant 0 : index
    %54 = vector.load %arg3[%c1_42, %c0_43, %c0_44] : memref<5x84x160xf32, #tpu.memory_space<vmem>>, vector<1x84x160xf32>
    %55 = vector.shape_cast %54 : vector<1x84x160xf32> to vector<84x160xf32>
    %cst_45 = arith.constant dense<0.000000e+00> : vector<80x160xf32>
    %56 = tpu.matmul %53, %55, %cst_45 {dimension_numbers = #tpu.dot_dimension_numbers<[1], [0], [0], [1], [0, 0, 1, 1], [], []>} : vector<80x84xf32>, vector<84x160xf32>, vector<80x160xf32> -> vector<80x160xf32>
    %57 = arith.addf %51, %56 : vector<80x160xf32>
    %58 = vector.extract_strided_slice %46 {offsets = [2, 0, 0], sizes = [10, 8, 84], strides = [1, 1, 1]} : vector<14x8x84xf32> to vector<10x8x84xf32>
    %59 = vector.shape_cast %58 : vector<10x8x84xf32> to vector<80x84xf32>
    %c2_46 = arith.constant 2 : index
    %c0_47 = arith.constant 0 : index
    %c0_48 = arith.constant 0 : index
    %60 = vector.load %arg3[%c2_46, %c0_47, %c0_48] : memref<5x84x160xf32, #tpu.memory_space<vmem>>, vector<1x84x160xf32>
    %61 = vector.shape_cast %60 : vector<1x84x160xf32> to vector<84x160xf32>
    %cst_49 = arith.constant dense<0.000000e+00> : vector<80x160xf32>
    %62 = tpu.matmul %59, %61, %cst_49 {dimension_numbers = #tpu.dot_dimension_numbers<[1], [0], [0], [1], [0, 0, 1, 1], [], []>} : vector<80x84xf32>, vector<84x160xf32>, vector<80x160xf32> -> vector<80x160xf32>
    %63 = arith.addf %57, %62 : vector<80x160xf32>
    %64 = vector.extract_strided_slice %46 {offsets = [3, 0, 0], sizes = [10, 8, 84], strides = [1, 1, 1]} : vector<14x8x84xf32> to vector<10x8x84xf32>
    %65 = vector.shape_cast %64 : vector<10x8x84xf32> to vector<80x84xf32>
    %c3_50 = arith.constant 3 : index
    %c0_51 = arith.constant 0 : index
    %c0_52 = arith.constant 0 : index
    %66 = vector.load %arg3[%c3_50, %c0_51, %c0_52] : memref<5x84x160xf32, #tpu.memory_space<vmem>>, vector<1x84x160xf32>
    %67 = vector.shape_cast %66 : vector<1x84x160xf32> to vector<84x160xf32>
    %cst_53 = arith.constant dense<0.000000e+00> : vector<80x160xf32>
    %68 = tpu.matmul %65, %67, %cst_53 {dimension_numbers = #tpu.dot_dimension_numbers<[1], [0], [0], [1], [0, 0, 1, 1], [], []>} : vector<80x84xf32>, vector<84x160xf32>, vector<80x160xf32> -> vector<80x160xf32>
    %69 = arith.addf %63, %68 : vector<80x160xf32>
    %70 = vector.extract_strided_slice %46 {offsets = [4, 0, 0], sizes = [10, 8, 84], strides = [1, 1, 1]} : vector<14x8x84xf32> to vector<10x8x84xf32>
    %71 = vector.shape_cast %70 : vector<10x8x84xf32> to vector<80x84xf32>
    %c4_54 = arith.constant 4 : index
    %c0_55 = arith.constant 0 : index
    %c0_56 = arith.constant 0 : index
    %72 = vector.load %arg3[%c4_54, %c0_55, %c0_56] : memref<5x84x160xf32, #tpu.memory_space<vmem>>, vector<1x84x160xf32>
    %73 = vector.shape_cast %72 : vector<1x84x160xf32> to vector<84x160xf32>
    %cst_57 = arith.constant dense<0.000000e+00> : vector<80x160xf32>
    %74 = tpu.matmul %71, %73, %cst_57 {dimension_numbers = #tpu.dot_dimension_numbers<[1], [0], [0], [1], [0, 0, 1, 1], [], []>} : vector<80x84xf32>, vector<84x160xf32>, vector<80x160xf32> -> vector<80x160xf32>
    %75 = arith.addf %69, %74 : vector<80x160xf32>
    %76 = vector.shape_cast %75 : vector<80x160xf32> to vector<5x2x8x160xf32>
    %77 = vector.extract_strided_slice %76 {offsets = [0, 0, 0, 0], sizes = [5, 1, 8, 160], strides = [1, 1, 1, 1]} : vector<5x2x8x160xf32> to vector<5x1x8x160xf32>
    %78 = vector.shape_cast %77 : vector<5x1x8x160xf32> to vector<5x8x160xf32>
    %79 = vector.extract_strided_slice %76 {offsets = [0, 1, 0, 0], sizes = [5, 1, 8, 160], strides = [1, 1, 1, 1]} : vector<5x2x8x160xf32> to vector<5x1x8x160xf32>
    %80 = vector.shape_cast %79 : vector<5x1x8x160xf32> to vector<5x8x160xf32>
    %81 = arith.maximumf %78, %80 : vector<5x8x160xf32>
    %82 = vector.shape_cast %81 : vector<5x8x160xf32> to vector<40x160xf32>
    %c0_58 = arith.constant 0 : index
    %c0_59 = arith.constant 0 : index
    %83 = vector.load %arg6[%c0_58, %c0_59] : memref<160x80xf32, #tpu.memory_space<vmem>>, vector<160x80xf32>
    %cst_60 = arith.constant dense<0.000000e+00> : vector<40x80xf32>
    %84 = tpu.matmul %82, %83, %cst_60 {dimension_numbers = #tpu.dot_dimension_numbers<[1], [0], [0], [1], [0, 0, 1, 1], [], []>} : vector<40x160xf32>, vector<160x80xf32>, vector<40x80xf32> -> vector<40x80xf32>
    %c0_61 = arith.constant 0 : index
    %c0_62 = arith.constant 0 : index
    %85 = vector.load %arg7[%c0_61, %c0_62] : memref<160x80xf32, #tpu.memory_space<vmem>>, vector<160x80xf32>
    %cst_63 = arith.constant dense<0.000000e+00> : vector<40x80xf32>
    %86 = tpu.matmul %82, %85, %cst_63 {dimension_numbers = #tpu.dot_dimension_numbers<[1], [0], [0], [1], [0, 0, 1, 1], [], []>} : vector<40x160xf32>, vector<160x80xf32>, vector<40x80xf32> -> vector<40x80xf32>
    %87 = arith.maximumf %84, %86 : vector<40x80xf32>
    %c0_64 = arith.constant 0 : index
    %c0_65 = arith.constant 0 : index
    %88 = vector.load %arg9[%c0_64, %c0_65] : memref<1x80xf32, #tpu.memory_space<vmem>>, vector<1x80xf32>
    %89 = vector.broadcast %88 : vector<1x80xf32> to vector<40x80xf32>
    %90 = arith.addf %87, %89 : vector<40x80xf32>
    %cst_66 = arith.constant 0.000000e+00 : f32
    %91 = vector.broadcast %cst_66 : f32 to vector<40x80xf32>
    %92 = arith.maximumf %90, %91 : vector<40x80xf32>
    %93 = vector.shape_cast %92 : vector<40x80xf32> to vector<5x8x80xf32>
    %94 = vector.extract_strided_slice %93 {offsets = [0, 0, 0], sizes = [1, 8, 80], strides = [1, 1, 1]} : vector<5x8x80xf32> to vector<1x8x80xf32>
    %95 = vector.shape_cast %94 : vector<1x8x80xf32> to vector<8x80xf32>
    %c0_67 = arith.constant 0 : index
    %c0_68 = arith.constant 0 : index
    %c0_69 = arith.constant 0 : index
    %96 = vector.load %arg10[%c0_67, %c0_68, %c0_69] : memref<5x80x128xf32, #tpu.memory_space<vmem>>, vector<1x80x128xf32>
    %97 = vector.shape_cast %96 : vector<1x80x128xf32> to vector<80x128xf32>
    %cst_70 = arith.constant dense<0.000000e+00> : vector<8x128xf32>
    %98 = tpu.matmul %95, %97, %cst_70 {dimension_numbers = #tpu.dot_dimension_numbers<[1], [0], [0], [1], [0, 0, 1, 1], [], []>} : vector<8x80xf32>, vector<80x128xf32>, vector<8x128xf32> -> vector<8x128xf32>
    %99 = vector.extract_strided_slice %93 {offsets = [1, 0, 0], sizes = [1, 8, 80], strides = [1, 1, 1]} : vector<5x8x80xf32> to vector<1x8x80xf32>
    %100 = vector.shape_cast %99 : vector<1x8x80xf32> to vector<8x80xf32>
    %c1_71 = arith.constant 1 : index
    %c0_72 = arith.constant 0 : index
    %c0_73 = arith.constant 0 : index
    %101 = vector.load %arg10[%c1_71, %c0_72, %c0_73] : memref<5x80x128xf32, #tpu.memory_space<vmem>>, vector<1x80x128xf32>
    %102 = vector.shape_cast %101 : vector<1x80x128xf32> to vector<80x128xf32>
    %cst_74 = arith.constant dense<0.000000e+00> : vector<8x128xf32>
    %103 = tpu.matmul %100, %102, %cst_74 {dimension_numbers = #tpu.dot_dimension_numbers<[1], [0], [0], [1], [0, 0, 1, 1], [], []>} : vector<8x80xf32>, vector<80x128xf32>, vector<8x128xf32> -> vector<8x128xf32>
    %104 = arith.addf %98, %103 : vector<8x128xf32>
    %105 = vector.extract_strided_slice %93 {offsets = [2, 0, 0], sizes = [1, 8, 80], strides = [1, 1, 1]} : vector<5x8x80xf32> to vector<1x8x80xf32>
    %106 = vector.shape_cast %105 : vector<1x8x80xf32> to vector<8x80xf32>
    %c2_75 = arith.constant 2 : index
    %c0_76 = arith.constant 0 : index
    %c0_77 = arith.constant 0 : index
    %107 = vector.load %arg10[%c2_75, %c0_76, %c0_77] : memref<5x80x128xf32, #tpu.memory_space<vmem>>, vector<1x80x128xf32>
    %108 = vector.shape_cast %107 : vector<1x80x128xf32> to vector<80x128xf32>
    %cst_78 = arith.constant dense<0.000000e+00> : vector<8x128xf32>
    %109 = tpu.matmul %106, %108, %cst_78 {dimension_numbers = #tpu.dot_dimension_numbers<[1], [0], [0], [1], [0, 0, 1, 1], [], []>} : vector<8x80xf32>, vector<80x128xf32>, vector<8x128xf32> -> vector<8x128xf32>
    %110 = arith.addf %104, %109 : vector<8x128xf32>
    %111 = vector.extract_strided_slice %93 {offsets = [3, 0, 0], sizes = [1, 8, 80], strides = [1, 1, 1]} : vector<5x8x80xf32> to vector<1x8x80xf32>
    %112 = vector.shape_cast %111 : vector<1x8x80xf32> to vector<8x80xf32>
    %c3_79 = arith.constant 3 : index
    %c0_80 = arith.constant 0 : index
    %c0_81 = arith.constant 0 : index
    %113 = vector.load %arg10[%c3_79, %c0_80, %c0_81] : memref<5x80x128xf32, #tpu.memory_space<vmem>>, vector<1x80x128xf32>
    %114 = vector.shape_cast %113 : vector<1x80x128xf32> to vector<80x128xf32>
    %cst_82 = arith.constant dense<0.000000e+00> : vector<8x128xf32>
    %115 = tpu.matmul %112, %114, %cst_82 {dimension_numbers = #tpu.dot_dimension_numbers<[1], [0], [0], [1], [0, 0, 1, 1], [], []>} : vector<8x80xf32>, vector<80x128xf32>, vector<8x128xf32> -> vector<8x128xf32>
    %116 = arith.addf %110, %115 : vector<8x128xf32>
    %117 = vector.extract_strided_slice %93 {offsets = [4, 0, 0], sizes = [1, 8, 80], strides = [1, 1, 1]} : vector<5x8x80xf32> to vector<1x8x80xf32>
    %118 = vector.shape_cast %117 : vector<1x8x80xf32> to vector<8x80xf32>
    %c4_83 = arith.constant 4 : index
    %c0_84 = arith.constant 0 : index
    %c0_85 = arith.constant 0 : index
    %119 = vector.load %arg10[%c4_83, %c0_84, %c0_85] : memref<5x80x128xf32, #tpu.memory_space<vmem>>, vector<1x80x128xf32>
    %120 = vector.shape_cast %119 : vector<1x80x128xf32> to vector<80x128xf32>
    %cst_86 = arith.constant dense<0.000000e+00> : vector<8x128xf32>
    %121 = tpu.matmul %118, %120, %cst_86 {dimension_numbers = #tpu.dot_dimension_numbers<[1], [0], [0], [1], [0, 0, 1, 1], [], []>} : vector<8x80xf32>, vector<80x128xf32>, vector<8x128xf32> -> vector<8x128xf32>
    %122 = arith.addf %116, %121 : vector<8x128xf32>
    %c0_87 = arith.constant 0 : index
    %c0_88 = arith.constant 0 : index
    %123 = vector.load %arg11[%c0_87, %c0_88] : memref<1x128xf32, #tpu.memory_space<vmem>>, vector<1x128xf32>
    %124 = vector.broadcast %123 : vector<1x128xf32> to vector<8x128xf32>
    %125 = arith.addf %122, %124 : vector<8x128xf32>
    %cst_89 = arith.constant 0.000000e+00 : f32
    %126 = vector.broadcast %cst_89 : f32 to vector<8x128xf32>
    %127 = arith.maximumf %125, %126 : vector<8x128xf32>
    %c0_90 = arith.constant 0 : index
    %c0_91 = arith.constant 0 : index
    %128 = vector.load %arg12[%c0_90, %c0_91] : memref<128x128xf32, #tpu.memory_space<vmem>>, vector<128x128xf32>
    %cst_92 = arith.constant dense<0.000000e+00> : vector<8x128xf32>
    %129 = tpu.matmul %127, %128, %cst_92 {dimension_numbers = #tpu.dot_dimension_numbers<[1], [0], [0], [1], [0, 0, 1, 1], [], []>} : vector<8x128xf32>, vector<128x128xf32>, vector<8x128xf32> -> vector<8x128xf32>
    %c0_93 = arith.constant 0 : index
    %c0_94 = arith.constant 0 : index
    %130 = vector.load %arg13[%c0_93, %c0_94] : memref<1x128xf32, #tpu.memory_space<vmem>>, vector<1x128xf32>
    %131 = vector.broadcast %130 : vector<1x128xf32> to vector<8x128xf32>
    %132 = arith.addf %129, %131 : vector<8x128xf32>
    %cst_95 = arith.constant 0.000000e+00 : f32
    %133 = vector.broadcast %cst_95 : f32 to vector<8x128xf32>
    %134 = arith.maximumf %132, %133 : vector<8x128xf32>
    %c0_96 = arith.constant 0 : index
    %c0_97 = arith.constant 0 : index
    %135 = vector.load %arg14[%c0_96, %c0_97] : memref<128x128xf32, #tpu.memory_space<vmem>>, vector<128x128xf32>
    %cst_98 = arith.constant dense<0.000000e+00> : vector<8x128xf32>
    %136 = tpu.matmul %134, %135, %cst_98 {dimension_numbers = #tpu.dot_dimension_numbers<[1], [0], [0], [1], [0, 0, 1, 1], [], []>} : vector<8x128xf32>, vector<128x128xf32>, vector<8x128xf32> -> vector<8x128xf32>
    %c0_99 = arith.constant 0 : index
    %c0_100 = arith.constant 0 : index
    %137 = vector.load %arg15[%c0_99, %c0_100] : memref<1x128xf32, #tpu.memory_space<vmem>>, vector<1x128xf32>
    %138 = vector.broadcast %137 : vector<1x128xf32> to vector<8x128xf32>
    %139 = arith.addf %136, %138 : vector<8x128xf32>
    %c0_101 = arith.constant 0 : index
    %c0_102 = arith.constant 0 : index
    %140 = vector.load %arg16[%c0_101, %c0_102] : memref<8x128xf32, #tpu.memory_space<vmem>>, vector<8x128xf32>
    tpu.vector_store %arg16[%c0_101, %c0_102], %139 {strides = array<i32>} : memref<8x128xf32, #tpu.memory_space<vmem>>, vector<8x128xf32>,
    return
  }
  func.func @transform_0(%arg0: i32) -> (i32, i32, i32) {
    %c0_i32 = arith.constant 0 : i32
    %c0_i32_0 = arith.constant 0 : i32
    %c0_i32_1 = arith.constant 0 : i32
    return %c0_i32, %arg0, %c0_i32_0 : i32, i32, i32
  }
  func.func @transform_1(%arg0: i32) -> (i32, i32, i32) {
    %c0_i32 = arith.constant 0 : i32
    %c0_i32_0 = arith.constant 0 : i32
    %c0_i32_1 = arith.constant 0 : i32
    %c0_i32_2 = arith.constant 0 : i32
    return %c0_i32, %c0_i32_0, %c0_i32_1 : i32, i32, i32
  }
  func.func @transform_2(%arg0: i32) -> (i32, i32, i32) {
    %c0_i32 = arith.constant 0 : i32
    %c0_i32_0 = arith.constant 0 : i32
    %c0_i32_1 = arith.constant 0 : i32
    %c0_i32_2 = arith.constant 0 : i32
    return %c0_i32, %c0_i32_0, %c0_i32_1 : i32, i32, i32
  }
  func.func @transform_3(%arg0: i32) -> (i32, i32) {
    %c0_i32 = arith.constant 0 : i32
    %c0_i32_0 = arith.constant 0 : i32
    %c0_i32_1 = arith.constant 0 : i32
    return %c0_i32, %c0_i32_0 : i32, i32
  }
  func.func @transform_4(%arg0: i32) -> (i32, i32) {
    %c0_i32 = arith.constant 0 : i32
    %c0_i32_0 = arith.constant 0 : i32
    %c0_i32_1 = arith.constant 0 : i32
    return %c0_i32, %c0_i32_0 : i32, i32
  }
  func.func @transform_5(%arg0: i32) -> (i32, i32) {
    %c0_i32 = arith.constant 0 : i32
    %c0_i32_0 = arith.constant 0 : i32
    %c0_i32_1 = arith.constant 0 : i32
    return %c0_i32, %c0_i32_0 : i32, i32
  }
  func.func @transform_6(%arg0: i32) -> (i32, i32) {
    %c0_i32 = arith.constant 0 : i32
    %c0_i32_0 = arith.constant 0 : i32
    %c0_i32_1 = arith.constant 0 : i32
    return %c0_i32, %c0_i32_0 : i32, i32
  }
  func.func @transform_7(%arg0: i32) -> (i32, i32) {
    %c0_i32 = arith.constant 0 : i32
    %c0_i32_0 = arith.constant 0 : i32
    %c0_i32_1 = arith.constant 0 : i32
    return %c0_i32, %c0_i32_0 : i32, i32
  }
  func.func @transform_8(%arg0: i32) -> (i32, i32) {
    %c0_i32 = arith.constant 0 : i32
    %c0_i32_0 = arith.constant 0 : i32
    %c0_i32_1 = arith.constant 0 : i32
    return %c0_i32, %c0_i32_0 : i32, i32
  }
  func.func @transform_9(%arg0: i32) -> (i32, i32, i32) {
    %c0_i32 = arith.constant 0 : i32
    %c0_i32_0 = arith.constant 0 : i32
    %c0_i32_1 = arith.constant 0 : i32
    %c0_i32_2 = arith.constant 0 : i32
    return %c0_i32, %c0_i32_0, %c0_i32_1 : i32, i32, i32
  }
  func.func @transform_10(%arg0: i32) -> (i32, i32) {
    %c0_i32 = arith.constant 0 : i32
    %c0_i32_0 = arith.constant 0 : i32
    %c0_i32_1 = arith.constant 0 : i32
    return %c0_i32, %c0_i32_0 : i32, i32
  }
  func.func @transform_11(%arg0: i32) -> (i32, i32) {
    %c0_i32 = arith.constant 0 : i32
    %c0_i32_0 = arith.constant 0 : i32
    %c0_i32_1 = arith.constant 0 : i32
    return %c0_i32, %c0_i32_0 : i32, i32
  }
  func.func @transform_12(%arg0: i32) -> (i32, i32) {
    %c0_i32 = arith.constant 0 : i32
    %c0_i32_0 = arith.constant 0 : i32
    %c0_i32_1 = arith.constant 0 : i32
    return %c0_i32, %c0_i32_0 : i32, i32
  }
  func.func @transform_13(%arg0: i32) -> (i32, i32) {
    %c0_i32 = arith.constant 0 : i32
    %c0_i32_0 = arith.constant 0 : i32
    %c0_i32_1 = arith.constant 0 : i32
    return %c0_i32, %c0_i32_0 : i32, i32
  }
  func.func @transform_14(%arg0: i32) -> (i32, i32) {
    %c0_i32 = arith.constant 0 : i32
    %c0_i32_0 = arith.constant 0 : i32
    %c0_i32_1 = arith.constant 0 : i32
    return %c0_i32, %c0_i32_0 : i32, i32
  }
  func.func @transform_15(%arg0: i32) -> (i32, i32) {
    %c0_i32 = arith.constant 0 : i32
    %c0_i32_0 = arith.constant 0 : i32
    return %arg0, %c0_i32 : i32, i32
  }
}

</mosaic_0001>

<llo_original>
// kernel: net_forward.1
$region0: #{net_forward.1}
  #allocation0 [shape = 'u32[]', space=smem, size = 0x4, offset = 0x4, fixed_abs, tag = 'smem constant byte address 0x4 - core index']
  #allocation1 [shape = 'u32[144,128]{1,0:T(1,128)}', space=vmem, size = 0x12000, scoped, tag = 'internal scratch']
  %s0 = inlined_call_operand.vmem [shape: f32[32,16,96], index: 0, kind: input, shape index: {}]
  %s1 = inlined_call_operand.vmem [shape: f32[5,96,168], index: 1, kind: input, shape index: {}]
  %s2 = inlined_call_operand.vmem [shape: f32[5,84,160], index: 2, kind: input, shape index: {}]
  %s3 = inlined_call_operand.vmem [shape: f32[168,84], index: 3, kind: input, shape index: {}]
  %s4 = inlined_call_operand.vmem [shape: f32[168,84], index: 4, kind: input, shape index: {}]
  %s5 = inlined_call_operand.vmem [shape: f32[160,80], index: 5, kind: input, shape index: {}]
  %s6 = inlined_call_operand.vmem [shape: f32[160,80], index: 6, kind: input, shape index: {}]
  %s7 = inlined_call_operand.vmem [shape: f32[1,84], index: 7, kind: input, shape index: {}]
  %s8 = inlined_call_operand.vmem [shape: f32[1,80], index: 8, kind: input, shape index: {}]
  %s9 = inlined_call_operand.vmem [shape: f32[5,80,128], index: 9, kind: input, shape index: {}]
  %s10 = inlined_call_operand.vmem [shape: f32[1,128], index: 10, kind: input, shape index: {}]
  %s11 = inlined_call_operand.vmem [shape: f32[128,128], index: 11, kind: input, shape index: {}]
  %s12 = inlined_call_operand.vmem [shape: f32[1,128], index: 12, kind: input, shape index: {}]
  %s13 = inlined_call_operand.vmem [shape: f32[128,128], index: 13, kind: input, shape index: {}]
  %s14 = inlined_call_operand.vmem [shape: f32[1,128], index: 14, kind: input, shape index: {}]
  %s15 = inlined_call_operand.hbm [shape: f32[16,128], index: 15, kind: output, shape index: {}]
  %s16 = sld [smem:[#allocation0]]
  $region131: #{net_forward.1} parent=0
    _
  %s18 = ssub.s32 1, %s16
  %s19 = scalar_select 0, %s18, %s16
  $region1: #{net_forward.1} parent=0
    #allocation2 [shape = 'u8[262144]{0}', space=vmem, size = 0x40000, scoped, tag = 'input window, operand 0']
    #allocation3 [shape = 'u8[8192]{0}', space=vmem, size = 0x2000, scoped, tag = 'output window, operand 0']
    #allocation4 [shape = 's32[2]{0}', space=sflag, size = 0x8, scoped, tag = 'scoped memory for net_forward.1']
    %20 = vsyncpa [#allocation4], 0
    %s21 = scalar_lea.sflag [#allocation4], 1
    %22 = vsyncpa %s21, 0
    loop: start=0, step=1, limit=4
    $region2: #{net_forward.1} parent=1 // loop_pre_header
      _
    $region3: #{net_forward.1} parent=1 // loop_header
      %s24 = sphi 0, %s28
      %p25 = scmp.ge.s32.totalorder %s24, 4
      %s34 = sphi 0, %s36
      %s37 = sphi 0, %s34
      %s38 = sphi 0, %s37
      %s54 = sphi 0, %s38
      %s58 = sphi 0, %s58
      %s60 = sphi 0, %s58
      %s61 = sphi 0, %s60
      %s75 = sphi 0, %s61
      %s79 = sphi 0, %s79
      %s81 = sphi 0, %s79
      %s82 = sphi 0, %s81
      %s96 = sphi 0, %s82
      %s100 = sphi 0, %s100
      %s102 = sphi 0, %s100
      %s103 = sphi 0, %s102
      %s117 = sphi 0, %s103
      %s121 = sphi 0, %s121
      %s123 = sphi 0, %s121
      %s124 = sphi 0, %s123
      %s138 = sphi 0, %s124
      %s142 = sphi 0, %s142
      %s144 = sphi 0, %s142
      %s145 = sphi 0, %s144
      %s159 = sphi 0, %s145
      %s163 = sphi 0, %s163
      %s165 = sphi 0, %s163
      %s166 = sphi 0, %s165
      %s180 = sphi 0, %s166
      %s184 = sphi 0, %s184
      %s186 = sphi 0, %s184
      %s187 = sphi 0, %s186
      %s201 = sphi 0, %s187
      %s205 = sphi 0, %s205
      %s207 = sphi 0, %s205
      %s208 = sphi 0, %s207
      %s222 = sphi 0, %s208
      %s226 = sphi 0, %s226
      %s228 = sphi 0, %s226
      %s229 = sphi 0, %s228
      %s243 = sphi 0, %s229
      %s247 = sphi 0, %s247
      %s249 = sphi 0, %s247
      %s250 = sphi 0, %s249
      %s264 = sphi 0, %s250
      %s268 = sphi 0, %s268
      %s270 = sphi 0, %s268
      %s271 = sphi 0, %s270
      %s285 = sphi 0, %s271
      %s289 = sphi 0, %s289
      %s291 = sphi 0, %s289
      %s292 = sphi 0, %s291
      %s306 = sphi 0, %s292
      %s310 = sphi 0, %s310
      %s312 = sphi 0, %s310
      %s313 = sphi 0, %s312
      %s327 = sphi 0, %s313
      %s331 = sphi 0, %s331
      %s333 = sphi 0, %s331
      %s334 = sphi 0, %s333
      %s348 = sphi 0, %s334
      %s354 = sphi 0, %s356
      %s357 = sphi 0, %s354
      %s358 = sphi 0, %s357
      %s374 = sphi 0, %s358
    $region4: #{net_forward.1} parent=1 // loop_header_branch
      %27 = sbr.rel (%p25) target = $region8
    $region5: #{net_forward.1} parent=1 // loop_body
      %s29 = ssub.s32 %s24, 1
      %s30 = ssub.s32 %s24, 2
      %s31 = sadd.s32 %s24, 1
      %s32 = ssub.s32 %s24, %s31
      %p33 = scmp.eq.s32.totalorder %s32, 0
      %s35 = sadd.s32 %s34, 1
      %s36 = scalar_select %p33, %s34, %s35
      %p39 = pneg %p33
      %p40 = scmp.eq.s32.totalorder %s24, 1
      %p41 = por %p39, %p40
      %p42 = scmp.ne.s32.totalorder %s34, %s37
      %p43 = scmp.eq.s32.totalorder %s24, 0
      %p44 = por %p42, %p43
      %p45 = scmp.ne.s32.totalorder %s34, %s37
      %p46 = scmp.eq.s32.totalorder %s29, 1
      %p47 = por %p45, %p46
      %p48 = scmp.ne.s32.totalorder %s37, %s38
      %p49 = scmp.eq.s32.totalorder %s29, 0
      %p50 = por %p48, %p49
      %p51 = scmp.ne.s32.totalorder %s37, %s38
      %p52 = scmp.eq.s32.totalorder %s30, 1
      %p53 = por %p51, %p52
      %p55 = scmp.ne.s32.totalorder %s38, %s54
      %p56 = scmp.eq.s32.totalorder %s30, 0
      %p57 = por %p55, %p56
      %s59 = sadd.s32 %s58, 1
      %p62 = scmp.eq.s32.totalorder %s24, 1
      %p63 = scmp.ne.s32.totalorder %s58, %s60
      %p64 = scmp.eq.s32.totalorder %s24, 0
      %p65 = por %p63, %p64
      %p66 = scmp.ne.s32.totalorder %s58, %s60
      %p67 = scmp.eq.s32.totalorder %s29, 1
      %p68 = por %p66, %p67
      %p69 = scmp.ne.s32.totalorder %s60, %s61
      %p70 = scmp.eq.s32.totalorder %s29, 0
      %p71 = por %p69, %p70
      %p72 = scmp.ne.s32.totalorder %s60, %s61
      %p73 = scmp.eq.s32.totalorder %s30, 1
      %p74 = por %p72, %p73
      %p76 = scmp.ne.s32.totalorder %s61, %s75
      %p77 = scmp.eq.s32.totalorder %s30, 0
      %p78 = por %p76, %p77
      %s80 = sadd.s32 %s79, 1
      %p83 = scmp.eq.s32.totalorder %s24, 1
      %p84 = scmp.ne.s32.totalorder %s79, %s81
      %p85 = scmp.eq.s32.totalorder %s24, 0
      %p86 = por %p84, %p85
      %p87 = scmp.ne.s32.totalorder %s79, %s81
      %p88 = scmp.eq.s32.totalorder %s29, 1
      %p89 = por %p87, %p88
      %p90 = scmp.ne.s32.totalorder %s81, %s82
      %p91 = scmp.eq.s32.totalorder %s29, 0
      %p92 = por %p90, %p91
      %p93 = scmp.ne.s32.totalorder %s81, %s82
      %p94 = scmp.eq.s32.totalorder %s30, 1
      %p95 = por %p93, %p94
      %p97 = scmp.ne.s32.totalorder %s82, %s96
      %p98 = scmp.eq.s32.totalorder %s30, 0
      %p99 = por %p97, %p98
      %s101 = sadd.s32 %s100, 1
      %p104 = scmp.eq.s32.totalorder %s24, 1
      %p105 = scmp.ne.s32.totalorder %s100, %s102
      %p106 = scmp.eq.s32.totalorder %s24, 0
      %p107 = por %p105, %p106
      %p108 = scmp.ne.s32.totalorder %s100, %s102
      %p109 = scmp.eq.s32.totalorder %s29, 1
      %p110 = por %p108, %p109
      %p111 = scmp.ne.s32.totalorder %s102, %s103
      %p112 = scmp.eq.s32.totalorder %s29, 0
      %p113 = por %p111, %p112
      %p114 = scmp.ne.s32.totalorder %s102, %s103
      %p115 = scmp.eq.s32.totalorder %s30, 1
      %p116 = por %p114, %p115
      %p118 = scmp.ne.s32.totalorder %s103, %s117
      %p119 = scmp.eq.s32.totalorder %s30, 0
      %p120 = por %p118, %p119
      %s122 = sadd.s32 %s121, 1
      %p125 = scmp.eq.s32.totalorder %s24, 1
      %p126 = scmp.ne.s32.totalorder %s121, %s123
      %p127 = scmp.eq.s32.totalorder %s24, 0
      %p128 = por %p126, %p127
      %p129 = scmp.ne.s32.totalorder %s121, %s123
      %p130 = scmp.eq.s32.totalorder %s29, 1
      %p131 = por %p129, %p130
      %p132 = scmp.ne.s32.totalorder %s123, %s124
      %p133 = scmp.eq.s32.totalorder %s29, 0
      %p134 = por %p132, %p133
      %p135 = scmp.ne.s32.totalorder %s123, %s124
      %p136 = scmp.eq.s32.totalorder %s30, 1
      %p137 = por %p135, %p136
      %p139 = scmp.ne.s32.totalorder %s124, %s138
      %p140 = scmp.eq.s32.totalorder %s30, 0
      %p141 = por %p139, %p140
      %s143 = sadd.s32 %s142, 1
      %p146 = scmp.eq.s32.totalorder %s24, 1
      %p147 = scmp.ne.s32.totalorder %s142, %s144
      %p148 = scmp.eq.s32.totalorder %s24, 0
      %p149 = por %p147, %p148
      %p150 = scmp.ne.s32.totalorder %s142, %s144
      %p151 = scmp.eq.s32.totalorder %s29, 1
      %p152 = por %p150, %p151
      %p153 = scmp.ne.s32.totalorder %s144, %s145
      %p154 = scmp.eq.s32.totalorder %s29, 0
      %p155 = por %p153, %p154
      %p156 = scmp.ne.s32.totalorder %s144, %s145
      %p157 = scmp.eq.s32.totalorder %s30, 1
      %p158 = por %p156, %p157
      %p160 = scmp.ne.s32.totalorder %s145, %s159
      %p161 = scmp.eq.s32.totalorder %s30, 0
      %p162 = por %p160, %p161
      %s164 = sadd.s32 %s163, 1
      %p167 = scmp.eq.s32.totalorder %s24, 1
      %p168 = scmp.ne.s32.totalorder %s163, %s165
      %p169 = scmp.eq.s32.totalorder %s24, 0
      %p170 = por %p168, %p169
      %p171 = scmp.ne.s32.totalorder %s163, %s165
      %p172 = scmp.eq.s32.totalorder %s29, 1
      %p173 = por %p171, %p172
      %p174 = scmp.ne.s32.totalorder %s165, %s166
      %p175 = scmp.eq.s32.totalorder %s29, 0
      %p176 = por %p174, %p175
      %p177 = scmp.ne.s32.totalorder %s165, %s166
      %p178 = scmp.eq.s32.totalorder %s30, 1
      %p179 = por %p177, %p178
      %p181 = scmp.ne.s32.totalorder %s166, %s180
      %p182 = scmp.eq.s32.totalorder %s30, 0
      %p183 = por %p181, %p182
      %s185 = sadd.s32 %s184, 1
      %p188 = scmp.eq.s32.totalorder %s24, 1
      %p189 = scmp.ne.s32.totalorder %s184, %s186
      %p190 = scmp.eq.s32.totalorder %s24, 0
      %p191 = por %p189, %p190
      %p192 = scmp.ne.s32.totalorder %s184, %s186
      %p193 = scmp.eq.s32.totalorder %s29, 1
      %p194 = por %p192, %p193
      %p195 = scmp.ne.s32.totalorder %s186, %s187
      %p196 = scmp.eq.s32.totalorder %s29, 0
      %p197 = por %p195, %p196
      %p198 = scmp.ne.s32.totalorder %s186, %s187
      %p199 = scmp.eq.s32.totalorder %s30, 1
      %p200 = por %p198, %p199
      %p202 = scmp.ne.s32.totalorder %s187, %s201
      %p203 = scmp.eq.s32.totalorder %s30, 0
      %p204 = por %p202, %p203
      %s206 = sadd.s32 %s205, 1
      %p209 = scmp.eq.s32.totalorder %s24, 1
      %p210 = scmp.ne.s32.totalorder %s205, %s207
      %p211 = scmp.eq.s32.totalorder %s24, 0
      %p212 = por %p210, %p211
      %p213 = scmp.ne.s32.totalorder %s205, %s207
      %p214 = scmp.eq.s32.totalorder %s29, 1
      %p215 = por %p213, %p214
      %p216 = scmp.ne.s32.totalorder %s207, %s208
      %p217 = scmp.eq.s32.totalorder %s29, 0
      %p218 = por %p216, %p217
      %p219 = scmp.ne.s32.totalorder %s207, %s208
      %p220 = scmp.eq.s32.totalorder %s30, 1
      %p221 = por %p219, %p220
      %p223 = scmp.ne.s32.totalorder %s208, %s222
      %p224 = scmp.eq.s32.totalorder %s30, 0
      %p225 = por %p223, %p224
      %s227 = sadd.s32 %s226, 1
      %p230 = scmp.eq.s32.totalorder %s24, 1
      %p231 = scmp.ne.s32.totalorder %s226, %s228
      %p232 = scmp.eq.s32.totalorder %s24, 0
      %p233 = por %p231, %p232
      %p234 = scmp.ne.s32.totalorder %s226, %s228
      %p235 = scmp.eq.s32.totalorder %s29, 1
      %p236 = por %p234, %p235
      %p237 = scmp.ne.s32.totalorder %s228, %s229
      %p238 = scmp.eq.s32.totalorder %s29, 0
      %p239 = por %p237, %p238
      %p240 = scmp.ne.s32.totalorder %s228, %s229
      %p241 = scmp.eq.s32.totalorder %s30, 1
      %p242 = por %p240, %p241
      %p244 = scmp.ne.s32.totalorder %s229, %s243
      %p245 = scmp.eq.s32.totalorder %s30, 0
      %p246 = por %p244, %p245
      %s248 = sadd.s32 %s247, 1
      %p251 = scmp.eq.s32.totalorder %s24, 1
      %p252 = scmp.ne.s32.totalorder %s247, %s249
      %p253 = scmp.eq.s32.totalorder %s24, 0
      %p254 = por %p252, %p253
      %p255 = scmp.ne.s32.totalorder %s247, %s249
      %p256 = scmp.eq.s32.totalorder %s29, 1
      %p257 = por %p255, %p256
      %p258 = scmp.ne.s32.totalorder %s249, %s250
      %p259 = scmp.eq.s32.totalorder %s29, 0
      %p260 = por %p258, %p259
      %p261 = scmp.ne.s32.totalorder %s249, %s250
      %p262 = scmp.eq.s32.totalorder %s30, 1
      %p263 = por %p261, %p262
      %p265 = scmp.ne.s32.totalorder %s250, %s264
      %p266 = scmp.eq.s32.totalorder %s30, 0
      %p267 = por %p265, %p266
      %s269 = sadd.s32 %s268, 1
      %p272 = scmp.eq.s32.totalorder %s24, 1
      %p273 = scmp.ne.s32.totalorder %s268, %s270
      %p274 = scmp.eq.s32.totalorder %s24, 0
      %p275 = por %p273, %p274
      %p276 = scmp.ne.s32.totalorder %s268, %s270
      %p277 = scmp.eq.s32.totalorder %s29, 1
      %p278 = por %p276, %p277
      %p279 = scmp.ne.s32.totalorder %s270, %s271
      %p280 = scmp.eq.s32.totalorder %s29, 0
      %p281 = por %p279, %p280
      %p282 = scmp.ne.s32.totalorder %s270, %s271
      %p283 = scmp.eq.s32.totalorder %s30, 1
      %p284 = por %p282, %p283
      %p286 = scmp.ne.s32.totalorder %s271, %s285
      %p287 = scmp.eq.s32.totalorder %s30, 0
      %p288 = por %p286, %p287
      %s290 = sadd.s32 %s289, 1
      %p293 = scmp.eq.s32.totalorder %s24, 1
      %p294 = scmp.ne.s32.totalorder %s289, %s291
      %p295 = scmp.eq.s32.totalorder %s24, 0
      %p296 = por %p294, %p295
      %p297 = scmp.ne.s32.totalorder %s289, %s291
      %p298 = scmp.eq.s32.totalorder %s29, 1
      %p299 = por %p297, %p298
      %p300 = scmp.ne.s32.totalorder %s291, %s292
      %p301 = scmp.eq.s32.totalorder %s29, 0
      %p302 = por %p300, %p301
      %p303 = scmp.ne.s32.totalorder %s291, %s292
      %p304 = scmp.eq.s32.totalorder %s30, 1
      %p305 = por %p303, %p304
      %p307 = scmp.ne.s32.totalorder %s292, %s306
      %p308 = scmp.eq.s32.totalorder %s30, 0
      %p309 = por %p307, %p308
      %s311 = sadd.s32 %s310, 1
      %p314 = scmp.eq.s32.totalorder %s24, 1
      %p315 = scmp.ne.s32.totalorder %s310, %s312
      %p316 = scmp.eq.s32.totalorder %s24, 0
      %p317 = por %p315, %p316
      %p318 = scmp.ne.s32.totalorder %s310, %s312
      %p319 = scmp.eq.s32.totalorder %s29, 1
      %p320 = por %p318, %p319
      %p321 = scmp.ne.s32.totalorder %s312, %s313
      %p322 = scmp.eq.s32.totalorder %s29, 0
      %p323 = por %p321, %p322
      %p324 = scmp.ne.s32.totalorder %s312, %s313
      %p325 = scmp.eq.s32.totalorder %s30, 1
      %p326 = por %p324, %p325
      %p328 = scmp.ne.s32.totalorder %s313, %s327
      %p329 = scmp.eq.s32.totalorder %s30, 0
      %p330 = por %p328, %p329
      %s332 = sadd.s32 %s331, 1
      %p335 = scmp.eq.s32.totalorder %s24, 1
      %p336 = scmp.ne.s32.totalorder %s331, %s333
      %p337 = scmp.eq.s32.totalorder %s24, 0
      %p338 = por %p336, %p337
      %p339 = scmp.ne.s32.totalorder %s331, %s333
      %p340 = scmp.eq.s32.totalorder %s29, 1
      %p341 = por %p339, %p340
      %p342 = scmp.ne.s32.totalorder %s333, %s334
      %p343 = scmp.eq.s32.totalorder %s29, 0
      %p344 = por %p342, %p343
      %p345 = scmp.ne.s32.totalorder %s333, %s334
      %p346 = scmp.eq.s32.totalorder %s30, 1
      %p347 = por %p345, %p346
      %p349 = scmp.ne.s32.totalorder %s334, %s348
      %p350 = scmp.eq.s32.totalorder %s30, 0
      %p351 = por %p349, %p350
      %s352 = ssub.s32 %s24, %s31
      %p353 = scmp.eq.s32.totalorder %s352, 0
      %s355 = sadd.s32 %s354, 1
      %s356 = scalar_select %p353, %s354, %s355
      %p359 = pneg %p353
      %p360 = scmp.eq.s32.totalorder %s24, 1
      %p361 = por %p359, %p360
      %p362 = scmp.ne.s32.totalorder %s354, %s357
      %p363 = scmp.eq.s32.totalorder %s24, 0
      %p364 = por %p362, %p363
      %p365 = scmp.ne.s32.totalorder %s354, %s357
      %p366 = scmp.eq.s32.totalorder %s29, 1
      %p367 = por %p365, %p366
      %p368 = scmp.ne.s32.totalorder %s357, %s358
      %p369 = scmp.eq.s32.totalorder %s29, 0
      %p370 = por %p368, %p369
      %p371 = scmp.ne.s32.totalorder %s357, %s358
      %p372 = scmp.eq.s32.totalorder %s30, 1
      %p373 = por %p371, %p372
      %p375 = scmp.ne.s32.totalorder %s358, %s374
      %p376 = scmp.eq.s32.totalorder %s30, 0
      %p377 = por %p375, %p376
      %p378 = scmp.le.s32.totalorder 1, %s24
      %p379 = scmp.lt.s32.totalorder %s24, 3
      %p380 = pnand %p378, %p379
      %p381 = pneg %p380
      // Predicated region
      $region9: #{net_forward.1} parent=5 // pred_check
        _
      $region10: #{net_forward.1} parent=5 // pred_check_branch
        %383 = sbr.rel (%p380) target = $region12
      $region11: #{net_forward.1} parent=5 // pred_region
        %s384 = ssub.s32 %s24, 1
        // Predicated region
        $region13: #{net_forward.1} parent=11 // pred_check
          %p385 = pneg %p71
        $region14: #{net_forward.1} parent=11 // pred_check_branch
          %387 = sbr.rel (%p385) target = $region16
        $region15: #{net_forward.1} parent=11 // pred_region
          _
        $region16: #{net_forward.1} parent=11 // pred_fallthru
          _
        // Predicated region
        $region17: #{net_forward.1} parent=11 // pred_check
          %p388 = pneg %p92
        $region18: #{net_forward.1} parent=11 // pred_check_branch
          %390 = sbr.rel (%p388) target = $region20
        $region19: #{net_forward.1} parent=11 // pred_region
          _
        $region20: #{net_forward.1} parent=11 // pred_fallthru
          _
        // Predicated region
        $region21: #{net_forward.1} parent=11 // pred_check
          %p391 = pneg %p113
        $region22: #{net_forward.1} parent=11 // pred_check_branch
          %393 = sbr.rel (%p391) target = $region24
        $region23: #{net_forward.1} parent=11 // pred_region
          _
        $region24: #{net_forward.1} parent=11 // pred_fallthru
          _
        // Predicated region
        $region25: #{net_forward.1} parent=11 // pred_check
          %p394 = pneg %p134
        $region26: #{net_forward.1} parent=11 // pred_check_branch
          %396 = sbr.rel (%p394) target = $region28
        $region27: #{net_forward.1} parent=11 // pred_region
          _
        $region28: #{net_forward.1} parent=11 // pred_fallthru
          _
        // Predicated region
        $region29: #{net_forward.1} parent=11 // pred_check
          %p397 = pneg %p155
        $region30: #{net_forward.1} parent=11 // pred_check_branch
          %399 = sbr.rel (%p397) target = $region32
        $region31: #{net_forward.1} parent=11 // pred_region
          _
        $region32: #{net_forward.1} parent=11 // pred_fallthru
          _
        // Predicated region
        $region33: #{net_forward.1} parent=11 // pred_check
          %p400 = pneg %p176
        $region34: #{net_forward.1} parent=11 // pred_check_branch
          %402 = sbr.rel (%p400) target = $region36
        $region35: #{net_forward.1} parent=11 // pred_region
          _
        $region36: #{net_forward.1} parent=11 // pred_fallthru
          _
        // Predicated region
        $region37: #{net_forward.1} parent=11 // pred_check
          %p403 = pneg %p197
        $region38: #{net_forward.1} parent=11 // pred_check_branch
          %405 = sbr.rel (%p403) target = $region40
        $region39: #{net_forward.1} parent=11 // pred_region
          _
        $region40: #{net_forward.1} parent=11 // pred_fallthru
          _
        // Predicated region
        $region41: #{net_forward.1} parent=11 // pred_check
          %p406 = pneg %p218
        $region42: #{net_forward.1} parent=11 // pred_check_branch
          %408 = sbr.rel (%p406) target = $region44
        $region43: #{net_forward.1} parent=11 // pred_region
          _
        $region44: #{net_forward.1} parent=11 // pred_fallthru
          _
        // Predicated region
        $region45: #{net_forward.1} parent=11 // pred_check
          %p409 = pneg %p239
        $region46: #{net_forward.1} parent=11 // pred_check_branch
          %411 = sbr.rel (%p409) target = $region48
        $region47: #{net_forward.1} parent=11 // pred_region
          _
        $region48: #{net_forward.1} parent=11 // pred_fallthru
          _
        // Predicated region
        $region49: #{net_forward.1} parent=11 // pred_check
          %p412 = pneg %p260
        $region50: #{net_forward.1} parent=11 // pred_check_branch
          %414 = sbr.rel (%p412) target = $region52
        $region51: #{net_forward.1} parent=11 // pred_region
          _
        $region52: #{net_forward.1} parent=11 // pred_fallthru
          _
        // Predicated region
        $region53: #{net_forward.1} parent=11 // pred_check
          %p415 = pneg %p281
        $region54: #{net_forward.1} parent=11 // pred_check_branch
          %417 = sbr.rel (%p415) target = $region56
        $region55: #{net_forward.1} parent=11 // pred_region
          _
        $region56: #{net_forward.1} parent=11 // pred_fallthru
          _
        // Predicated region
        $region57: #{net_forward.1} parent=11 // pred_check
          %p418 = pneg %p302
        $region58: #{net_forward.1} parent=11 // pred_check_branch
          %420 = sbr.rel (%p418) target = $region60
        $region59: #{net_forward.1} parent=11 // pred_region
          _
        $region60: #{net_forward.1} parent=11 // pred_fallthru
          _
        // Predicated region
        $region61: #{net_forward.1} parent=11 // pred_check
          %p421 = pneg %p323
        $region62: #{net_forward.1} parent=11 // pred_check_branch
          %423 = sbr.rel (%p421) target = $region64
        $region63: #{net_forward.1} parent=11 // pred_region
          _
        $region64: #{net_forward.1} parent=11 // pred_fallthru
          _
        // Predicated region
        $region65: #{net_forward.1} parent=11 // pred_check
          %p424 = pneg %p344
        $region66: #{net_forward.1} parent=11 // pred_check_branch
          %426 = sbr.rel (%p424) target = $region68
        $region67: #{net_forward.1} parent=11 // pred_region
          _
        $region68: #{net_forward.1} parent=11 // pred_fallthru
          _
      $region12: #{net_forward.1} parent=5 // pred_fallthru
        _
      %p427 = scmp.lt.s32.totalorder %s24, 2
      // Predicated region
      $region69: #{net_forward.1} parent=5 // pred_check
        %p428 = pneg %p427
      $region70: #{net_forward.1} parent=5 // pred_check_branch
        %430 = sbr.rel (%p428) target = $region72
      $region71: #{net_forward.1} parent=5 // pred_region
        // Predicated region
        $region73: #{net_forward.1} parent=71 // pred_check
          %p431 = pneg %p44
        $region74: #{net_forward.1} parent=71 // pred_check_branch
          %433 = sbr.rel (%p431) target = $region76
        $region75: #{net_forward.1} parent=71 // pred_region
          %s434 = sand.u32 %s34, 1
          %s435 = sand.u32 %s34, 1
          %s436 = smul.addr %s435, 256
          %s437 = scalar_lea.vmem [#allocation2], %s436
          %s438 = smul.addr %s24, 8
          %s439 = scalar_lea.vmem %s0, %s438
          // Predicated region
          $region77: #{net_forward.1} parent=75 // pred_check
            _
          $region78: #{net_forward.1} parent=75 // pred_check_branch
            %441 = sbr.rel (0) target = $region80
          $region79: #{net_forward.1} parent=75 // pred_region
            // Predicated region
            $region81: #{net_forward.1} parent=79 // pred_check
              _
            $region82: #{net_forward.1} parent=79 // pred_check_branch
              %443 = sbr.rel (0) target = $region84
            $region83: #{net_forward.1} parent=79 // pred_region
              // Predicated region
              $region96: #{net_forward.1} parent=83 // pred_check
                _
              $region97: #{net_forward.1} parent=83 // pred_check_branch
                %521 = sbr.rel (0) target = $region99
              $region98: #{net_forward.1} parent=83 // pred_region
                loop: start=0, step=1, limit=1
                $region100: #{net_forward.1} parent=98 // loop_pre_header
                  _
                $region101: #{net_forward.1} parent=98 // loop_header
                  %s523 = sphi 0, %s527
                  %p524 = scmp.ge.s32.totalorder %s523, 1
                  %s528 = sphi %s439, %s439
                  %s529 = sphi %s437, %s437
                $region102: #{net_forward.1} parent=98 // loop_header_branch
                  %526 = sbr.rel (%p524) target = $region106
                $region103: #{net_forward.1} parent=98 // loop_body
                  %v530 = vld [vmem:[%s528] sm:$0xff]
                  %531 = vst [vmem:[%s529] sm:$0xff] %v530
                  %v532 = vld [vmem:[%s528 + $0x10] sm:$0xff]
                  %533 = vst [vmem:[%s529 + $0x8] sm:$0xff] %v532
                  %v534 = vld [vmem:[%s528 + $0x20] sm:$0xff]
                  %535 = vst [vmem:[%s529 + $0x10] sm:$0xff] %v534
                  %v536 = vld [vmem:[%s528 + $0x30] sm:$0xff]
                  %537 = vst [vmem:[%s529 + $0x18] sm:$0xff] %v536
                  %v538 = vld [vmem:[%s528 + $0x40] sm:$0xff]
                  %539 = vst [vmem:[%s529 + $0x20] sm:$0xff] %v538
                  %v540 = vld [vmem:[%s528 + $0x50] sm:$0xff]
                  %541 = vst [vmem:[%s529 + $0x28] sm:$0xff] %v540
                  %v542 = vld [vmem:[%s528 + $0x60] sm:$0xff]
                  %543 = vst [vmem:[%s529 + $0x30] sm:$0xff] %v542
                  %v544 = vld [vmem:[%s528 + $0x70] sm:$0xff]
                  %545 = vst [vmem:[%s529 + $0x38] sm:$0xff] %v544
                  %v546 = vld [vmem:[%s528 + $0x80] sm:$0xff]
                  %547 = vst [vmem:[%s529 + $0x40] sm:$0xff] %v546
                  %v548 = vld [vmem:[%s528 + $0x90] sm:$0xff]
                  %549 = vst [vmem:[%s529 + $0x48] sm:$0xff] %v548
                  %v550 = vld [vmem:[%s528 + $0xa0] sm:$0xff]
                  %551 = vst [vmem:[%s529 + $0x50] sm:$0xff] %v550
                  %v552 = vld [vmem:[%s528 + $0xb0] sm:$0xff]
                  %553 = vst [vmem:[%s529 + $0x58] sm:$0xff] %v552
                  %v554 = vld [vmem:[%s528 + $0xc0] sm:$0xff]
                  %555 = vst [vmem:[%s529 + $0x60] sm:$0xff] %v554
                  %v556 = vld [vmem:[%s528 + $0xd0] sm:$0xff]
                  %557 = vst [vmem:[%s529 + $0x68] sm:$0xff] %v556
                  %v558 = vld [vmem:[%s528 + $0xe0] sm:$0xff]
                  %559 = vst [vmem:[%s529 + $0x70] sm:$0xff] %v558
                  %v560 = vld [vmem:[%s528 + $0xf0] sm:$0xff]
                  %561 = vst [vmem:[%s529 + $0x78] sm:$0xff] %v560
                  %v562 = vld [vmem:[%s528 + $0x100] sm:$0xff]
                  %563 = vst [vmem:[%s529 + $0x80] sm:$0xff] %v562
                  %v564 = vld [vmem:[%s528 + $0x110] sm:$0xff]
                  %565 = vst [vmem:[%s529 + $0x88] sm:$0xff] %v564
                  %v566 = vld [vmem:[%s528 + $0x120] sm:$0xff]
                  %567 = vst [vmem:[%s529 + $0x90] sm:$0xff] %v566
                  %v568 = vld [vmem:[%s528 + $0x130] sm:$0xff]
                  %569 = vst [vmem:[%s529 + $0x98] sm:$0xff] %v568
                  %v570 = vld [vmem:[%s528 + $0x140] sm:$0xff]
                  %571 = vst [vmem:[%s529 + $0xa0] sm:$0xff] %v570
                  %v572 = vld [vmem:[%s528 + $0x150] sm:$0xff]
                  %573 = vst [vmem:[%s529 + $0xa8] sm:$0xff] %v572
                  %v574 = vld [vmem:[%s528 + $0x160] sm:$0xff]
                  %575 = vst [vmem:[%s529 + $0xb0] sm:$0xff] %v574
                  %v576 = vld [vmem:[%s528 + $0x170] sm:$0xff]
                  %577 = vst [vmem:[%s529 + $0xb8] sm:$0xff] %v576
                  %v578 = vld [vmem:[%s528 + $0x180] sm:$0xff]
                  %579 = vst [vmem:[%s529 + $0xc0] sm:$0xff] %v578
                  %v580 = vld [vmem:[%s528 + $0x190] sm:$0xff]
                  %581 = vst [vmem:[%s529 + $0xc8] sm:$0xff] %v580
                  %v582 = vld [vmem:[%s528 + $0x1a0] sm:$0xff]
                  %583 = vst [vmem:[%s529 + $0xd0] sm:$0xff] %v582
                  %v584 = vld [vmem:[%s528 + $0x1b0] sm:$0xff]
                  %585 = vst [vmem:[%s529 + $0xd8] sm:$0xff] %v584
                  %v586 = vld [vmem:[%s528 + $0x1c0] sm:$0xff]
                  %587 = vst [vmem:[%s529 + $0xe0] sm:$0xff] %v586
                  %v588 = vld [vmem:[%s528 + $0x1d0] sm:$0xff]
                  %589 = vst [vmem:[%s529 + $0xe8] sm:$0xff] %v588
                  %v590 = vld [vmem:[%s528 + $0x1e0] sm:$0xff]
                  %591 = vst [vmem:[%s529 + $0xf0] sm:$0xff] %v590
                  %v592 = vld [vmem:[%s528 + $0x1f0] sm:$0xff]
                  %593 = vst [vmem:[%s529 + $0xf8] sm:$0xff] %v592
                $region104: #{net_forward.1} parent=98 // loop_footer
                  %s527 = sadd.s32 1, %s523
                $region105: #{net_forward.1} parent=98 // loop_footer_branch
                  %522 = sbr.rel target = $region101
                $region106: #{net_forward.1} parent=98 // loop_exit
                  _
              $region99: #{net_forward.1} parent=83 // pred_fallthru
                _
              // Predicated region
              $region107: #{net_forward.1} parent=83 // pred_check
                _
              $region108: #{net_forward.1} parent=83 // pred_check_branch
                %595 = sbr.rel target = $region110
              $region109: #{net_forward.1} parent=83 // pred_region
                _
              $region110: #{net_forward.1} parent=83 // pred_fallthru
                _
            $region84: #{net_forward.1} parent=79 // pred_fallthru
              _
            // Predicated region
            $region85: #{net_forward.1} parent=79 // pred_check
              _
            $region86: #{net_forward.1} parent=79 // pred_check_branch
              %445 = sbr.rel target = $region88
            $region87: #{net_forward.1} parent=79 // pred_region
              %s447 = ssub.s32 256, 1
              loop: start=0, step=1, limit=1
              $region89: #{net_forward.1} parent=87 // loop_pre_header
                _
              $region90: #{net_forward.1} parent=87 // loop_header
                %s449 = sphi 0, %s453
                %p450 = scmp.ge.s32.totalorder %s449, 1
                %s454 = sphi %s439, %s439
                %s455 = sphi %s437, %s437
              $region91: #{net_forward.1} parent=87 // loop_header_branch
                %452 = sbr.rel (%p450) target = $region95
              $region92: #{net_forward.1} parent=87 // loop_body
                %v456 = vld [vmem:[%s454] sm:%s447]
                %457 = vst [vmem:[%s455] sm:%s447] %v456
                %v458 = vld [vmem:[%s454 + $0x10] sm:%s447]
                %459 = vst [vmem:[%s455 + $0x8] sm:%s447] %v458
                %v460 = vld [vmem:[%s454 + $0x20] sm:%s447]
                %461 = vst [vmem:[%s455 + $0x10] sm:%s447] %v460
                %v462 = vld [vmem:[%s454 + $0x30] sm:%s447]
                %463 = vst [vmem:[%s455 + $0x18] sm:%s447] %v462
                %v464 = vld [vmem:[%s454 + $0x40] sm:%s447]
                %465 = vst [vmem:[%s455 + $0x20] sm:%s447] %v464
                %v466 = vld [vmem:[%s454 + $0x50] sm:%s447]
                %467 = vst [vmem:[%s455 + $0x28] sm:%s447] %v466
                %v468 = vld [vmem:[%s454 + $0x60] sm:%s447]
                %469 = vst [vmem:[%s455 + $0x30] sm:%s447] %v468
                %v470 = vld [vmem:[%s454 + $0x70] sm:%s447]
                %471 = vst [vmem:[%s455 + $0x38] sm:%s447] %v470
                %v472 = vld [vmem:[%s454 + $0x80] sm:%s447]
                %473 = vst [vmem:[%s455 + $0x40] sm:%s447] %v472
                %v474 = vld [vmem:[%s454 + $0x90] sm:%s447]
                %475 = vst [vmem:[%s455 + $0x48] sm:%s447] %v474
                %v476 = vld [vmem:[%s454 + $0xa0] sm:%s447]
                %477 = vst [vmem:[%s455 + $0x50] sm:%s447] %v476
                %v478 = vld [vmem:[%s454 + $0xb0] sm:%s447]
                %479 = vst [vmem:[%s455 + $0x58] sm:%s447] %v478
                %v480 = vld [vmem:[%s454 + $0xc0] sm:%s447]
                %481 = vst [vmem:[%s455 + $0x60] sm:%s447] %v480
                %v482 = vld [vmem:[%s454 + $0xd0] sm:%s447]
                %483 = vst [vmem:[%s455 + $0x68] sm:%s447] %v482
                %v484 = vld [vmem:[%s454 + $0xe0] sm:%s447]
                %485 = vst [vmem:[%s455 + $0x70] sm:%s447] %v484
                %v486 = vld [vmem:[%s454 + $0xf0] sm:%s447]
                %487 = vst [vmem:[%s455 + $0x78] sm:%s447] %v486
                %v488 = vld [vmem:[%s454 + $0x100] sm:%s447]
                %489 = vst [vmem:[%s455 + $0x80] sm:%s447] %v488
                %v490 = vld [vmem:[%s454 + $0x110] sm:%s447]
                %491 = vst [vmem:[%s455 + $0x88] sm:%s447] %v490
                %v492 = vld [vmem:[%s454 + $0x120] sm:%s447]
                %493 = vst [vmem:[%s455 + $0x90] sm:%s447] %v492
                %v494 = vld [vmem:[%s454 + $0x130] sm:%s447]
                %495 = vst [vmem:[%s455 + $0x98] sm:%s447] %v494
                %v496 = vld [vmem:[%s454 + $0x140] sm:%s447]
                %497 = vst [vmem:[%s455 + $0xa0] sm:%s447] %v496
                %v498 = vld [vmem:[%s454 + $0x150] sm:%s447]
                %499 = vst [vmem:[%s455 + $0xa8] sm:%s447] %v498
                %v500 = vld [vmem:[%s454 + $0x160] sm:%s447]
                %501 = vst [vmem:[%s455 + $0xb0] sm:%s447] %v500
                %v502 = vld [vmem:[%s454 + $0x170] sm:%s447]
                %503 = vst [vmem:[%s455 + $0xb8] sm:%s447] %v502
                %v504 = vld [vmem:[%s454 + $0x180] sm:%s447]
                %505 = vst [vmem:[%s455 + $0xc0] sm:%s447] %v504
                %v506 = vld [vmem:[%s454 + $0x190] sm:%s447]
                %507 = vst [vmem:[%s455 + $0xc8] sm:%s447] %v506
                %v508 = vld [vmem:[%s454 + $0x1a0] sm:%s447]
                %509 = vst [vmem:[%s455 + $0xd0] sm:%s447] %v508
                %v510 = vld [vmem:[%s454 + $0x1b0] sm:%s447]
                %511 = vst [vmem:[%s455 + $0xd8] sm:%s447] %v510
                %v512 = vld [vmem:[%s454 + $0x1c0] sm:%s447]
                %513 = vst [vmem:[%s455 + $0xe0] sm:%s447] %v512
                %v514 = vld [vmem:[%s454 + $0x1d0] sm:%s447]
                %515 = vst [vmem:[%s455 + $0xe8] sm:%s447] %v514
                %v516 = vld [vmem:[%s454 + $0x1e0] sm:%s447]
                %517 = vst [vmem:[%s455 + $0xf0] sm:%s447] %v516
                %v518 = vld [vmem:[%s454 + $0x1f0] sm:%s447]
                %519 = vst [vmem:[%s455 + $0xf8] sm:%s447] %v518
              $region93: #{net_forward.1} parent=87 // loop_footer
                %s453 = sadd.s32 1, %s449
              $region94: #{net_forward.1} parent=87 // loop_footer_branch
                %448 = sbr.rel target = $region90
              $region95: #{net_forward.1} parent=87 // loop_exit
                _
            $region88: #{net_forward.1} parent=79 // pred_fallthru
              _
          $region80: #{net_forward.1} parent=75 // pred_fallthru
            _
          %596 = vnop
        $region76: #{net_forward.1} parent=71 // pred_fallthru
          _
      $region72: #{net_forward.1} parent=5 // pred_fallthru
        _
      %p597 = scmp.le.s32.totalorder 1, %s24
      %p598 = scmp.lt.s32.totalorder %s24, 3
      %p599 = pnand %p597, %p598
      %p600 = pneg %p599
      // Predicated region
      $region111: #{net_forward.1} parent=5 // pred_check
        _
      $region112: #{net_forward.1} parent=5 // pred_check_branch
        %602 = sbr.rel (%p599) target = $region114
      $region113: #{net_forward.1} parent=5 // pred_region
        %s603 = ssub.s32 %s24, 1
        %s604 = sand.u32 %s37, 1
        %s605 = sand.u32 %s37, 1
        %s606 = smul.addr %s605, 256
        %s607 = scalar_lea.vmem [#allocation2], %s606
        // Predicated region
        $region115: #{net_forward.1} parent=113 // pred_check
          %p608 = pneg %p50
        $region116: #{net_forward.1} parent=113 // pred_check_branch
          %610 = sbr.rel (%p608) target = $region118
        $region117: #{net_forward.1} parent=113 // pred_region
          _
        $region118: #{net_forward.1} parent=113 // pred_fallthru
          _
        %s611 = sand.u32 %s37, 1
        %s612 = sand.u32 %s37, 1
        %s613 = smul.addr %s612, 256
        %s614 = scalar_lea.vmem [#allocation2], %s613
        %p615 = pneg %p50
        %p616 = pneg %p47
        %p617 = pneg %p71
        %p618 = pneg %p68
        %p619 = pneg %p92
        %p620 = pneg %p89
        %p621 = pneg %p113
        %p622 = pneg %p110
        %p623 = pneg %p134
        %p624 = pneg %p131
        %p625 = pneg %p155
        %p626 = pneg %p152
        %p627 = pneg %p176
        %p628 = pneg %p173
        %p629 = pneg %p197
        %p630 = pneg %p194
        %p631 = pneg %p218
        %p632 = pneg %p215
        %p633 = pneg %p239
        %p634 = pneg %p236
        %p635 = pneg %p260
        %p636 = pneg %p257
        %p637 = pneg %p281
        %p638 = pneg %p278
        %p639 = pneg %p302
        %p640 = pneg %p299
        %p641 = pneg %p323
        %p642 = pneg %p320
        %p643 = pneg %p344
        %p644 = pneg %p341
        %p645 = pneg %p370
        %p646 = pneg %p367
        %s647 = sand.u32 %s357, 1
        %s648 = scalar_lea.sflag [#allocation4], %s647
        %s649 = sand.u32 %s357, 1
        %s650 = smul.addr %s649, 8
        %s651 = scalar_lea.vmem [#allocation3], %s650
        %v652 = vld [vmem:[%s607] sm:$0xff]
        %v653 = vld [vmem:[%s607 + $0x8] sm:$0xff]
        %v654 = vld [vmem:[%s607 + $0x10] sm:$0xff]
        %v655 = vld [vmem:[%s607 + $0x18] sm:$0xff]
        %v656 = vld [vmem:[%s607 + $0x20] sm:$0xff]
        %v657 = vld [vmem:[%s607 + $0x28] sm:$0xff]
        %v658 = vld [vmem:[%s607 + $0x30] sm:$0xff]
        %v659 = vld [vmem:[%s607 + $0x38] sm:$0xff]
        %v660 = vld [vmem:[%s607 + $0x40] sm:$0xff]
        %v661 = vld [vmem:[%s607 + $0x48] sm:$0xff]
        %v662 = vld [vmem:[%s607 + $0x50] sm:$0xff]
        %v663 = vld [vmem:[%s607 + $0x58] sm:$0xff]
        %v664 = vld [vmem:[%s607 + $0x60] sm:$0xff]
        %v665 = vld [vmem:[%s607 + $0x68] sm:$0xff]
        %v666 = vld [vmem:[%s607 + $0x70] sm:$0xff]
        %v667 = vld [vmem:[%s607 + $0x78] sm:$0xff]
        %v668 = vld [vmem:[%s607 + $0x80] sm:$0xff]
        %v669 = vld [vmem:[%s607 + $0x88] sm:$0xff]
        %v670 = vld [vmem:[%s607 + $0x90] sm:$0xff]
        %v671 = vld [vmem:[%s607 + $0x98] sm:$0xff]
        %v672 = vld [vmem:[%s607 + $0xa0] sm:$0xff]
        %v673 = vld [vmem:[%s607 + $0xa8] sm:$0xff]
        %v674 = vld [vmem:[%s607 + $0xb0] sm:$0xff]
        %v675 = vld [vmem:[%s607 + $0xb8] sm:$0xff]
        %v676 = vld [vmem:[%s607 + $0xc0] sm:$0xff]
        %v677 = vld [vmem:[%s607 + $0xc8] sm:$0xff]
        %v678 = vld [vmem:[%s607 + $0xd0] sm:$0xff]
        %v679 = vld [vmem:[%s607 + $0xd8] sm:$0xff]
        %v680 = vld [vmem:[%s1] sm:$0xff]
        %v681 = vld [vmem:[%s1 + $0x8] sm:$0xff]
        %v682 = vld [vmem:[%s1 + $0x10] sm:$0xff]
        %v683 = vld [vmem:[%s1 + $0x18] sm:$0xff]
        %v684 = vld [vmem:[%s1 + $0x20] sm:$0xff]
        %v685 = vld [vmem:[%s1 + $0x28] sm:$0xff]
        %v686 = vld [vmem:[%s1 + $0x30] sm:$0xff]
        %v687 = vld [vmem:[%s1 + $0x38] sm:$0xff]
        %v688 = vld [vmem:[%s1 + $0x40] sm:$0xff]
        %v689 = vld [vmem:[%s1 + $0x48] sm:$0xff]
        %v690 = vld [vmem:[%s1 + $0x50] sm:$0xff]
        %v691 = vld [vmem:[%s1 + $0x58] sm:$0xff]
        %v692 = vld [vmem:[%s1 + $0x60] sm:$0xff]
        %v693 = vld [vmem:[%s1 + $0x68] sm:$0xff]
        %v694 = vld [vmem:[%s1 + $0x70] sm:$0xff]
        %v695 = vld [vmem:[%s1 + $0x78] sm:$0xff]
        %v696 = vld [vmem:[%s1 + $0x80] sm:$0xff]
        %v697 = vld [vmem:[%s1 + $0x88] sm:$0xff]
        %v698 = vld [vmem:[%s1 + $0x90] sm:$0xff]
        %v699 = vld [vmem:[%s1 + $0x98] sm:$0xff]
        %v700 = vld [vmem:[%s1 + $0xa0] sm:$0xff]
        %v701 = vld [vmem:[%s1 + $0xa8] sm:$0xff]
        %v702 = vld [vmem:[%s1 + $0xb0] sm:$0xff]
        %v703 = vld [vmem:[%s1 + $0xb8] sm:$0xff]
        %s704 = scalar_lea.vmem %s607, 8 [#allocation2]
        %v705 = vld [vmem:[%s704] sm:$0xff]
        %v706 = vld [vmem:[%s704 + $0x8] sm:$0xff]
        %v707 = vld [vmem:[%s704 + $0x10] sm:$0xff]
        %v708 = vld [vmem:[%s704 + $0x18] sm:$0xff]
        %v709 = vld [vmem:[%s704 + $0x20] sm:$0xff]
        %v710 = vld [vmem:[%s704 + $0x28] sm:$0xff]
        %v711 = vld [vmem:[%s704 + $0x30] sm:$0xff]
        %v712 = vld [vmem:[%s704 + $0x38] sm:$0xff]
        %v713 = vld [vmem:[%s704 + $0x40] sm:$0xff]
        %v714 = vld [vmem:[%s704 + $0x48] sm:$0xff]
        %v715 = vld [vmem:[%s704 + $0x50] sm:$0xff]
        %v716 = vld [vmem:[%s704 + $0x58] sm:$0xff]
        %v717 = vld [vmem:[%s704 + $0x60] sm:$0xff]
        %v718 = vld [vmem:[%s704 + $0x68] sm:$0xff]
        %v719 = vld [vmem:[%s704 + $0x70] sm:$0xff]
        %v720 = vld [vmem:[%s704 + $0x78] sm:$0xff]
        %v721 = vld [vmem:[%s704 + $0x80] sm:$0xff]
        %v722 = vld [vmem:[%s704 + $0x88] sm:$0xff]
        %v723 = vld [vmem:[%s704 + $0x90] sm:$0xff]
        %v724 = vld [vmem:[%s704 + $0x98] sm:$0xff]
        %v725 = vld [vmem:[%s704 + $0xa0] sm:$0xff]
        %v726 = vld [vmem:[%s704 + $0xa8] sm:$0xff]
        %v727 = vld [vmem:[%s704 + $0xb0] sm:$0xff]
        %v728 = vld [vmem:[%s704 + $0xb8] sm:$0xff]
        %v729 = vld [vmem:[%s704 + $0xc0] sm:$0xff]
        %v730 = vld [vmem:[%s704 + $0xc8] sm:$0xff]
        %v731 = vld [vmem:[%s704 + $0xd0] sm:$0xff]
        %v732 = vld [vmem:[%s704 + $0xd8] sm:$0xff]
        %s733 = scalar_lea.vmem %s1, 192
        %v734 = vld [vmem:[%s733] sm:$0xff]
        %v735 = vld [vmem:[%s733 + $0x8] sm:$0xff]
        %v736 = vld [vmem:[%s733 + $0x10] sm:$0xff]
        %v737 = vld [vmem:[%s733 + $0x18] sm:$0xff]
        %v738 = vld [vmem:[%s733 + $0x20] sm:$0xff]
        %v739 = vld [vmem:[%s733 + $0x28] sm:$0xff]
        %v740 = vld [vmem:[%s733 + $0x30] sm:$0xff]
        %v741 = vld [vmem:[%s733 + $0x38] sm:$0xff]
        %v742 = vld [vmem:[%s733 + $0x40] sm:$0xff]
        %v743 = vld [vmem:[%s733 + $0x48] sm:$0xff]
        %v744 = vld [vmem:[%s733 + $0x50] sm:$0xff]
        %v745 = vld [vmem:[%s733 + $0x58] sm:$0xff]
        %v746 = vld [vmem:[%s733 + $0x60] sm:$0xff]
        %v747 = vld [vmem:[%s733 + $0x68] sm:$0xff]
        %v748 = vld [vmem:[%s733 + $0x70] sm:$0xff]
        %v749 = vld [vmem:[%s733 + $0x78] sm:$0xff]
        %v750 = vld [vmem:[%s733 + $0x80] sm:$0xff]
        %v751 = vld [vmem:[%s733 + $0x88] sm:$0xff]
        %v752 = vld [vmem:[%s733 + $0x90] sm:$0xff]
        %v753 = vld [vmem:[%s733 + $0x98] sm:$0xff]
        %v754 = vld [vmem:[%s733 + $0xa0] sm:$0xff]
        %v755 = vld [vmem:[%s733 + $0xa8] sm:$0xff]
        %v756 = vld [vmem:[%s733 + $0xb0] sm:$0xff]
        %v757 = vld [vmem:[%s733 + $0xb8] sm:$0xff]
        %vm758 = vcmask 785408
        %v760 = vsel %vm758, %v705, 0
        %v763 = vsel %vm758, %v706, 0
        %v766 = vsel %vm758, %v707, 0
        %v769 = vsel %vm758, %v708, 0
        %v772 = vsel %vm758, %v709, 0
        %v775 = vsel %vm758, %v710, 0
        %v778 = vsel %vm758, %v711, 0
        %v781 = vsel %vm758, %v712, 0
        %v784 = vsel %vm758, %v713, 0
        %v787 = vsel %vm758, %v714, 0
        %v790 = vsel %vm758, %v715, 0
        %v793 = vsel %vm758, %v716, 0
        %v796 = vsel %vm758, %v717, 0
        %v799 = vsel %vm758, %v718, 0
        %v802 = vsel %vm758, %v719, 0
        %v805 = vsel %vm758, %v720, 0
        %v808 = vsel %vm758, %v721, 0
        %v811 = vsel %vm758, %v722, 0
        %v814 = vsel %vm758, %v723, 0
        %v817 = vsel %vm758, %v724, 0
        %v820 = vsel %vm758, %v725, 0
        %v823 = vsel %vm758, %v726, 0
        %v826 = vsel %vm758, %v727, 0
        %v829 = vsel %vm758, %v728, 0
        %v832 = vsel %vm758, %v729, 0
        %v835 = vsel %vm758, %v730, 0
        %v838 = vsel %vm758, %v731, 0
        %v841 = vsel %vm758, %v732, 0
        %843 = vmatprep.subr.mxu0 0.0
        %844 = vmatpush1.msra.mxu0 0.0
        %845 = vmatprep.subr.mxu0 0.0
        %846 = vmatpush1.msra.mxu0 0.0
        %847 = vmatprep.subr.mxu0 0.0
        %848 = vmatpush1.msra.mxu0 0.0
        %849 = vmatprep.subr.mxu0 0.0
        %850 = vmatpush1.msra.mxu0 0.0
        %851 = vmatprep.subr.mxu0 %v757
        %852 = vmatpush1.msra.mxu0 %v756
        %853 = vmatprep.subr.mxu0 %v755
        %854 = vmatpush1.msra.mxu0 %v754
        %855 = vmatprep.subr.mxu0 %v753
        %856 = vmatpush1.msra.mxu0 %v752
        %857 = vmatprep.subr.mxu0 %v751
        %858 = vmatpush1.msra.mxu0 %v750
        %859 = vmatprep.subr.mxu0 %v749
        %860 = vmatpush1.msra.mxu0 %v748
        %861 = vmatprep.subr.mxu0 %v747
        %862 = vmatpush1.msra.mxu0 %v746
        %863 = vmatprep.subr.mxu0 %v745
        %864 = vmatpush1.msra.mxu0 %v744
        %865 = vmatprep.subr.mxu0 %v743
        %866 = vmatpush1.msra.mxu0 %v742
        %867 = vmatprep.subr.mxu0 %v741
        %868 = vmatpush1.msra.mxu0 %v740
        %869 = vmatprep.subr.mxu0 %v739
        %870 = vmatpush1.msra.mxu0 %v738
        %871 = vmatprep.subr.mxu0 %v737
        %872 = vmatpush1.msra.mxu0 %v736
        %873 = vmatprep.subr.mxu0 %v735
        %874 = vmatpush1.msra.mxu0 %v734
        %875 = vmatprep.subr.mxu0 0.0
        %876 = vmatpush2.msra.mxu0 0.0
        %877 = vmatprep.subr.mxu0 0.0
        %878 = vmatpush2.msra.mxu0 0.0
        %879 = vmatprep.subr.mxu0 0.0
        %880 = vmatpush2.msra.mxu0 0.0
        %881 = vmatprep.subr.mxu0 0.0
        %882 = vmatpush2.msra.mxu0 0.0
        %883 = vmatprep.subr.mxu0 0.0
        %884 = vmatpush2.msra.mxu0 0.0
        %885 = vmatprep.subr.mxu0 0.0
        %886 = vmatpush2.msra.mxu0 0.0
        %887 = vmatprep.subr.mxu0 0.0
        %888 = vmatpush2.msra.mxu0 0.0
        %889 = vmatprep.subr.mxu0 0.0
        %890 = vmatpush2.msra.mxu0 0.0
        %891 = vmatprep.subr.mxu0 0.0
        %892 = vmatpush2.msra.mxu0 0.0
        %893 = vmatprep.subr.mxu0 0.0
        %894 = vmatpush2.msra.mxu0 0.0
        %895 = vmatprep.subr.mxu0 0.0
        %896 = vmatpush2.msra.mxu0 0.0
        %897 = vmatprep.subr.mxu0 0.0
        %898 = vmatpush2.msra.mxu0 0.0
        %899 = vmatprep.subr.mxu0 0.0
        %900 = vmatpush2.msra.mxu0 0.0
        %901 = vmatprep.subr.mxu0 0.0
        %902 = vmatpush2.msra.mxu0 0.0
        %903 = vmatprep.subr.mxu0 0.0
        %904 = vmatpush2.msra.mxu0 0.0
        %905 = vmatprep.subr.mxu0 0.0
        %906 = vmatpush2.msra.mxu0 0.0
        %907 = vmatprep.mubr.f32.mxu0 0.0
        %908 = vmatmul.mubr.f32.gmra.mxu0 %v760
        %v909 = vpop.f32.mrf.mxu0
        %v910 = vadd.f32 0.0, %v909
        %v911 = vpop.f32.mrf.mxu0
        %v912 = vadd.f32 0.0, %v911
        %913 = vmatprep.mubr.f32.mxu0 0.0
        %914 = vmatmul.mubr.f32.gmra.mxu0 %v763
        %v915 = vpop.f32.mrf.mxu0
        %v916 = vadd.f32 0.0, %v915
        %v917 = vpop.f32.mrf.mxu0
        %v918 = vadd.f32 0.0, %v917
        %919 = vmatprep.mubr.f32.mxu0 0.0
        %920 = vmatmul.mubr.f32.gmra.mxu0 %v766
        %v921 = vpop.f32.mrf.mxu0
        %v922 = vadd.f32 0.0, %v921
        %v923 = vpop.f32.mrf.mxu0
        %v924 = vadd.f32 0.0, %v923
        %925 = vmatprep.mubr.f32.mxu0 0.0
        %926 = vmatmul.mubr.f32.gmra.mxu0 %v769
        %v927 = vpop.f32.mrf.mxu0
        %v928 = vadd.f32 0.0, %v927
        %v929 = vpop.f32.mrf.mxu0
        %v930 = vadd.f32 0.0, %v929
        %931 = vmatprep.mubr.f32.mxu0 0.0
        %932 = vmatmul.mubr.f32.gmra.mxu0 %v772
        %v933 = vpop.f32.mrf.mxu0
        %v934 = vadd.f32 0.0, %v933
        %v935 = vpop.f32.mrf.mxu0
        %v936 = vadd.f32 0.0, %v935
        %937 = vmatprep.mubr.f32.mxu0 0.0
        %938 = vmatmul.mubr.f32.gmra.mxu0 %v775
        %v939 = vpop.f32.mrf.mxu0
        %v940 = vadd.f32 0.0, %v939
        %v941 = vpop.f32.mrf.mxu0
        %v942 = vadd.f32 0.0, %v941
        %943 = vmatprep.mubr.f32.mxu0 0.0
        %944 = vmatmul.mubr.f32.gmra.mxu0 %v778
        %v945 = vpop.f32.mrf.mxu0
        %v946 = vadd.f32 0.0, %v945
        %v947 = vpop.f32.mrf.mxu0
        %v948 = vadd.f32 0.0, %v947
        %949 = vmatprep.mubr.f32.mxu0 0.0
        %950 = vmatmul.mubr.f32.gmra.mxu0 %v781
        %v951 = vpop.f32.mrf.mxu0
        %v952 = vadd.f32 0.0, %v951
        %v953 = vpop.f32.mrf.mxu0
        %v954 = vadd.f32 0.0, %v953
        %955 = vmatprep.mubr.f32.mxu0 0.0
        %956 = vmatmul.mubr.f32.gmra.mxu0 %v784
        %v957 = vpop.f32.mrf.mxu0
        %v958 = vadd.f32 0.0, %v957
        %v959 = vpop.f32.mrf.mxu0
        %v960 = vadd.f32 0.0, %v959
        %961 = vmatprep.mubr.f32.mxu0 0.0
        %962 = vmatmul.mubr.f32.gmra.mxu0 %v787
        %v963 = vpop.f32.mrf.mxu0
        %v964 = vadd.f32 0.0, %v963
        %v965 = vpop.f32.mrf.mxu0
        %v966 = vadd.f32 0.0, %v965
        %967 = vmatprep.mubr.f32.mxu0 0.0
        %968 = vmatmul.mubr.f32.gmra.mxu0 %v790
        %v969 = vpop.f32.mrf.mxu0
        %v970 = vadd.f32 0.0, %v969
        %v971 = vpop.f32.mrf.mxu0
        %v972 = vadd.f32 0.0, %v971
        %973 = vmatprep.mubr.f32.mxu0 0.0
        %974 = vmatmul.mubr.f32.gmra.mxu0 %v793
        %v975 = vpop.f32.mrf.mxu0
        %v976 = vadd.f32 0.0, %v975
        %v977 = vpop.f32.mrf.mxu0
        %v978 = vadd.f32 0.0, %v977
        %979 = vmatprep.mubr.f32.mxu0 0.0
        %980 = vmatmul.mubr.f32.gmra.mxu0 %v796
        %v981 = vpop.f32.mrf.mxu0
        %v982 = vadd.f32 0.0, %v981
        %v983 = vpop.f32.mrf.mxu0
        %v984 = vadd.f32 0.0, %v983
        %985 = vmatprep.mubr.f32.mxu0 0.0
        %986 = vmatmul.mubr.f32.gmra.mxu0 %v799
        %v987 = vpop.f32.mrf.mxu0
        %v988 = vadd.f32 0.0, %v987
        %v989 = vpop.f32.mrf.mxu0
        %v990 = vadd.f32 0.0, %v989
        %991 = vmatprep.mubr.f32.mxu0 0.0
        %992 = vmatmul.mubr.f32.gmra.mxu0 %v802
        %v993 = vpop.f32.mrf.mxu0
        %v994 = vadd.f32 0.0, %v993
        %v995 = vpop.f32.mrf.mxu0
        %v996 = vadd.f32 0.0, %v995
        %997 = vmatprep.mubr.f32.mxu0 0.0
        %998 = vmatmul.mubr.f32.gmra.mxu0 %v805
        %v999 = vpop.f32.mrf.mxu0
        %v1000 = vadd.f32 0.0, %v999
        %v1001 = vpop.f32.mrf.mxu0
        %v1002 = vadd.f32 0.0, %v1001
        %1003 = vmatprep.mubr.f32.mxu0 0.0
        %1004 = vmatmul.mubr.f32.gmra.mxu0 %v808
        %v1005 = vpop.f32.mrf.mxu0
        %v1006 = vadd.f32 0.0, %v1005
        %v1007 = vpop.f32.mrf.mxu0
        %v1008 = vadd.f32 0.0, %v1007
        %1009 = vmatprep.mubr.f32.mxu0 0.0
        %1010 = vmatmul.mubr.f32.gmra.mxu0 %v811
        %v1011 = vpop.f32.mrf.mxu0
        %v1012 = vadd.f32 0.0, %v1011
        %v1013 = vpop.f32.mrf.mxu0
        %v1014 = vadd.f32 0.0, %v1013
        %1015 = vmatprep.mubr.f32.mxu0 0.0
        %1016 = vmatmul.mubr.f32.gmra.mxu0 %v814
        %v1017 = vpop.f32.mrf.mxu0
        %v1018 = vadd.f32 0.0, %v1017
        %v1019 = vpop.f32.mrf.mxu0
        %v1020 = vadd.f32 0.0, %v1019
        %1021 = vmatprep.mubr.f32.mxu0 0.0
        %1022 = vmatmul.mubr.f32.gmra.mxu0 %v817
        %v1023 = vpop.f32.mrf.mxu0
        %v1024 = vadd.f32 0.0, %v1023
        %v1025 = vpop.f32.mrf.mxu0
        %v1026 = vadd.f32 0.0, %v1025
        %1027 = vmatprep.mubr.f32.mxu0 0.0
        %1028 = vmatmul.mubr.f32.gmra.mxu0 %v820
        %v1029 = vpop.f32.mrf.mxu0
        %v1030 = vadd.f32 0.0, %v1029
        %v1031 = vpop.f32.mrf.mxu0
        %v1032 = vadd.f32 0.0, %v1031
        %1033 = vmatprep.mubr.f32.mxu0 0.0
        %1034 = vmatmul.mubr.f32.gmra.mxu0 %v823
        %v1035 = vpop.f32.mrf.mxu0
        %v1036 = vadd.f32 0.0, %v1035
        %v1037 = vpop.f32.mrf.mxu0
        %v1038 = vadd.f32 0.0, %v1037
        %1039 = vmatprep.mubr.f32.mxu0 0.0
        %1040 = vmatmul.mubr.f32.gmra.mxu0 %v826
        %v1041 = vpop.f32.mrf.mxu0
        %v1042 = vadd.f32 0.0, %v1041
        %v1043 = vpop.f32.mrf.mxu0
        %v1044 = vadd.f32 0.0, %v1043
        %1045 = vmatprep.mubr.f32.mxu0 0.0
        %1046 = vmatmul.mubr.f32.gmra.mxu0 %v829
        %v1047 = vpop.f32.mrf.mxu0
        %v1048 = vadd.f32 0.0, %v1047
        %v1049 = vpop.f32.mrf.mxu0
        %v1050 = vadd.f32 0.0, %v1049
        %1051 = vmatprep.mubr.f32.mxu0 0.0
        %1052 = vmatmul.mubr.f32.gmra.mxu0 %v832
        %v1053 = vpop.f32.mrf.mxu0
        %v1054 = vadd.f32 0.0, %v1053
        %v1055 = vpop.f32.mrf.mxu0
        %v1056 = vadd.f32 0.0, %v1055
        %1057 = vmatprep.mubr.f32.mxu0 0.0
        %1058 = vmatmul.mubr.f32.gmra.mxu0 %v835
        %v1059 = vpop.f32.mrf.mxu0
        %v1060 = vadd.f32 0.0, %v1059
        %v1061 = vpop.f32.mrf.mxu0
        %v1062 = vadd.f32 0.0, %v1061
        %1063 = vmatprep.mubr.f32.mxu0 0.0
        %1064 = vmatmul.mubr.f32.gmra.mxu0 %v838
        %v1065 = vpop.f32.mrf.mxu0
        %v1066 = vadd.f32 0.0, %v1065
        %v1067 = vpop.f32.mrf.mxu0
        %v1068 = vadd.f32 0.0, %v1067
        %1069 = vmatprep.mubr.f32.mxu0 0.0
        %1070 = vmatmul.mubr.f32.gmra.mxu0 %v841
        %v1071 = vpop.f32.mrf.mxu0
        %v1072 = vadd.f32 0.0, %v1071
        %v1073 = vpop.f32.mrf.mxu0
        %v1074 = vadd.f32 0.0, %v1073
        %1075 = vdwg.mxu0
        %v1077 = vsel %vm758, %v652, 0
        %v1080 = vsel %vm758, %v653, 0
        %v1083 = vsel %vm758, %v654, 0
        %v1086 = vsel %vm758, %v655, 0
        %v1089 = vsel %vm758, %v656, 0
        %v1092 = vsel %vm758, %v657, 0
        %v1095 = vsel %vm758, %v658, 0
        %v1098 = vsel %vm758, %v659, 0
        %v1101 = vsel %vm758, %v660, 0
        %v1104 = vsel %vm758, %v661, 0
        %v1107 = vsel %vm758, %v662, 0
        %v1110 = vsel %vm758, %v663, 0
        %v1113 = vsel %vm758, %v664, 0
        %v1116 = vsel %vm758, %v665, 0
        %v1119 = vsel %vm758, %v666, 0
        %v1122 = vsel %vm758, %v667, 0
        %v1125 = vsel %vm758, %v668, 0
        %v1128 = vsel %vm758, %v669, 0
        %v1131 = vsel %vm758, %v670, 0
        %v1134 = vsel %vm758, %v671, 0
        %v1137 = vsel %vm758, %v672, 0
        %v1140 = vsel %vm758, %v673, 0
        %v1143 = vsel %vm758, %v674, 0
        %v1146 = vsel %vm758, %v675, 0
        %v1149 = vsel %vm758, %v676, 0
        %v1152 = vsel %vm758, %v677, 0
        %v1155 = vsel %vm758, %v678, 0
        %v1158 = vsel %vm758, %v679, 0
        %1160 = vmatprep.subr.mxu0 0.0
        %1161 = vmatpush1.msra.mxu0 0.0
        %1162 = vmatprep.subr.mxu0 0.0
        %1163 = vmatpush1.msra.mxu0 0.0
        %1164 = vmatprep.subr.mxu0 0.0
        %1165 = vmatpush1.msra.mxu0 0.0
        %1166 = vmatprep.subr.mxu0 0.0
        %1167 = vmatpush1.msra.mxu0 0.0
        %1168 = vmatprep.subr.mxu0 %v703
        %1169 = vmatpush1.msra.mxu0 %v702
        %1170 = vmatprep.subr.mxu0 %v701
        %1171 = vmatpush1.msra.mxu0 %v700
        %1172 = vmatprep.subr.mxu0 %v699
        %1173 = vmatpush1.msra.mxu0 %v698
        %1174 = vmatprep.subr.mxu0 %v697
        %1175 = vmatpush1.msra.mxu0 %v696
        %1176 = vmatprep.subr.mxu0 %v695
        %1177 = vmatpush1.msra.mxu0 %v694
        %1178 = vmatprep.subr.mxu0 %v693
        %1179 = vmatpush1.msra.mxu0 %v692
        %1180 = vmatprep.subr.mxu0 %v691
        %1181 = vmatpush1.msra.mxu0 %v690
        %1182 = vmatprep.subr.mxu0 %v689
        %1183 = vmatpush1.msra.mxu0 %v688
        %1184 = vmatprep.subr.mxu0 %v687
        %1185 = vmatpush1.msra.mxu0 %v686
        %1186 = vmatprep.subr.mxu0 %v685
        %1187 = vmatpush1.msra.mxu0 %v684
        %1188 = vmatprep.subr.mxu0 %v683
        %1189 = vmatpush1.msra.mxu0 %v682
        %1190 = vmatprep.subr.mxu0 %v681
        %1191 = vmatpush1.msra.mxu0 %v680
        %1192 = vmatprep.subr.mxu0 0.0
        %1193 = vmatpush2.msra.mxu0 0.0
        %1194 = vmatprep.subr.mxu0 0.0
        %1195 = vmatpush2.msra.mxu0 0.0
        %1196 = vmatprep.subr.mxu0 0.0
        %1197 = vmatpush2.msra.mxu0 0.0
        %1198 = vmatprep.subr.mxu0 0.0
        %1199 = vmatpush2.msra.mxu0 0.0
        %1200 = vmatprep.subr.mxu0 0.0
        %1201 = vmatpush2.msra.mxu0 0.0
        %1202 = vmatprep.subr.mxu0 0.0
        %1203 = vmatpush2.msra.mxu0 0.0
        %1204 = vmatprep.subr.mxu0 0.0
        %1205 = vmatpush2.msra.mxu0 0.0
        %1206 = vmatprep.subr.mxu0 0.0
        %1207 = vmatpush2.msra.mxu0 0.0
        %1208 = vmatprep.subr.mxu0 0.0
        %1209 = vmatpush2.msra.mxu0 0.0
        %1210 = vmatprep.subr.mxu0 0.0
        %1211 = vmatpush2.msra.mxu0 0.0
        %1212 = vmatprep.subr.mxu0 0.0
        %1213 = vmatpush2.msra.mxu0 0.0
        %1214 = vmatprep.subr.mxu0 0.0
        %1215 = vmatpush2.msra.mxu0 0.0
        %1216 = vmatprep.subr.mxu0 0.0
        %1217 = vmatpush2.msra.mxu0 0.0
        %1218 = vmatprep.subr.mxu0 0.0
        %1219 = vmatpush2.msra.mxu0 0.0
        %1220 = vmatprep.subr.mxu0 0.0
        %1221 = vmatpush2.msra.mxu0 0.0
        %1222 = vmatprep.subr.mxu0 0.0
        %1223 = vmatpush2.msra.mxu0 0.0
        %1224 = vmatprep.mubr.f32.mxu0 0.0
        %1225 = vmatmul.mubr.f32.gmra.mxu0 %v1077
        %v1226 = vpop.f32.mrf.mxu0
        %v1227 = vadd.f32 %v910, %v1226
        %v1228 = vpop.f32.mrf.mxu0
        %v1229 = vadd.f32 %v912, %v1228
        %1230 = vmatprep.mubr.f32.mxu0 0.0
        %1231 = vmatmul.mubr.f32.gmra.mxu0 %v1080
        %v1232 = vpop.f32.mrf.mxu0
        %v1233 = vadd.f32 %v916, %v1232
        %v1234 = vpop.f32.mrf.mxu0
        %v1235 = vadd.f32 %v918, %v1234
        %1236 = vmatprep.mubr.f32.mxu0 0.0
        %1237 = vmatmul.mubr.f32.gmra.mxu0 %v1083
        %v1238 = vpop.f32.mrf.mxu0
        %v1239 = vadd.f32 %v922, %v1238
        %v1240 = vpop.f32.mrf.mxu0
        %v1241 = vadd.f32 %v924, %v1240
        %1242 = vmatprep.mubr.f32.mxu0 0.0
        %1243 = vmatmul.mubr.f32.gmra.mxu0 %v1086
        %v1244 = vpop.f32.mrf.mxu0
        %v1245 = vadd.f32 %v928, %v1244
        %v1246 = vpop.f32.mrf.mxu0
        %v1247 = vadd.f32 %v930, %v1246
        %1248 = vmatprep.mubr.f32.mxu0 0.0
        %1249 = vmatmul.mubr.f32.gmra.mxu0 %v1089
        %v1250 = vpop.f32.mrf.mxu0
        %v1251 = vadd.f32 %v934, %v1250
        %v1252 = vpop.f32.mrf.mxu0
        %v1253 = vadd.f32 %v936, %v1252
        %1254 = vmatprep.mubr.f32.mxu0 0.0
        %1255 = vmatmul.mubr.f32.gmra.mxu0 %v1092
        %v1256 = vpop.f32.mrf.mxu0
        %v1257 = vadd.f32 %v940, %v1256
        %v1258 = vpop.f32.mrf.mxu0
        %v1259 = vadd.f32 %v942, %v1258
        %1260 = vmatprep.mubr.f32.mxu0 0.0
        %1261 = vmatmul.mubr.f32.gmra.mxu0 %v1095
        %v1262 = vpop.f32.mrf.mxu0
        %v1263 = vadd.f32 %v946, %v1262
        %v1264 = vpop.f32.mrf.mxu0
        %v1265 = vadd.f32 %v948, %v1264
        %1266 = vmatprep.mubr.f32.mxu0 0.0
        %1267 = vmatmul.mubr.f32.gmra.mxu0 %v1098
        %v1268 = vpop.f32.mrf.mxu0
        %v1269 = vadd.f32 %v952, %v1268
        %v1270 = vpop.f32.mrf.mxu0
        %v1271 = vadd.f32 %v954, %v1270
        %1272 = vmatprep.mubr.f32.mxu0 0.0
        %1273 = vmatmul.mubr.f32.gmra.mxu0 %v1101
        %v1274 = vpop.f32.mrf.mxu0
        %v1275 = vadd.f32 %v958, %v1274
        %v1276 = vpop.f32.mrf.mxu0
        %v1277 = vadd.f32 %v960, %v1276
        %1278 = vmatprep.mubr.f32.mxu0 0.0
        %1279 = vmatmul.mubr.f32.gmra.mxu0 %v1104
        %v1280 = vpop.f32.mrf.mxu0
        %v1281 = vadd.f32 %v964, %v1280
        %v1282 = vpop.f32.mrf.mxu0
        %v1283 = vadd.f32 %v966, %v1282
        %1284 = vmatprep.mubr.f32.mxu0 0.0
        %1285 = vmatmul.mubr.f32.gmra.mxu0 %v1107
        %v1286 = vpop.f32.mrf.mxu0
        %v1287 = vadd.f32 %v970, %v1286
        %v1288 = vpop.f32.mrf.mxu0
        %v1289 = vadd.f32 %v972, %v1288
        %1290 = vmatprep.mubr.f32.mxu0 0.0
        %1291 = vmatmul.mubr.f32.gmra.mxu0 %v1110
        %v1292 = vpop.f32.mrf.mxu0
        %v1293 = vadd.f32 %v976, %v1292
        %v1294 = vpop.f32.mrf.mxu0
        %v1295 = vadd.f32 %v978, %v1294
        %1296 = vmatprep.mubr.f32.mxu0 0.0
        %1297 = vmatmul.mubr.f32.gmra.mxu0 %v1113
        %v1298 = vpop.f32.mrf.mxu0
        %v1299 = vadd.f32 %v982, %v1298
        %v1300 = vpop.f32.mrf.mxu0
        %v1301 = vadd.f32 %v984, %v1300
        %1302 = vmatprep.mubr.f32.mxu0 0.0
        %1303 = vmatmul.mubr.f32.gmra.mxu0 %v1116
        %v1304 = vpop.f32.mrf.mxu0
        %v1305 = vadd.f32 %v988, %v1304
        %v1306 = vpop.f32.mrf.mxu0
        %v1307 = vadd.f32 %v990, %v1306
        %1308 = vmatprep.mubr.f32.mxu0 0.0
        %1309 = vmatmul.mubr.f32.gmra.mxu0 %v1119
        %v1310 = vpop.f32.mrf.mxu0
        %v1311 = vadd.f32 %v994, %v1310
        %v1312 = vpop.f32.mrf.mxu0
        %v1313 = vadd.f32 %v996, %v1312
        %1314 = vmatprep.mubr.f32.mxu0 0.0
        %1315 = vmatmul.mubr.f32.gmra.mxu0 %v1122
        %v1316 = vpop.f32.mrf.mxu0
        %v1317 = vadd.f32 %v1000, %v1316
        %v1318 = vpop.f32.mrf.mxu0
        %v1319 = vadd.f32 %v1002, %v1318
        %1320 = vmatprep.mubr.f32.mxu0 0.0
        %1321 = vmatmul.mubr.f32.gmra.mxu0 %v1125
        %v1322 = vpop.f32.mrf.mxu0
        %v1323 = vadd.f32 %v1006, %v1322
        %v1324 = vpop.f32.mrf.mxu0
        %v1325 = vadd.f32 %v1008, %v1324
        %1326 = vmatprep.mubr.f32.mxu0 0.0
        %1327 = vmatmul.mubr.f32.gmra.mxu0 %v1128
        %v1328 = vpop.f32.mrf.mxu0
        %v1329 = vadd.f32 %v1012, %v1328
        %v1330 = vpop.f32.mrf.mxu0
        %v1331 = vadd.f32 %v1014, %v1330
        %1332 = vmatprep.mubr.f32.mxu0 0.0
        %1333 = vmatmul.mubr.f32.gmra.mxu0 %v1131
        %v1334 = vpop.f32.mrf.mxu0
        %v1335 = vadd.f32 %v1018, %v1334
        %v1336 = vpop.f32.mrf.mxu0
        %v1337 = vadd.f32 %v1020, %v1336
        %1338 = vmatprep.mubr.f32.mxu0 0.0
        %1339 = vmatmul.mubr.f32.gmra.mxu0 %v1134
        %v1340 = vpop.f32.mrf.mxu0
        %v1341 = vadd.f32 %v1024, %v1340
        %v1342 = vpop.f32.mrf.mxu0
        %v1343 = vadd.f32 %v1026, %v1342
        %1344 = vmatprep.mubr.f32.mxu0 0.0
        %1345 = vmatmul.mubr.f32.gmra.mxu0 %v1137
        %v1346 = vpop.f32.mrf.mxu0
        %v1347 = vadd.f32 %v1030, %v1346
        %v1348 = vpop.f32.mrf.mxu0
        %v1349 = vadd.f32 %v1032, %v1348
        %1350 = vmatprep.mubr.f32.mxu0 0.0
        %1351 = vmatmul.mubr.f32.gmra.mxu0 %v1140
        %v1352 = vpop.f32.mrf.mxu0
        %v1353 = vadd.f32 %v1036, %v1352
        %v1354 = vpop.f32.mrf.mxu0
        %v1355 = vadd.f32 %v1038, %v1354
        %1356 = vmatprep.mubr.f32.mxu0 0.0
        %1357 = vmatmul.mubr.f32.gmra.mxu0 %v1143
        %v1358 = vpop.f32.mrf.mxu0
        %v1359 = vadd.f32 %v1042, %v1358
        %v1360 = vpop.f32.mrf.mxu0
        %v1361 = vadd.f32 %v1044, %v1360
        %1362 = vmatprep.mubr.f32.mxu0 0.0
        %1363 = vmatmul.mubr.f32.gmra.mxu0 %v1146
        %v1364 = vpop.f32.mrf.mxu0
        %v1365 = vadd.f32 %v1048, %v1364
        %v1366 = vpop.f32.mrf.mxu0
        %v1367 = vadd.f32 %v1050, %v1366
        %1368 = vmatprep.mubr.f32.mxu0 0.0
        %1369 = vmatmul.mubr.f32.gmra.mxu0 %v1149
        %v1370 = vpop.f32.mrf.mxu0
        %v1371 = vadd.f32 %v1054, %v1370
        %v1372 = vpop.f32.mrf.mxu0
        %v1373 = vadd.f32 %v1056, %v1372
        %1374 = vmatprep.mubr.f32.mxu0 0.0
        %1375 = vmatmul.mubr.f32.gmra.mxu0 %v1152
        %v1376 = vpop.f32.mrf.mxu0
        %v1377 = vadd.f32 %v1060, %v1376
        %v1378 = vpop.f32.mrf.mxu0
        %v1379 = vadd.f32 %v1062, %v1378
        %1380 = vmatprep.mubr.f32.mxu0 0.0
        %1381 = vmatmul.mubr.f32.gmra.mxu0 %v1155
        %v1382 = vpop.f32.mrf.mxu0
        %v1383 = vadd.f32 %v1066, %v1382
        %v1384 = vpop.f32.mrf.mxu0
        %v1385 = vadd.f32 %v1068, %v1384
        %1386 = vmatprep.mubr.f32.mxu0 0.0
        %1387 = vmatmul.mubr.f32.gmra.mxu0 %v1158
        %v1388 = vpop.f32.mrf.mxu0
        %v1389 = vadd.f32 %v1072, %v1388
        %v1390 = vpop.f32.mrf.mxu0
        %v1391 = vadd.f32 %v1074, %v1390
        %1392 = vdwg.mxu0
        %s1393 = scalar_lea.vmem %s607, 16 [#allocation2]
        %v1394 = vld [vmem:[%s1393] sm:$0xff]
        %v1395 = vld [vmem:[%s1393 + $0x8] sm:$0xff]
        %v1396 = vld [vmem:[%s1393 + $0x10] sm:$0xff]
        %v1397 = vld [vmem:[%s1393 + $0x18] sm:$0xff]
        %v1398 = vld [vmem:[%s1393 + $0x20] sm:$0xff]
        %v1399 = vld [vmem:[%s1393 + $0x28] sm:$0xff]
        %v1400 = vld [vmem:[%s1393 + $0x30] sm:$0xff]
        %v1401 = vld [vmem:[%s1393 + $0x38] sm:$0xff]
        %v1402 = vld [vmem:[%s1393 + $0x40] sm:$0xff]
        %v1403 = vld [vmem:[%s1393 + $0x48] sm:$0xff]
        %v1404 = vld [vmem:[%s1393 + $0x50] sm:$0xff]
        %v1405 = vld [vmem:[%s1393 + $0x58] sm:$0xff]
        %v1406 = vld [vmem:[%s1393 + $0x60] sm:$0xff]
        %v1407 = vld [vmem:[%s1393 + $0x68] sm:$0xff]
        %v1408 = vld [vmem:[%s1393 + $0x70] sm:$0xff]
        %v1409 = vld [vmem:[%s1393 + $0x78] sm:$0xff]
        %v1410 = vld [vmem:[%s1393 + $0x80] sm:$0xff]
        %v1411 = vld [vmem:[%s1393 + $0x88] sm:$0xff]
        %v1412 = vld [vmem:[%s1393 + $0x90] sm:$0xff]
        %v1413 = vld [vmem:[%s1393 + $0x98] sm:$0xff]
        %v1414 = vld [vmem:[%s1393 + $0xa0] sm:$0xff]
        %v1415 = vld [vmem:[%s1393 + $0xa8] sm:$0xff]
        %v1416 = vld [vmem:[%s1393 + $0xb0] sm:$0xff]
        %v1417 = vld [vmem:[%s1393 + $0xb8] sm:$0xff]
        %v1418 = vld [vmem:[%s1393 + $0xc0] sm:$0xff]
        %v1419 = vld [vmem:[%s1393 + $0xc8] sm:$0xff]
        %v1420 = vld [vmem:[%s1393 + $0xd0] sm:$0xff]
        %v1421 = vld [vmem:[%s1393 + $0xd8] sm:$0xff]
        %s1422 = scalar_lea.vmem %s1, 384
        %v1423 = vld [vmem:[%s1422] sm:$0xff]
        %v1424 = vld [vmem:[%s1422 + $0x8] sm:$0xff]
        %v1425 = vld [vmem:[%s1422 + $0x10] sm:$0xff]
        %v1426 = vld [vmem:[%s1422 + $0x18] sm:$0xff]
        %v1427 = vld [vmem:[%s1422 + $0x20] sm:$0xff]
        %v1428 = vld [vmem:[%s1422 + $0x28] sm:$0xff]
        %v1429 = vld [vmem:[%s1422 + $0x30] sm:$0xff]
        %v1430 = vld [vmem:[%s1422 + $0x38] sm:$0xff]
        %v1431 = vld [vmem:[%s1422 + $0x40] sm:$0xff]
        %v1432 = vld [vmem:[%s1422 + $0x48] sm:$0xff]
        %v1433 = vld [vmem:[%s1422 + $0x50] sm:$0xff]
        %v1434 = vld [vmem:[%s1422 + $0x58] sm:$0xff]
        %v1435 = vld [vmem:[%s1422 + $0x60] sm:$0xff]
        %v1436 = vld [vmem:[%s1422 + $0x68] sm:$0xff]
        %v1437 = vld [vmem:[%s1422 + $0x70] sm:$0xff]
        %v1438 = vld [vmem:[%s1422 + $0x78] sm:$0xff]
        %v1439 = vld [vmem:[%s1422 + $0x80] sm:$0xff]
        %v1440 = vld [vmem:[%s1422 + $0x88] sm:$0xff]
        %v1441 = vld [vmem:[%s1422 + $0x90] sm:$0xff]
        %v1442 = vld [vmem:[%s1422 + $0x98] sm:$0xff]
        %v1443 = vld [vmem:[%s1422 + $0xa0] sm:$0xff]
        %v1444 = vld [vmem:[%s1422 + $0xa8] sm:$0xff]
        %v1445 = vld [vmem:[%s1422 + $0xb0] sm:$0xff]
        %v1446 = vld [vmem:[%s1422 + $0xb8] sm:$0xff]
        %v1448 = vsel %vm758, %v1394, 0
        %v1451 = vsel %vm758, %v1395, 0
        %v1454 = vsel %vm758, %v1396, 0
        %v1457 = vsel %vm758, %v1397, 0
        %v1460 = vsel %vm758, %v1398, 0
        %v1463 = vsel %vm758, %v1399, 0
        %v1466 = vsel %vm758, %v1400, 0
        %v1469 = vsel %vm758, %v1401, 0
        %v1472 = vsel %vm758, %v1402, 0
        %v1475 = vsel %vm758, %v1403, 0
        %v1478 = vsel %vm758, %v1404, 0
        %v1481 = vsel %vm758, %v1405, 0
        %v1484 = vsel %vm758, %v1406, 0
        %v1487 = vsel %vm758, %v1407, 0
        %v1490 = vsel %vm758, %v1408, 0
        %v1493 = vsel %vm758, %v1409, 0
        %v1496 = vsel %vm758, %v1410, 0
        %v1499 = vsel %vm758, %v1411, 0
        %v1502 = vsel %vm758, %v1412, 0
        %v1505 = vsel %vm758, %v1413, 0
        %v1508 = vsel %vm758, %v1414, 0
        %v1511 = vsel %vm758, %v1415, 0
        %v1514 = vsel %vm758, %v1416, 0
        %v1517 = vsel %vm758, %v1417, 0
        %v1520 = vsel %vm758, %v1418, 0
        %v1523 = vsel %vm758, %v1419, 0
        %v1526 = vsel %vm758, %v1420, 0
        %v1529 = vsel %vm758, %v1421, 0
        %1531 = vmatprep.subr.mxu0 0.0
        %1532 = vmatpush1.msra.mxu0 0.0
        %1533 = vmatprep.subr.mxu0 0.0
        %1534 = vmatpush1.msra.mxu0 0.0
        %1535 = vmatprep.subr.mxu0 0.0
        %1536 = vmatpush1.msra.mxu0 0.0
        %1537 = vmatprep.subr.mxu0 0.0
        %1538 = vmatpush1.msra.mxu0 0.0
        %1539 = vmatprep.subr.mxu0 %v1446
        %1540 = vmatpush1.msra.mxu0 %v1445
        %1541 = vmatprep.subr.mxu0 %v1444
        %1542 = vmatpush1.msra.mxu0 %v1443
        %1543 = vmatprep.subr.mxu0 %v1442
        %1544 = vmatpush1.msra.mxu0 %v1441
        %1545 = vmatprep.subr.mxu0 %v1440
        %1546 = vmatpush1.msra.mxu0 %v1439
        %1547 = vmatprep.subr.mxu0 %v1438
        %1548 = vmatpush1.msra.mxu0 %v1437
        %1549 = vmatprep.subr.mxu0 %v1436
        %1550 = vmatpush1.msra.mxu0 %v1435
        %1551 = vmatprep.subr.mxu0 %v1434
        %1552 = vmatpush1.msra.mxu0 %v1433
        %1553 = vmatprep.subr.mxu0 %v1432
        %1554 = vmatpush1.msra.mxu0 %v1431
        %1555 = vmatprep.subr.mxu0 %v1430
        %1556 = vmatpush1.msra.mxu0 %v1429
        %1557 = vmatprep.subr.mxu0 %v1428
        %1558 = vmatpush1.msra.mxu0 %v1427
        %1559 = vmatprep.subr.mxu0 %v1426
        %1560 = vmatpush1.msra.mxu0 %v1425
        %1561 = vmatprep.subr.mxu0 %v1424
        %1562 = vmatpush1.msra.mxu0 %v1423
        %1563 = vmatprep.subr.mxu0 0.0
        %1564 = vmatpush2.msra.mxu0 0.0
        %1565 = vmatprep.subr.mxu0 0.0
        %1566 = vmatpush2.msra.mxu0 0.0
        %1567 = vmatprep.subr.mxu0 0.0
        %1568 = vmatpush2.msra.mxu0 0.0
        %1569 = vmatprep.subr.mxu0 0.0
        %1570 = vmatpush2.msra.mxu0 0.0
        %1571 = vmatprep.subr.mxu0 0.0
        %1572 = vmatpush2.msra.mxu0 0.0
        %1573 = vmatprep.subr.mxu0 0.0
        %1574 = vmatpush2.msra.mxu0 0.0
        %1575 = vmatprep.subr.mxu0 0.0
        %1576 = vmatpush2.msra.mxu0 0.0
        %1577 = vmatprep.subr.mxu0 0.0
        %1578 = vmatpush2.msra.mxu0 0.0
        %1579 = vmatprep.subr.mxu0 0.0
        %1580 = vmatpush2.msra.mxu0 0.0
        %1581 = vmatprep.subr.mxu0 0.0
        %1582 = vmatpush2.msra.mxu0 0.0
        %1583 = vmatprep.subr.mxu0 0.0
        %1584 = vmatpush2.msra.mxu0 0.0
        %1585 = vmatprep.subr.mxu0 0.0
        %1586 = vmatpush2.msra.mxu0 0.0
        %1587 = vmatprep.subr.mxu0 0.0
        %1588 = vmatpush2.msra.mxu0 0.0
        %1589 = vmatprep.subr.mxu0 0.0
        %1590 = vmatpush2.msra.mxu0 0.0
        %1591 = vmatprep.subr.mxu0 0.0
        %1592 = vmatpush2.msra.mxu0 0.0
        %1593 = vmatprep.subr.mxu0 0.0
        %1594 = vmatpush2.msra.mxu0 0.0
        %1595 = vmatprep.mubr.f32.mxu0 0.0
        %1596 = vmatmul.mubr.f32.gmra.mxu0 %v1448
        %v1597 = vpop.f32.mrf.mxu0
        %v1598 = vadd.f32 0.0, %v1597
        %v1599 = vpop.f32.mrf.mxu0
        %v1600 = vadd.f32 0.0, %v1599
        %1601 = vmatprep.mubr.f32.mxu0 0.0
        %1602 = vmatmul.mubr.f32.gmra.mxu0 %v1451
        %v1603 = vpop.f32.mrf.mxu0
        %v1604 = vadd.f32 0.0, %v1603
        %v1605 = vpop.f32.mrf.mxu0
        %v1606 = vadd.f32 0.0, %v1605
        %1607 = vmatprep.mubr.f32.mxu0 0.0
        %1608 = vmatmul.mubr.f32.gmra.mxu0 %v1454
        %v1609 = vpop.f32.mrf.mxu0
        %v1610 = vadd.f32 0.0, %v1609
        %v1611 = vpop.f32.mrf.mxu0
        %v1612 = vadd.f32 0.0, %v1611
        %1613 = vmatprep.mubr.f32.mxu0 0.0
        %1614 = vmatmul.mubr.f32.gmra.mxu0 %v1457
        %v1615 = vpop.f32.mrf.mxu0
        %v1616 = vadd.f32 0.0, %v1615
        %v1617 = vpop.f32.mrf.mxu0
        %v1618 = vadd.f32 0.0, %v1617
        %1619 = vmatprep.mubr.f32.mxu0 0.0
        %1620 = vmatmul.mubr.f32.gmra.mxu0 %v1460
        %v1621 = vpop.f32.mrf.mxu0
        %v1622 = vadd.f32 0.0, %v1621
        %v1623 = vpop.f32.mrf.mxu0
        %v1624 = vadd.f32 0.0, %v1623
        %1625 = vmatprep.mubr.f32.mxu0 0.0
        %1626 = vmatmul.mubr.f32.gmra.mxu0 %v1463
        %v1627 = vpop.f32.mrf.mxu0
        %v1628 = vadd.f32 0.0, %v1627
        %v1629 = vpop.f32.mrf.mxu0
        %v1630 = vadd.f32 0.0, %v1629
        %1631 = vmatprep.mubr.f32.mxu0 0.0
        %1632 = vmatmul.mubr.f32.gmra.mxu0 %v1466
        %v1633 = vpop.f32.mrf.mxu0
        %v1634 = vadd.f32 0.0, %v1633
        %v1635 = vpop.f32.mrf.mxu0
        %v1636 = vadd.f32 0.0, %v1635
        %1637 = vmatprep.mubr.f32.mxu0 0.0
        %1638 = vmatmul.mubr.f32.gmra.mxu0 %v1469
        %v1639 = vpop.f32.mrf.mxu0
        %v1640 = vadd.f32 0.0, %v1639
        %v1641 = vpop.f32.mrf.mxu0
        %v1642 = vadd.f32 0.0, %v1641
        %1643 = vmatprep.mubr.f32.mxu0 0.0
        %1644 = vmatmul.mubr.f32.gmra.mxu0 %v1472
        %v1645 = vpop.f32.mrf.mxu0
        %v1646 = vadd.f32 0.0, %v1645
        %v1647 = vpop.f32.mrf.mxu0
        %v1648 = vadd.f32 0.0, %v1647
        %1649 = vmatprep.mubr.f32.mxu0 0.0
        %1650 = vmatmul.mubr.f32.gmra.mxu0 %v1475
        %v1651 = vpop.f32.mrf.mxu0
        %v1652 = vadd.f32 0.0, %v1651
        %v1653 = vpop.f32.mrf.mxu0
        %v1654 = vadd.f32 0.0, %v1653
        %1655 = vmatprep.mubr.f32.mxu0 0.0
        %1656 = vmatmul.mubr.f32.gmra.mxu0 %v1478
        %v1657 = vpop.f32.mrf.mxu0
        %v1658 = vadd.f32 0.0, %v1657
        %v1659 = vpop.f32.mrf.mxu0
        %v1660 = vadd.f32 0.0, %v1659
        %1661 = vmatprep.mubr.f32.mxu0 0.0
        %1662 = vmatmul.mubr.f32.gmra.mxu0 %v1481
        %v1663 = vpop.f32.mrf.mxu0
        %v1664 = vadd.f32 0.0, %v1663
        %v1665 = vpop.f32.mrf.mxu0
        %v1666 = vadd.f32 0.0, %v1665
        %1667 = vmatprep.mubr.f32.mxu0 0.0
        %1668 = vmatmul.mubr.f32.gmra.mxu0 %v1484
        %v1669 = vpop.f32.mrf.mxu0
        %v1670 = vadd.f32 0.0, %v1669
        %v1671 = vpop.f32.mrf.mxu0
        %v1672 = vadd.f32 0.0, %v1671
        %1673 = vmatprep.mubr.f32.mxu0 0.0
        %1674 = vmatmul.mubr.f32.gmra.mxu0 %v1487
        %v1675 = vpop.f32.mrf.mxu0
        %v1676 = vadd.f32 0.0, %v1675
        %v1677 = vpop.f32.mrf.mxu0
        %v1678 = vadd.f32 0.0, %v1677
        %1679 = vmatprep.mubr.f32.mxu0 0.0
        %1680 = vmatmul.mubr.f32.gmra.mxu0 %v1490
        %v1681 = vpop.f32.mrf.mxu0
        %v1682 = vadd.f32 0.0, %v1681
        %v1683 = vpop.f32.mrf.mxu0
        %v1684 = vadd.f32 0.0, %v1683
        %1685 = vmatprep.mubr.f32.mxu0 0.0
        %1686 = vmatmul.mubr.f32.gmra.mxu0 %v1493
        %v1687 = vpop.f32.mrf.mxu0
        %v1688 = vadd.f32 0.0, %v1687
        %v1689 = vpop.f32.mrf.mxu0
        %v1690 = vadd.f32 0.0, %v1689
        %1691 = vmatprep.mubr.f32.mxu0 0.0
        %1692 = vmatmul.mubr.f32.gmra.mxu0 %v1496
        %v1693 = vpop.f32.mrf.mxu0
        %v1694 = vadd.f32 0.0, %v1693
        %v1695 = vpop.f32.mrf.mxu0
        %v1696 = vadd.f32 0.0, %v1695
        %1697 = vmatprep.mubr.f32.mxu0 0.0
        %1698 = vmatmul.mubr.f32.gmra.mxu0 %v1499
        %v1699 = vpop.f32.mrf.mxu0
        %v1700 = vadd.f32 0.0, %v1699
        %v1701 = vpop.f32.mrf.mxu0
        %v1702 = vadd.f32 0.0, %v1701
        %1703 = vmatprep.mubr.f32.mxu0 0.0
        %1704 = vmatmul.mubr.f32.gmra.mxu0 %v1502
        %v1705 = vpop.f32.mrf.mxu0
        %v1706 = vadd.f32 0.0, %v1705
        %v1707 = vpop.f32.mrf.mxu0
        %v1708 = vadd.f32 0.0, %v1707
        %1709 = vmatprep.mubr.f32.mxu0 0.0
        %1710 = vmatmul.mubr.f32.gmra.mxu0 %v1505
        %v1711 = vpop.f32.mrf.mxu0
        %v1712 = vadd.f32 0.0, %v1711
        %v1713 = vpop.f32.mrf.mxu0
        %v1714 = vadd.f32 0.0, %v1713
        %1715 = vmatprep.mubr.f32.mxu0 0.0
        %1716 = vmatmul.mubr.f32.gmra.mxu0 %v1508
        %v1717 = vpop.f32.mrf.mxu0
        %v1718 = vadd.f32 0.0, %v1717
        %v1719 = vpop.f32.mrf.mxu0
        %v1720 = vadd.f32 0.0, %v1719
        %1721 = vmatprep.mubr.f32.mxu0 0.0
        %1722 = vmatmul.mubr.f32.gmra.mxu0 %v1511
        %v1723 = vpop.f32.mrf.mxu0
        %v1724 = vadd.f32 0.0, %v1723
        %v1725 = vpop.f32.mrf.mxu0
        %v1726 = vadd.f32 0.0, %v1725
        %1727 = vmatprep.mubr.f32.mxu0 0.0
        %1728 = vmatmul.mubr.f32.gmra.mxu0 %v1514
        %v1729 = vpop.f32.mrf.mxu0
        %v1730 = vadd.f32 0.0, %v1729
        %v1731 = vpop.f32.mrf.mxu0
        %v1732 = vadd.f32 0.0, %v1731
        %1733 = vmatprep.mubr.f32.mxu0 0.0
        %1734 = vmatmul.mubr.f32.gmra.mxu0 %v1517
        %v1735 = vpop.f32.mrf.mxu0
        %v1736 = vadd.f32 0.0, %v1735
        %v1737 = vpop.f32.mrf.mxu0
        %v1738 = vadd.f32 0.0, %v1737
        %1739 = vmatprep.mubr.f32.mxu0 0.0
        %1740 = vmatmul.mubr.f32.gmra.mxu0 %v1520
        %v1741 = vpop.f32.mrf.mxu0
        %v1742 = vadd.f32 0.0, %v1741
        %v1743 = vpop.f32.mrf.mxu0
        %v1744 = vadd.f32 0.0, %v1743
        %1745 = vmatprep.mubr.f32.mxu0 0.0
        %1746 = vmatmul.mubr.f32.gmra.mxu0 %v1523
        %v1747 = vpop.f32.mrf.mxu0
        %v1748 = vadd.f32 0.0, %v1747
        %v1749 = vpop.f32.mrf.mxu0
        %v1750 = vadd.f32 0.0, %v1749
        %1751 = vmatprep.mubr.f32.mxu0 0.0
        %1752 = vmatmul.mubr.f32.gmra.mxu0 %v1526
        %v1753 = vpop.f32.mrf.mxu0
        %v1754 = vadd.f32 0.0, %v1753
        %v1755 = vpop.f32.mrf.mxu0
        %v1756 = vadd.f32 0.0, %v1755
        %1757 = vmatprep.mubr.f32.mxu0 0.0
        %1758 = vmatmul.mubr.f32.gmra.mxu0 %v1529
        %v1759 = vpop.f32.mrf.mxu0
        %v1760 = vadd.f32 0.0, %v1759
        %v1761 = vpop.f32.mrf.mxu0
        %v1762 = vadd.f32 0.0, %v1761
        %1763 = vdwg.mxu0
        %v1764 = vadd.f32 %v1227, %v1598
        %v1765 = vadd.f32 %v1229, %v1600
        %v1766 = vadd.f32 %v1233, %v1604
        %v1767 = vadd.f32 %v1235, %v1606
        %v1768 = vadd.f32 %v1239, %v1610
        %v1769 = vadd.f32 %v1241, %v1612
        %v1770 = vadd.f32 %v1245, %v1616
        %v1771 = vadd.f32 %v1247, %v1618
        %v1772 = vadd.f32 %v1251, %v1622
        %v1773 = vadd.f32 %v1253, %v1624
        %v1774 = vadd.f32 %v1257, %v1628
        %v1775 = vadd.f32 %v1259, %v1630
        %v1776 = vadd.f32 %v1263, %v1634
        %v1777 = vadd.f32 %v1265, %v1636
        %v1778 = vadd.f32 %v1269, %v1640
        %v1779 = vadd.f32 %v1271, %v1642
        %v1780 = vadd.f32 %v1275, %v1646
        %v1781 = vadd.f32 %v1277, %v1648
        %v1782 = vadd.f32 %v1281, %v1652
        %v1783 = vadd.f32 %v1283, %v1654
        %v1784 = vadd.f32 %v1287, %v1658
        %v1785 = vadd.f32 %v1289, %v1660
        %v1786 = vadd.f32 %v1293, %v1664
        %v1787 = vadd.f32 %v1295, %v1666
        %v1788 = vadd.f32 %v1299, %v1670
        %v1789 = vadd.f32 %v1301, %v1672
        %v1790 = vadd.f32 %v1305, %v1676
        %v1791 = vadd.f32 %v1307, %v1678
        %v1792 = vadd.f32 %v1311, %v1682
        %v1793 = vadd.f32 %v1313, %v1684
        %v1794 = vadd.f32 %v1317, %v1688
        %v1795 = vadd.f32 %v1319, %v1690
        %v1796 = vadd.f32 %v1323, %v1694
        %v1797 = vadd.f32 %v1325, %v1696
        %v1798 = vadd.f32 %v1329, %v1700
        %v1799 = vadd.f32 %v1331, %v1702
        %v1800 = vadd.f32 %v1335, %v1706
        %v1801 = vadd.f32 %v1337, %v1708
        %v1802 = vadd.f32 %v1341, %v1712
        %v1803 = vadd.f32 %v1343, %v1714
        %v1804 = vadd.f32 %v1347, %v1718
        %v1805 = vadd.f32 %v1349, %v1720
        %v1806 = vadd.f32 %v1353, %v1724
        %v1807 = vadd.f32 %v1355, %v1726
        %v1808 = vadd.f32 %v1359, %v1730
        %v1809 = vadd.f32 %v1361, %v1732
        %v1810 = vadd.f32 %v1365, %v1736
        %v1811 = vadd.f32 %v1367, %v1738
        %v1812 = vadd.f32 %v1371, %v1742
        %v1813 = vadd.f32 %v1373, %v1744
        %v1814 = vadd.f32 %v1377, %v1748
        %v1815 = vadd.f32 %v1379, %v1750
        %v1816 = vadd.f32 %v1383, %v1754
        %v1817 = vadd.f32 %v1385, %v1756
        %v1818 = vadd.f32 %v1389, %v1760
        %v1819 = vadd.f32 %v1391, %v1762
        %s1820 = scalar_lea.vmem %s607, 24 [#allocation2]
        %v1821 = vld [vmem:[%s1820] sm:$0xff]
        %v1822 = vld [vmem:[%s1820 + $0x8] sm:$0xff]
        %v1823 = vld [vmem:[%s1820 + $0x10] sm:$0xff]
        %v1824 = vld [vmem:[%s1820 + $0x18] sm:$0xff]
        %v1825 = vld [vmem:[%s1820 + $0x20] sm:$0xff]
        %v1826 = vld [vmem:[%s1820 + $0x28] sm:$0xff]
        %v1827 = vld [vmem:[%s1820 + $0x30] sm:$0xff]
        %v1828 = vld [vmem:[%s1820 + $0x38] sm:$0xff]
        %v1829 = vld [vmem:[%s1820 + $0x40] sm:$0xff]
        %v1830 = vld [vmem:[%s1820 + $0x48] sm:$0xff]
        %v1831 = vld [vmem:[%s1820 + $0x50] sm:$0xff]
        %v1832 = vld [vmem:[%s1820 + $0x58] sm:$0xff]
        %v1833 = vld [vmem:[%s1820 + $0x60] sm:$0xff]
        %v1834 = vld [vmem:[%s1820 + $0x68] sm:$0xff]
        %v1835 = vld [vmem:[%s1820 + $0x70] sm:$0xff]
        %v1836 = vld [vmem:[%s1820 + $0x78] sm:$0xff]
        %v1837 = vld [vmem:[%s1820 + $0x80] sm:$0xff]
        %v1838 = vld [vmem:[%s1820 + $0x88] sm:$0xff]
        %v1839 = vld [vmem:[%s1820 + $0x90] sm:$0xff]
        %v1840 = vld [vmem:[%s1820 + $0x98] sm:$0xff]
        %v1841 = vld [vmem:[%s1820 + $0xa0] sm:$0xff]
        %v1842 = vld [vmem:[%s1820 + $0xa8] sm:$0xff]
        %v1843 = vld [vmem:[%s1820 + $0xb0] sm:$0xff]
        %v1844 = vld [vmem:[%s1820 + $0xb8] sm:$0xff]
        %v1845 = vld [vmem:[%s1820 + $0xc0] sm:$0xff]
        %v1846 = vld [vmem:[%s1820 + $0xc8] sm:$0xff]
        %v1847 = vld [vmem:[%s1820 + $0xd0] sm:$0xff]
        %v1848 = vld [vmem:[%s1820 + $0xd8] sm:$0xff]
        %s1849 = scalar_lea.vmem %s1, 576
        %v1850 = vld [vmem:[%s1849] sm:$0xff]
        %v1851 = vld [vmem:[%s1849 + $0x8] sm:$0xff]
        %v1852 = vld [vmem:[%s1849 + $0x10] sm:$0xff]
        %v1853 = vld [vmem:[%s1849 + $0x18] sm:$0xff]
        %v1854 = vld [vmem:[%s1849 + $0x20] sm:$0xff]
        %v1855 = vld [vmem:[%s1849 + $0x28] sm:$0xff]
        %v1856 = vld [vmem:[%s1849 + $0x30] sm:$0xff]
        %v1857 = vld [vmem:[%s1849 + $0x38] sm:$0xff]
        %v1858 = vld [vmem:[%s1849 + $0x40] sm:$0xff]
        %v1859 = vld [vmem:[%s1849 + $0x48] sm:$0xff]
        %v1860 = vld [vmem:[%s1849 + $0x50] sm:$0xff]
        %v1861 = vld [vmem:[%s1849 + $0x58] sm:$0xff]
        %v1862 = vld [vmem:[%s1849 + $0x60] sm:$0xff]
        %v1863 = vld [vmem:[%s1849 + $0x68] sm:$0xff]
        %v1864 = vld [vmem:[%s1849 + $0x70] sm:$0xff]
        %v1865 = vld [vmem:[%s1849 + $0x78] sm:$0xff]
        %v1866 = vld [vmem:[%s1849 + $0x80] sm:$0xff]
        %v1867 = vld [vmem:[%s1849 + $0x88] sm:$0xff]
        %v1868 = vld [vmem:[%s1849 + $0x90] sm:$0xff]
        %v1869 = vld [vmem:[%s1849 + $0x98] sm:$0xff]
        %v1870 = vld [vmem:[%s1849 + $0xa0] sm:$0xff]
        %v1871 = vld [vmem:[%s1849 + $0xa8] sm:$0xff]
        %v1872 = vld [vmem:[%s1849 + $0xb0] sm:$0xff]
        %v1873 = vld [vmem:[%s1849 + $0xb8] sm:$0xff]
        %v1875 = vsel %vm758, %v1821, 0
        %v1878 = vsel %vm758, %v1822, 0
        %v1881 = vsel %vm758, %v1823, 0
        %v1884 = vsel %vm758, %v1824, 0
        %v1887 = vsel %vm758, %v1825, 0
        %v1890 = vsel %vm758, %v1826, 0
        %v1893 = vsel %vm758, %v1827, 0
        %v1896 = vsel %vm758, %v1828, 0
        %v1899 = vsel %vm758, %v1829, 0
        %v1902 = vsel %vm758, %v1830, 0
        %v1905 = vsel %vm758, %v1831, 0
        %v1908 = vsel %vm758, %v1832, 0
        %v1911 = vsel %vm758, %v1833, 0
        %v1914 = vsel %vm758, %v1834, 0
        %v1917 = vsel %vm758, %v1835, 0
        %v1920 = vsel %vm758, %v1836, 0
        %v1923 = vsel %vm758, %v1837, 0
        %v1926 = vsel %vm758, %v1838, 0
        %v1929 = vsel %vm758, %v1839, 0
        %v1932 = vsel %vm758, %v1840, 0
        %v1935 = vsel %vm758, %v1841, 0
        %v1938 = vsel %vm758, %v1842, 0
        %v1941 = vsel %vm758, %v1843, 0
        %v1944 = vsel %vm758, %v1844, 0
        %v1947 = vsel %vm758, %v1845, 0
        %v1950 = vsel %vm758, %v1846, 0
        %v1953 = vsel %vm758, %v1847, 0
        %v1956 = vsel %vm758, %v1848, 0
        %1958 = vmatprep.subr.mxu0 0.0
        %1959 = vmatpush1.msra.mxu0 0.0
        %1960 = vmatprep.subr.mxu0 0.0
        %1961 = vmatpush1.msra.mxu0 0.0
        %1962 = vmatprep.subr.mxu0 0.0
        %1963 = vmatpush1.msra.mxu0 0.0
        %1964 = vmatprep.subr.mxu0 0.0
        %1965 = vmatpush1.msra.mxu0 0.0
        %1966 = vmatprep.subr.mxu0 %v1873
        %1967 = vmatpush1.msra.mxu0 %v1872
        %1968 = vmatprep.subr.mxu0 %v1871
        %1969 = vmatpush1.msra.mxu0 %v1870
        %1970 = vmatprep.subr.mxu0 %v1869
        %1971 = vmatpush1.msra.mxu0 %v1868
        %1972 = vmatprep.subr.mxu0 %v1867
        %1973 = vmatpush1.msra.mxu0 %v1866
        %1974 = vmatprep.subr.mxu0 %v1865
        %1975 = vmatpush1.msra.mxu0 %v1864
        %1976 = vmatprep.subr.mxu0 %v1863
        %1977 = vmatpush1.msra.mxu0 %v1862
        %1978 = vmatprep.subr.mxu0 %v1861
        %1979 = vmatpush1.msra.mxu0 %v1860
        %1980 = vmatprep.subr.mxu0 %v1859
        %1981 = vmatpush1.msra.mxu0 %v1858
        %1982 = vmatprep.subr.mxu0 %v1857
        %1983 = vmatpush1.msra.mxu0 %v1856
        %1984 = vmatprep.subr.mxu0 %v1855
        %1985 = vmatpush1.msra.mxu0 %v1854
        %1986 = vmatprep.subr.mxu0 %v1853
        %1987 = vmatpush1.msra.mxu0 %v1852
        %1988 = vmatprep.subr.mxu0 %v1851
        %1989 = vmatpush1.msra.mxu0 %v1850
        %1990 = vmatprep.subr.mxu0 0.0
        %1991 = vmatpush2.msra.mxu0 0.0
        %1992 = vmatprep.subr.mxu0 0.0
        %1993 = vmatpush2.msra.mxu0 0.0
        %1994 = vmatprep.subr.mxu0 0.0
        %1995 = vmatpush2.msra.mxu0 0.0
        %1996 = vmatprep.subr.mxu0 0.0
        %1997 = vmatpush2.msra.mxu0 0.0
        %1998 = vmatprep.subr.mxu0 0.0
        %1999 = vmatpush2.msra.mxu0 0.0
        %2000 = vmatprep.subr.mxu0 0.0
        %2001 = vmatpush2.msra.mxu0 0.0
        %2002 = vmatprep.subr.mxu0 0.0
        %2003 = vmatpush2.msra.mxu0 0.0
        %2004 = vmatprep.subr.mxu0 0.0
        %2005 = vmatpush2.msra.mxu0 0.0
        %2006 = vmatprep.subr.mxu0 0.0
        %2007 = vmatpush2.msra.mxu0 0.0
        %2008 = vmatprep.subr.mxu0 0.0
        %2009 = vmatpush2.msra.mxu0 0.0
        %2010 = vmatprep.subr.mxu0 0.0
        %2011 = vmatpush2.msra.mxu0 0.0
        %2012 = vmatprep.subr.mxu0 0.0
        %2013 = vmatpush2.msra.mxu0 0.0
        %2014 = vmatprep.subr.mxu0 0.0
        %2015 = vmatpush2.msra.mxu0 0.0
        %2016 = vmatprep.subr.mxu0 0.0
        %2017 = vmatpush2.msra.mxu0 0.0
        %2018 = vmatprep.subr.mxu0 0.0
        %2019 = vmatpush2.msra.mxu0 0.0
        %2020 = vmatprep.subr.mxu0 0.0
        %2021 = vmatpush2.msra.mxu0 0.0
        %2022 = vmatprep.mubr.f32.mxu0 0.0
        %2023 = vmatmul.mubr.f32.gmra.mxu0 %v1875
        %v2024 = vpop.f32.mrf.mxu0
        %v2025 = vadd.f32 0.0, %v2024
        %v2026 = vpop.f32.mrf.mxu0
        %v2027 = vadd.f32 0.0, %v2026
        %2028 = vmatprep.mubr.f32.mxu0 0.0
        %2029 = vmatmul.mubr.f32.gmra.mxu0 %v1878
        %v2030 = vpop.f32.mrf.mxu0
        %v2031 = vadd.f32 0.0, %v2030
        %v2032 = vpop.f32.mrf.mxu0
        %v2033 = vadd.f32 0.0, %v2032
        %2034 = vmatprep.mubr.f32.mxu0 0.0
        %2035 = vmatmul.mubr.f32.gmra.mxu0 %v1881
        %v2036 = vpop.f32.mrf.mxu0
        %v2037 = vadd.f32 0.0, %v2036
        %v2038 = vpop.f32.mrf.mxu0
        %v2039 = vadd.f32 0.0, %v2038
        %2040 = vmatprep.mubr.f32.mxu0 0.0
        %2041 = vmatmul.mubr.f32.gmra.mxu0 %v1884
        %v2042 = vpop.f32.mrf.mxu0
        %v2043 = vadd.f32 0.0, %v2042
        %v2044 = vpop.f32.mrf.mxu0
        %v2045 = vadd.f32 0.0, %v2044
        %2046 = vmatprep.mubr.f32.mxu0 0.0
        %2047 = vmatmul.mubr.f32.gmra.mxu0 %v1887
        %v2048 = vpop.f32.mrf.mxu0
        %v2049 = vadd.f32 0.0, %v2048
        %v2050 = vpop.f32.mrf.mxu0
        %v2051 = vadd.f32 0.0, %v2050
        %2052 = vmatprep.mubr.f32.mxu0 0.0
        %2053 = vmatmul.mubr.f32.gmra.mxu0 %v1890
        %v2054 = vpop.f32.mrf.mxu0
        %v2055 = vadd.f32 0.0, %v2054
        %v2056 = vpop.f32.mrf.mxu0
        %v2057 = vadd.f32 0.0, %v2056
        %2058 = vmatprep.mubr.f32.mxu0 0.0
        %2059 = vmatmul.mubr.f32.gmra.mxu0 %v1893
        %v2060 = vpop.f32.mrf.mxu0
        %v2061 = vadd.f32 0.0, %v2060
        %v2062 = vpop.f32.mrf.mxu0
        %v2063 = vadd.f32 0.0, %v2062
        %2064 = vmatprep.mubr.f32.mxu0 0.0
        %2065 = vmatmul.mubr.f32.gmra.mxu0 %v1896
        %v2066 = vpop.f32.mrf.mxu0
        %v2067 = vadd.f32 0.0, %v2066
        %v2068 = vpop.f32.mrf.mxu0
        %v2069 = vadd.f32 0.0, %v2068
        %2070 = vmatprep.mubr.f32.mxu0 0.0
        %2071 = vmatmul.mubr.f32.gmra.mxu0 %v1899
        %v2072 = vpop.f32.mrf.mxu0
        %v2073 = vadd.f32 0.0, %v2072
        %v2074 = vpop.f32.mrf.mxu0
        %v2075 = vadd.f32 0.0, %v2074
        %2076 = vmatprep.mubr.f32.mxu0 0.0
        %2077 = vmatmul.mubr.f32.gmra.mxu0 %v1902
        %v2078 = vpop.f32.mrf.mxu0
        %v2079 = vadd.f32 0.0, %v2078
        %v2080 = vpop.f32.mrf.mxu0
        %v2081 = vadd.f32 0.0, %v2080
        %2082 = vmatprep.mubr.f32.mxu0 0.0
        %2083 = vmatmul.mubr.f32.gmra.mxu0 %v1905
        %v2084 = vpop.f32.mrf.mxu0
        %v2085 = vadd.f32 0.0, %v2084
        %v2086 = vpop.f32.mrf.mxu0
        %v2087 = vadd.f32 0.0, %v2086
        %2088 = vmatprep.mubr.f32.mxu0 0.0
        %2089 = vmatmul.mubr.f32.gmra.mxu0 %v1908
        %v2090 = vpop.f32.mrf.mxu0
        %v2091 = vadd.f32 0.0, %v2090
        %v2092 = vpop.f32.mrf.mxu0
        %v2093 = vadd.f32 0.0, %v2092
        %2094 = vmatprep.mubr.f32.mxu0 0.0
        %2095 = vmatmul.mubr.f32.gmra.mxu0 %v1911
        %v2096 = vpop.f32.mrf.mxu0
        %v2097 = vadd.f32 0.0, %v2096
        %v2098 = vpop.f32.mrf.mxu0
        %v2099 = vadd.f32 0.0, %v2098
        %2100 = vmatprep.mubr.f32.mxu0 0.0
        %2101 = vmatmul.mubr.f32.gmra.mxu0 %v1914
        %v2102 = vpop.f32.mrf.mxu0
        %v2103 = vadd.f32 0.0, %v2102
        %v2104 = vpop.f32.mrf.mxu0
        %v2105 = vadd.f32 0.0, %v2104
        %2106 = vmatprep.mubr.f32.mxu0 0.0
        %2107 = vmatmul.mubr.f32.gmra.mxu0 %v1917
        %v2108 = vpop.f32.mrf.mxu0
        %v2109 = vadd.f32 0.0, %v2108
        %v2110 = vpop.f32.mrf.mxu0
        %v2111 = vadd.f32 0.0, %v2110
        %2112 = vmatprep.mubr.f32.mxu0 0.0
        %2113 = vmatmul.mubr.f32.gmra.mxu0 %v1920
        %v2114 = vpop.f32.mrf.mxu0
        %v2115 = vadd.f32 0.0, %v2114
        %v2116 = vpop.f32.mrf.mxu0
        %v2117 = vadd.f32 0.0, %v2116
        %2118 = vmatprep.mubr.f32.mxu0 0.0
        %2119 = vmatmul.mubr.f32.gmra.mxu0 %v1923
        %v2120 = vpop.f32.mrf.mxu0
        %v2121 = vadd.f32 0.0, %v2120
        %v2122 = vpop.f32.mrf.mxu0
        %v2123 = vadd.f32 0.0, %v2122
        %2124 = vmatprep.mubr.f32.mxu0 0.0
        %2125 = vmatmul.mubr.f32.gmra.mxu0 %v1926
        %v2126 = vpop.f32.mrf.mxu0
        %v2127 = vadd.f32 0.0, %v2126
        %v2128 = vpop.f32.mrf.mxu0
        %v2129 = vadd.f32 0.0, %v2128
        %2130 = vmatprep.mubr.f32.mxu0 0.0
        %2131 = vmatmul.mubr.f32.gmra.mxu0 %v1929
        %v2132 = vpop.f32.mrf.mxu0
        %v2133 = vadd.f32 0.0, %v2132
        %v2134 = vpop.f32.mrf.mxu0
        %v2135 = vadd.f32 0.0, %v2134
        %2136 = vmatprep.mubr.f32.mxu0 0.0
        %2137 = vmatmul.mubr.f32.gmra.mxu0 %v1932
        %v2138 = vpop.f32.mrf.mxu0
        %v2139 = vadd.f32 0.0, %v2138
        %v2140 = vpop.f32.mrf.mxu0
        %v2141 = vadd.f32 0.0, %v2140
        %2142 = vmatprep.mubr.f32.mxu0 0.0
        %2143 = vmatmul.mubr.f32.gmra.mxu0 %v1935
        %v2144 = vpop.f32.mrf.mxu0
        %v2145 = vadd.f32 0.0, %v2144
        %v2146 = vpop.f32.mrf.mxu0
        %v2147 = vadd.f32 0.0, %v2146
        %2148 = vmatprep.mubr.f32.mxu0 0.0
        %2149 = vmatmul.mubr.f32.gmra.mxu0 %v1938
        %v2150 = vpop.f32.mrf.mxu0
        %v2151 = vadd.f32 0.0, %v2150
        %v2152 = vpop.f32.mrf.mxu0
        %v2153 = vadd.f32 0.0, %v2152
        %2154 = vmatprep.mubr.f32.mxu0 0.0
        %2155 = vmatmul.mubr.f32.gmra.mxu0 %v1941
        %v2156 = vpop.f32.mrf.mxu0
        %v2157 = vadd.f32 0.0, %v2156
        %v2158 = vpop.f32.mrf.mxu0
        %v2159 = vadd.f32 0.0, %v2158
        %2160 = vmatprep.mubr.f32.mxu0 0.0
        %2161 = vmatmul.mubr.f32.gmra.mxu0 %v1944
        %v2162 = vpop.f32.mrf.mxu0
        %v2163 = vadd.f32 0.0, %v2162
        %v2164 = vpop.f32.mrf.mxu0
        %v2165 = vadd.f32 0.0, %v2164
        %2166 = vmatprep.mubr.f32.mxu0 0.0
        %2167 = vmatmul.mubr.f32.gmra.mxu0 %v1947
        %v2168 = vpop.f32.mrf.mxu0
        %v2169 = vadd.f32 0.0, %v2168
        %v2170 = vpop.f32.mrf.mxu0
        %v2171 = vadd.f32 0.0, %v2170
        %2172 = vmatprep.mubr.f32.mxu0 0.0
        %2173 = vmatmul.mubr.f32.gmra.mxu0 %v1950
        %v2174 = vpop.f32.mrf.mxu0
        %v2175 = vadd.f32 0.0, %v2174
        %v2176 = vpop.f32.mrf.mxu0
        %v2177 = vadd.f32 0.0, %v2176
        %2178 = vmatprep.mubr.f32.mxu0 0.0
        %2179 = vmatmul.mubr.f32.gmra.mxu0 %v1953
        %v2180 = vpop.f32.mrf.mxu0
        %v2181 = vadd.f32 0.0, %v2180
        %v2182 = vpop.f32.mrf.mxu0
        %v2183 = vadd.f32 0.0, %v2182
        %2184 = vmatprep.mubr.f32.mxu0 0.0
        %2185 = vmatmul.mubr.f32.gmra.mxu0 %v1956
        %v2186 = vpop.f32.mrf.mxu0
        %v2187 = vadd.f32 0.0, %v2186
        %v2188 = vpop.f32.mrf.mxu0
        %v2189 = vadd.f32 0.0, %v2188
        %2190 = vdwg.mxu0
        %v2191 = vadd.f32 %v1764, %v2025
        %v2192 = vadd.f32 %v1765, %v2027
        %v2193 = vadd.f32 %v1766, %v2031
        %v2194 = vadd.f32 %v1767, %v2033
        %v2195 = vadd.f32 %v1768, %v2037
        %v2196 = vadd.f32 %v1769, %v2039
        %v2197 = vadd.f32 %v1770, %v2043
        %v2198 = vadd.f32 %v1771, %v2045
        %v2199 = vadd.f32 %v1772, %v2049
        %v2200 = vadd.f32 %v1773, %v2051
        %v2201 = vadd.f32 %v1774, %v2055
        %v2202 = vadd.f32 %v1775, %v2057
        %v2203 = vadd.f32 %v1776, %v2061
        %v2204 = vadd.f32 %v1777, %v2063
        %v2205 = vadd.f32 %v1778, %v2067
        %v2206 = vadd.f32 %v1779, %v2069
        %v2207 = vadd.f32 %v1780, %v2073
        %v2208 = vadd.f32 %v1781, %v2075
        %v2209 = vadd.f32 %v1782, %v2079
        %v2210 = vadd.f32 %v1783, %v2081
        %v2211 = vadd.f32 %v1784, %v2085
        %v2212 = vadd.f32 %v1785, %v2087
        %v2213 = vadd.f32 %v1786, %v2091
        %v2214 = vadd.f32 %v1787, %v2093
        %v2215 = vadd.f32 %v1788, %v2097
        %v2216 = vadd.f32 %v1789, %v2099
        %v2217 = vadd.f32 %v1790, %v2103
        %v2218 = vadd.f32 %v1791, %v2105
        %v2219 = vadd.f32 %v1792, %v2109
        %v2220 = vadd.f32 %v1793, %v2111
        %v2221 = vadd.f32 %v1794, %v2115
        %v2222 = vadd.f32 %v1795, %v2117
        %v2223 = vadd.f32 %v1796, %v2121
        %v2224 = vadd.f32 %v1797, %v2123
        %v2225 = vadd.f32 %v1798, %v2127
        %v2226 = vadd.f32 %v1799, %v2129
        %v2227 = vadd.f32 %v1800, %v2133
        %v2228 = vadd.f32 %v1801, %v2135
        %v2229 = vadd.f32 %v1802, %v2139
        %v2230 = vadd.f32 %v1803, %v2141
        %v2231 = vadd.f32 %v1804, %v2145
        %v2232 = vadd.f32 %v1805, %v2147
        %v2233 = vadd.f32 %v1806, %v2151
        %v2234 = vadd.f32 %v1807, %v2153
        %v2235 = vadd.f32 %v1808, %v2157
        %v2236 = vadd.f32 %v1809, %v2159
        %v2237 = vadd.f32 %v1810, %v2163
        %v2238 = vadd.f32 %v1811, %v2165
        %v2239 = vadd.f32 %v1812, %v2169
        %v2240 = vadd.f32 %v1813, %v2171
        %v2241 = vadd.f32 %v1814, %v2175
        %v2242 = vadd.f32 %v1815, %v2177
        %v2243 = vadd.f32 %v1816, %v2181
        %v2244 = vadd.f32 %v1817, %v2183
        %v2245 = vadd.f32 %v1818, %v2187
        %v2246 = vadd.f32 %v1819, %v2189
        %s2247 = scalar_lea.vmem %s607, 32 [#allocation2]
        %v2248 = vld [vmem:[%s2247] sm:$0xff]
        %v2249 = vld [vmem:[%s2247 + $0x8] sm:$0xff]
        %v2250 = vld [vmem:[%s2247 + $0x10] sm:$0xff]
        %v2251 = vld [vmem:[%s2247 + $0x18] sm:$0xff]
        %v2252 = vld [vmem:[%s2247 + $0x20] sm:$0xff]
        %v2253 = vld [vmem:[%s2247 + $0x28] sm:$0xff]
        %v2254 = vld [vmem:[%s2247 + $0x30] sm:$0xff]
        %v2255 = vld [vmem:[%s2247 + $0x38] sm:$0xff]
        %v2256 = vld [vmem:[%s2247 + $0x40] sm:$0xff]
        %v2257 = vld [vmem:[%s2247 + $0x48] sm:$0xff]
        %v2258 = vld [vmem:[%s2247 + $0x50] sm:$0xff]
        %v2259 = vld [vmem:[%s2247 + $0x58] sm:$0xff]
        %v2260 = vld [vmem:[%s2247 + $0x60] sm:$0xff]
        %v2261 = vld [vmem:[%s2247 + $0x68] sm:$0xff]
        %v2262 = vld [vmem:[%s2247 + $0x70] sm:$0xff]
        %v2263 = vld [vmem:[%s2247 + $0x78] sm:$0xff]
        %v2264 = vld [vmem:[%s2247 + $0x80] sm:$0xff]
        %v2265 = vld [vmem:[%s2247 + $0x88] sm:$0xff]
        %v2266 = vld [vmem:[%s2247 + $0x90] sm:$0xff]
        %v2267 = vld [vmem:[%s2247 + $0x98] sm:$0xff]
        %v2268 = vld [vmem:[%s2247 + $0xa0] sm:$0xff]
        %v2269 = vld [vmem:[%s2247 + $0xa8] sm:$0xff]
        %v2270 = vld [vmem:[%s2247 + $0xb0] sm:$0xff]
        %v2271 = vld [vmem:[%s2247 + $0xb8] sm:$0xff]
        %v2272 = vld [vmem:[%s2247 + $0xc0] sm:$0xff]
        %v2273 = vld [vmem:[%s2247 + $0xc8] sm:$0xff]
        %v2274 = vld [vmem:[%s2247 + $0xd0] sm:$0xff]
        %v2275 = vld [vmem:[%s2247 + $0xd8] sm:$0xff]
        %s2276 = scalar_lea.vmem %s1, 768
        %v2277 = vld [vmem:[%s2276] sm:$0xff]
        %v2278 = vld [vmem:[%s2276 + $0x8] sm:$0xff]
        %v2279 = vld [vmem:[%s2276 + $0x10] sm:$0xff]
        %v2280 = vld [vmem:[%s2276 + $0x18] sm:$0xff]
        %v2281 = vld [vmem:[%s2276 + $0x20] sm:$0xff]
        %v2282 = vld [vmem:[%s2276 + $0x28] sm:$0xff]
        %v2283 = vld [vmem:[%s2276 + $0x30] sm:$0xff]
        %v2284 = vld [vmem:[%s2276 + $0x38] sm:$0xff]
        %v2285 = vld [vmem:[%s2276 + $0x40] sm:$0xff]
        %v2286 = vld [vmem:[%s2276 + $0x48] sm:$0xff]
        %v2287 = vld [vmem:[%s2276 + $0x50] sm:$0xff]
        %v2288 = vld [vmem:[%s2276 + $0x58] sm:$0xff]
        %v2289 = vld [vmem:[%s2276 + $0x60] sm:$0xff]
        %v2290 = vld [vmem:[%s2276 + $0x68] sm:$0xff]
        %v2291 = vld [vmem:[%s2276 + $0x70] sm:$0xff]
        %v2292 = vld [vmem:[%s2276 + $0x78] sm:$0xff]
        %v2293 = vld [vmem:[%s2276 + $0x80] sm:$0xff]
        %v2294 = vld [vmem:[%s2276 + $0x88] sm:$0xff]
        %v2295 = vld [vmem:[%s2276 + $0x90] sm:$0xff]
        %v2296 = vld [vmem:[%s2276 + $0x98] sm:$0xff]
        %v2297 = vld [vmem:[%s2276 + $0xa0] sm:$0xff]
        %v2298 = vld [vmem:[%s2276 + $0xa8] sm:$0xff]
        %v2299 = vld [vmem:[%s2276 + $0xb0] sm:$0xff]
        %v2300 = vld [vmem:[%s2276 + $0xb8] sm:$0xff]
        %v2302 = vsel %vm758, %v2248, 0
        %v2305 = vsel %vm758, %v2249, 0
        %v2308 = vsel %vm758, %v2250, 0
        %v2311 = vsel %vm758, %v2251, 0
        %v2314 = vsel %vm758, %v2252, 0
        %v2317 = vsel %vm758, %v2253, 0
        %v2320 = vsel %vm758, %v2254, 0
        %v2323 = vsel %vm758, %v2255, 0
        %v2326 = vsel %vm758, %v2256, 0
        %v2329 = vsel %vm758, %v2257, 0
        %v2332 = vsel %vm758, %v2258, 0
        %v2335 = vsel %vm758, %v2259, 0
        %v2338 = vsel %vm758, %v2260, 0
        %v2341 = vsel %vm758, %v2261, 0
        %v2344 = vsel %vm758, %v2262, 0
        %v2347 = vsel %vm758, %v2263, 0
        %v2350 = vsel %vm758, %v2264, 0
        %v2353 = vsel %vm758, %v2265, 0
        %v2356 = vsel %vm758, %v2266, 0
        %v2359 = vsel %vm758, %v2267, 0
        %v2362 = vsel %vm758, %v2268, 0
        %v2365 = vsel %vm758, %v2269, 0
        %v2368 = vsel %vm758, %v2270, 0
        %v2371 = vsel %vm758, %v2271, 0
        %v2374 = vsel %vm758, %v2272, 0
        %v2377 = vsel %vm758, %v2273, 0
        %v2380 = vsel %vm758, %v2274, 0
        %v2383 = vsel %vm758, %v2275, 0
        %2385 = vmatprep.subr.mxu0 0.0
        %2386 = vmatpush1.msra.mxu0 0.0
        %2387 = vmatprep.subr.mxu0 0.0
        %2388 = vmatpush1.msra.mxu0 0.0
        %2389 = vmatprep.subr.mxu0 0.0
        %2390 = vmatpush1.msra.mxu0 0.0
        %2391 = vmatprep.subr.mxu0 0.0
        %2392 = vmatpush1.msra.mxu0 0.0
        %2393 = vmatprep.subr.mxu0 %v2300
        %2394 = vmatpush1.msra.mxu0 %v2299
        %2395 = vmatprep.subr.mxu0 %v2298
        %2396 = vmatpush1.msra.mxu0 %v2297
        %2397 = vmatprep.subr.mxu0 %v2296
        %2398 = vmatpush1.msra.mxu0 %v2295
        %2399 = vmatprep.subr.mxu0 %v2294
        %2400 = vmatpush1.msra.mxu0 %v2293
        %2401 = vmatprep.subr.mxu0 %v2292
        %2402 = vmatpush1.msra.mxu0 %v2291
        %2403 = vmatprep.subr.mxu0 %v2290
        %2404 = vmatpush1.msra.mxu0 %v2289
        %2405 = vmatprep.subr.mxu0 %v2288
        %2406 = vmatpush1.msra.mxu0 %v2287
        %2407 = vmatprep.subr.mxu0 %v2286
        %2408 = vmatpush1.msra.mxu0 %v2285
        %2409 = vmatprep.subr.mxu0 %v2284
        %2410 = vmatpush1.msra.mxu0 %v2283
        %2411 = vmatprep.subr.mxu0 %v2282
        %2412 = vmatpush1.msra.mxu0 %v2281
        %2413 = vmatprep.subr.mxu0 %v2280
        %2414 = vmatpush1.msra.mxu0 %v2279
        %2415 = vmatprep.subr.mxu0 %v2278
        %2416 = vmatpush1.msra.mxu0 %v2277
        %2417 = vmatprep.subr.mxu0 0.0
        %2418 = vmatpush2.msra.mxu0 0.0
        %2419 = vmatprep.subr.mxu0 0.0
        %2420 = vmatpush2.msra.mxu0 0.0
        %2421 = vmatprep.subr.mxu0 0.0
        %2422 = vmatpush2.msra.mxu0 0.0
        %2423 = vmatprep.subr.mxu0 0.0
        %2424 = vmatpush2.msra.mxu0 0.0
        %2425 = vmatprep.subr.mxu0 0.0
        %2426 = vmatpush2.msra.mxu0 0.0
        %2427 = vmatprep.subr.mxu0 0.0
        %2428 = vmatpush2.msra.mxu0 0.0
        %2429 = vmatprep.subr.mxu0 0.0
        %2430 = vmatpush2.msra.mxu0 0.0
        %2431 = vmatprep.subr.mxu0 0.0
        %2432 = vmatpush2.msra.mxu0 0.0
        %2433 = vmatprep.subr.mxu0 0.0
        %2434 = vmatpush2.msra.mxu0 0.0
        %2435 = vmatprep.subr.mxu0 0.0
        %2436 = vmatpush2.msra.mxu0 0.0
        %2437 = vmatprep.subr.mxu0 0.0
        %2438 = vmatpush2.msra.mxu0 0.0
        %2439 = vmatprep.subr.mxu0 0.0
        %2440 = vmatpush2.msra.mxu0 0.0
        %2441 = vmatprep.subr.mxu0 0.0
        %2442 = vmatpush2.msra.mxu0 0.0
        %2443 = vmatprep.subr.mxu0 0.0
        %2444 = vmatpush2.msra.mxu0 0.0
        %2445 = vmatprep.subr.mxu0 0.0
        %2446 = vmatpush2.msra.mxu0 0.0
        %2447 = vmatprep.subr.mxu0 0.0
        %2448 = vmatpush2.msra.mxu0 0.0
        %2449 = vmatprep.mubr.f32.mxu0 0.0
        %2450 = vmatmul.mubr.f32.gmra.mxu0 %v2302
        %v2451 = vpop.f32.mrf.mxu0
        %v2452 = vadd.f32 0.0, %v2451
        %v2453 = vpop.f32.mrf.mxu0
        %v2454 = vadd.f32 0.0, %v2453
        %2455 = vmatprep.mubr.f32.mxu0 0.0
        %2456 = vmatmul.mubr.f32.gmra.mxu0 %v2305
        %v2457 = vpop.f32.mrf.mxu0
        %v2458 = vadd.f32 0.0, %v2457
        %v2459 = vpop.f32.mrf.mxu0
        %v2460 = vadd.f32 0.0, %v2459
        %2461 = vmatprep.mubr.f32.mxu0 0.0
        %2462 = vmatmul.mubr.f32.gmra.mxu0 %v2308
        %v2463 = vpop.f32.mrf.mxu0
        %v2464 = vadd.f32 0.0, %v2463
        %v2465 = vpop.f32.mrf.mxu0
        %v2466 = vadd.f32 0.0, %v2465
        %2467 = vmatprep.mubr.f32.mxu0 0.0
        %2468 = vmatmul.mubr.f32.gmra.mxu0 %v2311
        %v2469 = vpop.f32.mrf.mxu0
        %v2470 = vadd.f32 0.0, %v2469
        %v2471 = vpop.f32.mrf.mxu0
        %v2472 = vadd.f32 0.0, %v2471
        %2473 = vmatprep.mubr.f32.mxu0 0.0
        %2474 = vmatmul.mubr.f32.gmra.mxu0 %v2314
        %v2475 = vpop.f32.mrf.mxu0
        %v2476 = vadd.f32 0.0, %v2475
        %v2477 = vpop.f32.mrf.mxu0
        %v2478 = vadd.f32 0.0, %v2477
        %2479 = vmatprep.mubr.f32.mxu0 0.0
        %2480 = vmatmul.mubr.f32.gmra.mxu0 %v2317
        %v2481 = vpop.f32.mrf.mxu0
        %v2482 = vadd.f32 0.0, %v2481
        %v2483 = vpop.f32.mrf.mxu0
        %v2484 = vadd.f32 0.0, %v2483
        %2485 = vmatprep.mubr.f32.mxu0 0.0
        %2486 = vmatmul.mubr.f32.gmra.mxu0 %v2320
        %v2487 = vpop.f32.mrf.mxu0
        %v2488 = vadd.f32 0.0, %v2487
        %v2489 = vpop.f32.mrf.mxu0
        %v2490 = vadd.f32 0.0, %v2489
        %2491 = vmatprep.mubr.f32.mxu0 0.0
        %2492 = vmatmul.mubr.f32.gmra.mxu0 %v2323
        %v2493 = vpop.f32.mrf.mxu0
        %v2494 = vadd.f32 0.0, %v2493
        %v2495 = vpop.f32.mrf.mxu0
        %v2496 = vadd.f32 0.0, %v2495
        %2497 = vmatprep.mubr.f32.mxu0 0.0
        %2498 = vmatmul.mubr.f32.gmra.mxu0 %v2326
        %v2499 = vpop.f32.mrf.mxu0
        %v2500 = vadd.f32 0.0, %v2499
        %v2501 = vpop.f32.mrf.mxu0
        %v2502 = vadd.f32 0.0, %v2501
        %2503 = vmatprep.mubr.f32.mxu0 0.0
        %2504 = vmatmul.mubr.f32.gmra.mxu0 %v2329
        %v2505 = vpop.f32.mrf.mxu0
        %v2506 = vadd.f32 0.0, %v2505
        %v2507 = vpop.f32.mrf.mxu0
        %v2508 = vadd.f32 0.0, %v2507
        %2509 = vmatprep.mubr.f32.mxu0 0.0
        %2510 = vmatmul.mubr.f32.gmra.mxu0 %v2332
        %v2511 = vpop.f32.mrf.mxu0
        %v2512 = vadd.f32 0.0, %v2511
        %v2513 = vpop.f32.mrf.mxu0
        %v2514 = vadd.f32 0.0, %v2513
        %2515 = vmatprep.mubr.f32.mxu0 0.0
        %2516 = vmatmul.mubr.f32.gmra.mxu0 %v2335
        %v2517 = vpop.f32.mrf.mxu0
        %v2518 = vadd.f32 0.0, %v2517
        %v2519 = vpop.f32.mrf.mxu0
        %v2520 = vadd.f32 0.0, %v2519
        %2521 = vmatprep.mubr.f32.mxu0 0.0
        %2522 = vmatmul.mubr.f32.gmra.mxu0 %v2338
        %v2523 = vpop.f32.mrf.mxu0
        %v2524 = vadd.f32 0.0, %v2523
        %v2525 = vpop.f32.mrf.mxu0
        %v2526 = vadd.f32 0.0, %v2525
        %2527 = vmatprep.mubr.f32.mxu0 0.0
        %2528 = vmatmul.mubr.f32.gmra.mxu0 %v2341
        %v2529 = vpop.f32.mrf.mxu0
        %v2530 = vadd.f32 0.0, %v2529
        %v2531 = vpop.f32.mrf.mxu0
        %v2532 = vadd.f32 0.0, %v2531
        %2533 = vmatprep.mubr.f32.mxu0 0.0
        %2534 = vmatmul.mubr.f32.gmra.mxu0 %v2344
        %v2535 = vpop.f32.mrf.mxu0
        %v2536 = vadd.f32 0.0, %v2535
        %v2537 = vpop.f32.mrf.mxu0
        %v2538 = vadd.f32 0.0, %v2537
        %2539 = vmatprep.mubr.f32.mxu0 0.0
        %2540 = vmatmul.mubr.f32.gmra.mxu0 %v2347
        %v2541 = vpop.f32.mrf.mxu0
        %v2542 = vadd.f32 0.0, %v2541
        %v2543 = vpop.f32.mrf.mxu0
        %v2544 = vadd.f32 0.0, %v2543
        %2545 = vmatprep.mubr.f32.mxu0 0.0
        %2546 = vmatmul.mubr.f32.gmra.mxu0 %v2350
        %v2547 = vpop.f32.mrf.mxu0
        %v2548 = vadd.f32 0.0, %v2547
        %v2549 = vpop.f32.mrf.mxu0
        %v2550 = vadd.f32 0.0, %v2549
        %2551 = vmatprep.mubr.f32.mxu0 0.0
        %2552 = vmatmul.mubr.f32.gmra.mxu0 %v2353
        %v2553 = vpop.f32.mrf.mxu0
        %v2554 = vadd.f32 0.0, %v2553
        %v2555 = vpop.f32.mrf.mxu0
        %v2556 = vadd.f32 0.0, %v2555
        %2557 = vmatprep.mubr.f32.mxu0 0.0
        %2558 = vmatmul.mubr.f32.gmra.mxu0 %v2356
        %v2559 = vpop.f32.mrf.mxu0
        %v2560 = vadd.f32 0.0, %v2559
        %v2561 = vpop.f32.mrf.mxu0
        %v2562 = vadd.f32 0.0, %v2561
        %2563 = vmatprep.mubr.f32.mxu0 0.0
        %2564 = vmatmul.mubr.f32.gmra.mxu0 %v2359
        %v2565 = vpop.f32.mrf.mxu0
        %v2566 = vadd.f32 0.0, %v2565
        %v2567 = vpop.f32.mrf.mxu0
        %v2568 = vadd.f32 0.0, %v2567
        %2569 = vmatprep.mubr.f32.mxu0 0.0
        %2570 = vmatmul.mubr.f32.gmra.mxu0 %v2362
        %v2571 = vpop.f32.mrf.mxu0
        %v2572 = vadd.f32 0.0, %v2571
        %v2573 = vpop.f32.mrf.mxu0
        %v2574 = vadd.f32 0.0, %v2573
        %2575 = vmatprep.mubr.f32.mxu0 0.0
        %2576 = vmatmul.mubr.f32.gmra.mxu0 %v2365
        %v2577 = vpop.f32.mrf.mxu0
        %v2578 = vadd.f32 0.0, %v2577
        %v2579 = vpop.f32.mrf.mxu0
        %v2580 = vadd.f32 0.0, %v2579
        %2581 = vmatprep.mubr.f32.mxu0 0.0
        %2582 = vmatmul.mubr.f32.gmra.mxu0 %v2368
        %v2583 = vpop.f32.mrf.mxu0
        %v2584 = vadd.f32 0.0, %v2583
        %v2585 = vpop.f32.mrf.mxu0
        %v2586 = vadd.f32 0.0, %v2585
        %2587 = vmatprep.mubr.f32.mxu0 0.0
        %2588 = vmatmul.mubr.f32.gmra.mxu0 %v2371
        %v2589 = vpop.f32.mrf.mxu0
        %v2590 = vadd.f32 0.0, %v2589
        %v2591 = vpop.f32.mrf.mxu0
        %v2592 = vadd.f32 0.0, %v2591
        %2593 = vmatprep.mubr.f32.mxu0 0.0
        %2594 = vmatmul.mubr.f32.gmra.mxu0 %v2374
        %v2595 = vpop.f32.mrf.mxu0
        %v2596 = vadd.f32 0.0, %v2595
        %v2597 = vpop.f32.mrf.mxu0
        %v2598 = vadd.f32 0.0, %v2597
        %2599 = vmatprep.mubr.f32.mxu0 0.0
        %2600 = vmatmul.mubr.f32.gmra.mxu0 %v2377
        %v2601 = vpop.f32.mrf.mxu0
        %v2602 = vadd.f32 0.0, %v2601
        %v2603 = vpop.f32.mrf.mxu0
        %v2604 = vadd.f32 0.0, %v2603
        %2605 = vmatprep.mubr.f32.mxu0 0.0
        %2606 = vmatmul.mubr.f32.gmra.mxu0 %v2380
        %v2607 = vpop.f32.mrf.mxu0
        %v2608 = vadd.f32 0.0, %v2607
        %v2609 = vpop.f32.mrf.mxu0
        %v2610 = vadd.f32 0.0, %v2609
        %2611 = vmatprep.mubr.f32.mxu0 0.0
        %2612 = vmatmul.mubr.f32.gmra.mxu0 %v2383
        %v2613 = vpop.f32.mrf.mxu0
        %v2614 = vadd.f32 0.0, %v2613
        %v2615 = vpop.f32.mrf.mxu0
        %v2616 = vadd.f32 0.0, %v2615
        %2617 = vdwg.mxu0
        %v2618 = vadd.f32 %v2191, %v2452
        %v2619 = vadd.f32 %v2192, %v2454
        %v2620 = vadd.f32 %v2193, %v2458
        %v2621 = vadd.f32 %v2194, %v2460
        %v2622 = vadd.f32 %v2195, %v2464
        %v2623 = vadd.f32 %v2196, %v2466
        %v2624 = vadd.f32 %v2197, %v2470
        %v2625 = vadd.f32 %v2198, %v2472
        %v2626 = vadd.f32 %v2199, %v2476
        %v2627 = vadd.f32 %v2200, %v2478
        %v2628 = vadd.f32 %v2201, %v2482
        %v2629 = vadd.f32 %v2202, %v2484
        %v2630 = vadd.f32 %v2203, %v2488
        %v2631 = vadd.f32 %v2204, %v2490
        %v2632 = vadd.f32 %v2205, %v2494
        %v2633 = vadd.f32 %v2206, %v2496
        %v2634 = vadd.f32 %v2207, %v2500
        %v2635 = vadd.f32 %v2208, %v2502
        %v2636 = vadd.f32 %v2209, %v2506
        %v2637 = vadd.f32 %v2210, %v2508
        %v2638 = vadd.f32 %v2211, %v2512
        %v2639 = vadd.f32 %v2212, %v2514
        %v2640 = vadd.f32 %v2213, %v2518
        %v2641 = vadd.f32 %v2214, %v2520
        %v2642 = vadd.f32 %v2215, %v2524
        %v2643 = vadd.f32 %v2216, %v2526
        %v2644 = vadd.f32 %v2217, %v2530
        %v2645 = vadd.f32 %v2218, %v2532
        %v2646 = vadd.f32 %v2219, %v2536
        %v2647 = vadd.f32 %v2220, %v2538
        %v2648 = vadd.f32 %v2221, %v2542
        %v2649 = vadd.f32 %v2222, %v2544
        %v2650 = vadd.f32 %v2223, %v2548
        %v2651 = vadd.f32 %v2224, %v2550
        %v2652 = vadd.f32 %v2225, %v2554
        %v2653 = vadd.f32 %v2226, %v2556
        %v2654 = vadd.f32 %v2227, %v2560
        %v2655 = vadd.f32 %v2228, %v2562
        %v2656 = vadd.f32 %v2229, %v2566
        %v2657 = vadd.f32 %v2230, %v2568
        %v2658 = vadd.f32 %v2231, %v2572
        %v2659 = vadd.f32 %v2232, %v2574
        %v2660 = vadd.f32 %v2233, %v2578
        %v2661 = vadd.f32 %v2234, %v2580
        %v2662 = vadd.f32 %v2235, %v2584
        %v2663 = vadd.f32 %v2236, %v2586
        %v2664 = vadd.f32 %v2237, %v2590
        %v2665 = vadd.f32 %v2238, %v2592
        %v2666 = vadd.f32 %v2239, %v2596
        %v2667 = vadd.f32 %v2240, %v2598
        %v2668 = vadd.f32 %v2241, %v2602
        %v2669 = vadd.f32 %v2242, %v2604
        %v2670 = vadd.f32 %v2243, %v2608
        %v2671 = vadd.f32 %v2244, %v2610
        %v2672 = vadd.f32 %v2245, %v2614
        %v2673 = vadd.f32 %v2246, %v2616
        %v2674 = vmax.f32 %v2618, %v2620
        %v2675 = vmax.f32 %v2619, %v2621
        %v2676 = vmax.f32 %v2622, %v2624
        %v2677 = vmax.f32 %v2623, %v2625
        %v2678 = vmax.f32 %v2626, %v2628
        %v2679 = vmax.f32 %v2627, %v2629
        %v2680 = vmax.f32 %v2630, %v2632
        %v2681 = vmax.f32 %v2631, %v2633
        %v2682 = vmax.f32 %v2634, %v2636
        %v2683 = vmax.f32 %v2635, %v2637
        %v2684 = vmax.f32 %v2638, %v2640
        %v2685 = vmax.f32 %v2639, %v2641
        %v2686 = vmax.f32 %v2642, %v2644
        %v2687 = vmax.f32 %v2643, %v2645
        %v2688 = vmax.f32 %v2646, %v2648
        %v2689 = vmax.f32 %v2647, %v2649
        %v2690 = vmax.f32 %v2650, %v2652
        %v2691 = vmax.f32 %v2651, %v2653
        %v2692 = vmax.f32 %v2654, %v2656
        %v2693 = vmax.f32 %v2655, %v2657
        %v2694 = vmax.f32 %v2658, %v2660
        %v2695 = vmax.f32 %v2659, %v2661
        %v2696 = vmax.f32 %v2662, %v2664
        %v2697 = vmax.f32 %v2663, %v2665
        %v2698 = vmax.f32 %v2666, %v2668
        %v2699 = vmax.f32 %v2667, %v2669
        %v2700 = vmax.f32 %v2670, %v2672
        %v2701 = vmax.f32 %v2671, %v2673
        %v2702 = vld [vmem:[%s3] sm:$0xff]
        %v2703 = vld [vmem:[%s3 + $0x8] sm:$0xff]
        %v2704 = vld [vmem:[%s3 + $0x10] sm:$0xff]
        %v2705 = vld [vmem:[%s3 + $0x18] sm:$0xff]
        %v2706 = vld [vmem:[%s3 + $0x20] sm:$0xff]
        %v2707 = vld [vmem:[%s3 + $0x28] sm:$0xff]
        %v2708 = vld [vmem:[%s3 + $0x30] sm:$0xff]
        %v2709 = vld [vmem:[%s3 + $0x38] sm:$0xff]
        %v2710 = vld [vmem:[%s3 + $0x40] sm:$0xff]
        %v2711 = vld [vmem:[%s3 + $0x48] sm:$0xff]
        %v2712 = vld [vmem:[%s3 + $0x50] sm:$0xff]
        %v2713 = vld [vmem:[%s3 + $0x58] sm:$0xff]
        %v2714 = vld [vmem:[%s3 + $0x60] sm:$0xff]
        %v2715 = vld [vmem:[%s3 + $0x68] sm:$0xff]
        %v2716 = vld [vmem:[%s3 + $0x70] sm:$0xff]
        %v2717 = vld [vmem:[%s3 + $0x78] sm:$0xff]
        %v2718 = vld [vmem:[%s3 + $0x80] sm:$0xff]
        %v2719 = vld [vmem:[%s3 + $0x88] sm:$0xff]
        %v2720 = vld [vmem:[%s3 + $0x90] sm:$0xff]
        %v2721 = vld [vmem:[%s3 + $0x98] sm:$0xff]
        %v2722 = vld [vmem:[%s3 + $0xa0] sm:$0xff]
        %vm2723 = vcmask 326656
        %v2725 = vsel %vm2723, %v2675, 0
        %v2728 = vsel %vm2723, %v2677, 0
        %v2731 = vsel %vm2723, %v2679, 0
        %v2734 = vsel %vm2723, %v2681, 0
        %v2737 = vsel %vm2723, %v2683, 0
        %v2740 = vsel %vm2723, %v2685, 0
        %v2743 = vsel %vm2723, %v2687, 0
        %v2746 = vsel %vm2723, %v2689, 0
        %v2749 = vsel %vm2723, %v2691, 0
        %v2752 = vsel %vm2723, %v2693, 0
        %v2755 = vsel %vm2723, %v2695, 0
        %v2758 = vsel %vm2723, %v2697, 0
        %v2761 = vsel %vm2723, %v2699, 0
        %v2764 = vsel %vm2723, %v2701, 0
        %2766 = vmatprep.subr.mxu0 0.0
        %2767 = vmatpush1.msra.mxu0 %v2717
        %2768 = vmatprep.subr.mxu0 0.0
        %2769 = vmatpush1.msra.mxu0 %v2716
        %2770 = vmatprep.subr.mxu0 0.0
        %2771 = vmatpush1.msra.mxu0 %v2715
        %2772 = vmatprep.subr.mxu0 0.0
        %2773 = vmatpush1.msra.mxu0 %v2714
        %2774 = vmatprep.subr.mxu0 0.0
        %2775 = vmatpush1.msra.mxu0 %v2713
        %2776 = vmatprep.subr.mxu0 0.0
        %2777 = vmatpush1.msra.mxu0 %v2712
        %2778 = vmatprep.subr.mxu0 0.0
        %2779 = vmatpush1.msra.mxu0 %v2711
        %2780 = vmatprep.subr.mxu0 0.0
        %2781 = vmatpush1.msra.mxu0 %v2710
        %2782 = vmatprep.subr.mxu0 0.0
        %2783 = vmatpush1.msra.mxu0 %v2709
        %2784 = vmatprep.subr.mxu0 0.0
        %2785 = vmatpush1.msra.mxu0 %v2708
        %2786 = vmatprep.subr.mxu0 0.0
        %2787 = vmatpush1.msra.mxu0 %v2707
        %2788 = vmatprep.subr.mxu0 0.0
        %2789 = vmatpush1.msra.mxu0 %v2706
        %2790 = vmatprep.subr.mxu0 0.0
        %2791 = vmatpush1.msra.mxu0 %v2705
        %2792 = vmatprep.subr.mxu0 0.0
        %2793 = vmatpush1.msra.mxu0 %v2704
        %2794 = vmatprep.subr.mxu0 0.0
        %2795 = vmatpush1.msra.mxu0 %v2703
        %2796 = vmatprep.subr.mxu0 0.0
        %2797 = vmatpush1.msra.mxu0 %v2702
        %2798 = vmatprep.subr.mxu0 0.0
        %2799 = vmatpush2.msra.mxu0 0.0
        %2800 = vmatprep.subr.mxu0 0.0
        %2801 = vmatpush2.msra.mxu0 0.0
        %2802 = vmatprep.subr.mxu0 0.0
        %2803 = vmatpush2.msra.mxu0 0.0
        %2804 = vmatprep.subr.mxu0 0.0
        %2805 = vmatpush2.msra.mxu0 0.0
        %2806 = vmatprep.subr.mxu0 0.0
        %2807 = vmatpush2.msra.mxu0 0.0
        %2808 = vmatprep.subr.mxu0 0.0
        %2809 = vmatpush2.msra.mxu0 0.0
        %2810 = vmatprep.subr.mxu0 0.0
        %2811 = vmatpush2.msra.mxu0 0.0
        %2812 = vmatprep.subr.mxu0 0.0
        %2813 = vmatpush2.msra.mxu0 0.0
        %2814 = vmatprep.subr.mxu0 0.0
        %2815 = vmatpush2.msra.mxu0 0.0
        %2816 = vmatprep.subr.mxu0 0.0
        %2817 = vmatpush2.msra.mxu0 0.0
        %2818 = vmatprep.subr.mxu0 0.0
        %2819 = vmatpush2.msra.mxu0 0.0
        %2820 = vmatprep.subr.mxu0 0.0
        %2821 = vmatpush2.msra.mxu0 %v2722
        %2822 = vmatprep.subr.mxu0 0.0
        %2823 = vmatpush2.msra.mxu0 %v2721
        %2824 = vmatprep.subr.mxu0 0.0
        %2825 = vmatpush2.msra.mxu0 %v2720
        %2826 = vmatprep.subr.mxu0 0.0
        %2827 = vmatpush2.msra.mxu0 %v2719
        %2828 = vmatprep.subr.mxu0 0.0
        %2829 = vmatpush2.msra.mxu0 %v2718
        %2830 = vmatprep.mubr.f32.mxu0 %v2725
        %2831 = vmatmul.mubr.f32.gmra.mxu0 %v2674
        %v2832 = vpop.f32.mrf.mxu0
        %v2833 = vadd.f32 0.0, %v2832
        %v2834 = vpop.f32.mrf.mxu0
        %2835 = vmatprep.mubr.f32.mxu0 %v2728
        %2836 = vmatmul.mubr.f32.gmra.mxu0 %v2676
        %v2837 = vpop.f32.mrf.mxu0
        %v2838 = vadd.f32 0.0, %v2837
        %v2839 = vpop.f32.mrf.mxu0
        %2840 = vmatprep.mubr.f32.mxu0 %v2731
        %2841 = vmatmul.mubr.f32.gmra.mxu0 %v2678
        %v2842 = vpop.f32.mrf.mxu0
        %v2843 = vadd.f32 0.0, %v2842
        %v2844 = vpop.f32.mrf.mxu0
        %2845 = vmatprep.mubr.f32.mxu0 %v2734
        %2846 = vmatmul.mubr.f32.gmra.mxu0 %v2680
        %v2847 = vpop.f32.mrf.mxu0
        %v2848 = vadd.f32 0.0, %v2847
        %v2849 = vpop.f32.mrf.mxu0
        %2850 = vmatprep.mubr.f32.mxu0 %v2737
        %2851 = vmatmul.mubr.f32.gmra.mxu0 %v2682
        %v2852 = vpop.f32.mrf.mxu0
        %v2853 = vadd.f32 0.0, %v2852
        %v2854 = vpop.f32.mrf.mxu0
        %2855 = vmatprep.mubr.f32.mxu0 %v2740
        %2856 = vmatmul.mubr.f32.gmra.mxu0 %v2684
        %v2857 = vpop.f32.mrf.mxu0
        %v2858 = vadd.f32 0.0, %v2857
        %v2859 = vpop.f32.mrf.mxu0
        %2860 = vmatprep.mubr.f32.mxu0 %v2743
        %2861 = vmatmul.mubr.f32.gmra.mxu0 %v2686
        %v2862 = vpop.f32.mrf.mxu0
        %v2863 = vadd.f32 0.0, %v2862
        %v2864 = vpop.f32.mrf.mxu0
        %2865 = vmatprep.mubr.f32.mxu0 %v2746
        %2866 = vmatmul.mubr.f32.gmra.mxu0 %v2688
        %v2867 = vpop.f32.mrf.mxu0
        %v2868 = vadd.f32 0.0, %v2867
        %v2869 = vpop.f32.mrf.mxu0
        %2870 = vmatprep.mubr.f32.mxu0 %v2749
        %2871 = vmatmul.mubr.f32.gmra.mxu0 %v2690
        %v2872 = vpop.f32.mrf.mxu0
        %v2873 = vadd.f32 0.0, %v2872
        %v2874 = vpop.f32.mrf.mxu0
        %2875 = vmatprep.mubr.f32.mxu0 %v2752
        %2876 = vmatmul.mubr.f32.gmra.mxu0 %v2692
        %v2877 = vpop.f32.mrf.mxu0
        %v2878 = vadd.f32 0.0, %v2877
        %v2879 = vpop.f32.mrf.mxu0
        %2880 = vmatprep.mubr.f32.mxu0 %v2755
        %2881 = vmatmul.mubr.f32.gmra.mxu0 %v2694
        %v2882 = vpop.f32.mrf.mxu0
        %v2883 = vadd.f32 0.0, %v2882
        %v2884 = vpop.f32.mrf.mxu0
        %2885 = vmatprep.mubr.f32.mxu0 %v2758
        %2886 = vmatmul.mubr.f32.gmra.mxu0 %v2696
        %v2887 = vpop.f32.mrf.mxu0
        %v2888 = vadd.f32 0.0, %v2887
        %v2889 = vpop.f32.mrf.mxu0
        %2890 = vmatprep.mubr.f32.mxu0 %v2761
        %2891 = vmatmul.mubr.f32.gmra.mxu0 %v2698
        %v2892 = vpop.f32.mrf.mxu0
        %v2893 = vadd.f32 0.0, %v2892
        %v2894 = vpop.f32.mrf.mxu0
        %2895 = vmatprep.mubr.f32.mxu0 %v2764
        %2896 = vmatmul.mubr.f32.gmra.mxu0 %v2700
        %v2897 = vpop.f32.mrf.mxu0
        %v2898 = vadd.f32 0.0, %v2897
        %v2899 = vpop.f32.mrf.mxu0
        %2900 = vdwg.mxu0
        %v2901 = vld [vmem:[%s4] sm:$0xff]
        %v2902 = vld [vmem:[%s4 + $0x8] sm:$0xff]
        %v2903 = vld [vmem:[%s4 + $0x10] sm:$0xff]
        %v2904 = vld [vmem:[%s4 + $0x18] sm:$0xff]
        %v2905 = vld [vmem:[%s4 + $0x20] sm:$0xff]
        %v2906 = vld [vmem:[%s4 + $0x28] sm:$0xff]
        %v2907 = vld [vmem:[%s4 + $0x30] sm:$0xff]
        %v2908 = vld [vmem:[%s4 + $0x38] sm:$0xff]
        %v2909 = vld [vmem:[%s4 + $0x40] sm:$0xff]
        %v2910 = vld [vmem:[%s4 + $0x48] sm:$0xff]
        %v2911 = vld [vmem:[%s4 + $0x50] sm:$0xff]
        %v2912 = vld [vmem:[%s4 + $0x58] sm:$0xff]
        %v2913 = vld [vmem:[%s4 + $0x60] sm:$0xff]
        %v2914 = vld [vmem:[%s4 + $0x68] sm:$0xff]
        %v2915 = vld [vmem:[%s4 + $0x70] sm:$0xff]
        %v2916 = vld [vmem:[%s4 + $0x78] sm:$0xff]
        %v2917 = vld [vmem:[%s4 + $0x80] sm:$0xff]
        %v2918 = vld [vmem:[%s4 + $0x88] sm:$0xff]
        %v2919 = vld [vmem:[%s4 + $0x90] sm:$0xff]
        %v2920 = vld [vmem:[%s4 + $0x98] sm:$0xff]
        %v2921 = vld [vmem:[%s4 + $0xa0] sm:$0xff]
        %2922 = vmatprep.subr.mxu0 0.0
        %2923 = vmatpush1.msra.mxu0 %v2916
        %2924 = vmatprep.subr.mxu0 0.0
        %2925 = vmatpush1.msra.mxu0 %v2915
        %2926 = vmatprep.subr.mxu0 0.0
        %2927 = vmatpush1.msra.mxu0 %v2914
        %2928 = vmatprep.subr.mxu0 0.0
        %2929 = vmatpush1.msra.mxu0 %v2913
        %2930 = vmatprep.subr.mxu0 0.0
        %2931 = vmatpush1.msra.mxu0 %v2912
        %2932 = vmatprep.subr.mxu0 0.0
        %2933 = vmatpush1.msra.mxu0 %v2911
        %2934 = vmatprep.subr.mxu0 0.0
        %2935 = vmatpush1.msra.mxu0 %v2910
        %2936 = vmatprep.subr.mxu0 0.0
        %2937 = vmatpush1.msra.mxu0 %v2909
        %2938 = vmatprep.subr.mxu0 0.0
        %2939 = vmatpush1.msra.mxu0 %v2908
        %2940 = vmatprep.subr.mxu0 0.0
        %2941 = vmatpush1.msra.mxu0 %v2907
        %2942 = vmatprep.subr.mxu0 0.0
        %2943 = vmatpush1.msra.mxu0 %v2906
        %2944 = vmatprep.subr.mxu0 0.0
        %2945 = vmatpush1.msra.mxu0 %v2905
        %2946 = vmatprep.subr.mxu0 0.0
        %2947 = vmatpush1.msra.mxu0 %v2904
        %2948 = vmatprep.subr.mxu0 0.0
        %2949 = vmatpush1.msra.mxu0 %v2903
        %2950 = vmatprep.subr.mxu0 0.0
        %2951 = vmatpush1.msra.mxu0 %v2902
        %2952 = vmatprep.subr.mxu0 0.0
        %2953 = vmatpush1.msra.mxu0 %v2901
        %2954 = vmatprep.subr.mxu0 0.0
        %2955 = vmatpush2.msra.mxu0 0.0
        %2956 = vmatprep.subr.mxu0 0.0
        %2957 = vmatpush2.msra.mxu0 0.0
        %2958 = vmatprep.subr.mxu0 0.0
        %2959 = vmatpush2.msra.mxu0 0.0
        %2960 = vmatprep.subr.mxu0 0.0
        %2961 = vmatpush2.msra.mxu0 0.0
        %2962 = vmatprep.subr.mxu0 0.0
        %2963 = vmatpush2.msra.mxu0 0.0
        %2964 = vmatprep.subr.mxu0 0.0
        %2965 = vmatpush2.msra.mxu0 0.0
        %2966 = vmatprep.subr.mxu0 0.0
        %2967 = vmatpush2.msra.mxu0 0.0
        %2968 = vmatprep.subr.mxu0 0.0
        %2969 = vmatpush2.msra.mxu0 0.0
        %2970 = vmatprep.subr.mxu0 0.0
        %2971 = vmatpush2.msra.mxu0 0.0
        %2972 = vmatprep.subr.mxu0 0.0
        %2973 = vmatpush2.msra.mxu0 0.0
        %2974 = vmatprep.subr.mxu0 0.0
        %2975 = vmatpush2.msra.mxu0 0.0
        %2976 = vmatprep.subr.mxu0 0.0
        %2977 = vmatpush2.msra.mxu0 %v2921
        %2978 = vmatprep.subr.mxu0 0.0
        %2979 = vmatpush2.msra.mxu0 %v2920
        %2980 = vmatprep.subr.mxu0 0.0
        %2981 = vmatpush2.msra.mxu0 %v2919
        %2982 = vmatprep.subr.mxu0 0.0
        %2983 = vmatpush2.msra.mxu0 %v2918
        %2984 = vmatprep.subr.mxu0 0.0
        %2985 = vmatpush2.msra.mxu0 %v2917
        %2986 = vmatprep.mubr.f32.mxu0 %v2725
        %2987 = vmatmul.mubr.f32.gmra.mxu0 %v2674
        %v2988 = vpop.f32.mrf.mxu0
        %v2989 = vadd.f32 0.0, %v2988
        %v2990 = vpop.f32.mrf.mxu0
        %2991 = vmatprep.mubr.f32.mxu0 %v2728
        %2992 = vmatmul.mubr.f32.gmra.mxu0 %v2676
        %v2993 = vpop.f32.mrf.mxu0
        %v2994 = vadd.f32 0.0, %v2993
        %v2995 = vpop.f32.mrf.mxu0
        %2996 = vmatprep.mubr.f32.mxu0 %v2731
        %2997 = vmatmul.mubr.f32.gmra.mxu0 %v2678
        %v2998 = vpop.f32.mrf.mxu0
        %v2999 = vadd.f32 0.0, %v2998
        %v3000 = vpop.f32.mrf.mxu0
        %3001 = vmatprep.mubr.f32.mxu0 %v2734
        %3002 = vmatmul.mubr.f32.gmra.mxu0 %v2680
        %v3003 = vpop.f32.mrf.mxu0
        %v3004 = vadd.f32 0.0, %v3003
        %v3005 = vpop.f32.mrf.mxu0
        %3006 = vmatprep.mubr.f32.mxu0 %v2737
        %3007 = vmatmul.mubr.f32.gmra.mxu0 %v2682
        %v3008 = vpop.f32.mrf.mxu0
        %v3009 = vadd.f32 0.0, %v3008
        %v3010 = vpop.f32.mrf.mxu0
        %3011 = vmatprep.mubr.f32.mxu0 %v2740
        %3012 = vmatmul.mubr.f32.gmra.mxu0 %v2684
        %v3013 = vpop.f32.mrf.mxu0
        %v3014 = vadd.f32 0.0, %v3013
        %v3015 = vpop.f32.mrf.mxu0
        %3016 = vmatprep.mubr.f32.mxu0 %v2743
        %3017 = vmatmul.mubr.f32.gmra.mxu0 %v2686
        %v3018 = vpop.f32.mrf.mxu0
        %v3019 = vadd.f32 0.0, %v3018
        %v3020 = vpop.f32.mrf.mxu0
        %3021 = vmatprep.mubr.f32.mxu0 %v2746
        %3022 = vmatmul.mubr.f32.gmra.mxu0 %v2688
        %v3023 = vpop.f32.mrf.mxu0
        %v3024 = vadd.f32 0.0, %v3023
        %v3025 = vpop.f32.mrf.mxu0
        %3026 = vmatprep.mubr.f32.mxu0 %v2749
        %3027 = vmatmul.mubr.f32.gmra.mxu0 %v2690
        %v3028 = vpop.f32.mrf.mxu0
        %v3029 = vadd.f32 0.0, %v3028
        %v3030 = vpop.f32.mrf.mxu0
        %3031 = vmatprep.mubr.f32.mxu0 %v2752
        %3032 = vmatmul.mubr.f32.gmra.mxu0 %v2692
        %v3033 = vpop.f32.mrf.mxu0
        %v3034 = vadd.f32 0.0, %v3033
        %v3035 = vpop.f32.mrf.mxu0
        %3036 = vmatprep.mubr.f32.mxu0 %v2755
        %3037 = vmatmul.mubr.f32.gmra.mxu0 %v2694
        %v3038 = vpop.f32.mrf.mxu0
        %v3039 = vadd.f32 0.0, %v3038
        %v3040 = vpop.f32.mrf.mxu0
        %3041 = vmatprep.mubr.f32.mxu0 %v2758
        %3042 = vmatmul.mubr.f32.gmra.mxu0 %v2696
        %v3043 = vpop.f32.mrf.mxu0
        %v3044 = vadd.f32 0.0, %v3043
        %v3045 = vpop.f32.mrf.mxu0
        %3046 = vmatprep.mubr.f32.mxu0 %v2761
        %3047 = vmatmul.mubr.f32.gmra.mxu0 %v2698
        %v3048 = vpop.f32.mrf.mxu0
        %v3049 = vadd.f32 0.0, %v3048
        %v3050 = vpop.f32.mrf.mxu0
        %3051 = vmatprep.mubr.f32.mxu0 %v2764
        %3052 = vmatmul.mubr.f32.gmra.mxu0 %v2700
        %v3053 = vpop.f32.mrf.mxu0
        %v3054 = vadd.f32 0.0, %v3053
        %v3055 = vpop.f32.mrf.mxu0
        %3056 = vdwg.mxu0
        %v3057 = vmax.f32 %v2833, %v2989
        %v3058 = vmax.f32 %v2838, %v2994
        %v3059 = vmax.f32 %v2843, %v2999
        %v3060 = vmax.f32 %v2848, %v3004
        %v3061 = vmax.f32 %v2853, %v3009
        %v3062 = vmax.f32 %v2858, %v3014
        %v3063 = vmax.f32 %v2863, %v3019
        %v3064 = vmax.f32 %v2868, %v3024
        %v3065 = vmax.f32 %v2873, %v3029
        %v3066 = vmax.f32 %v2878, %v3034
        %v3067 = vmax.f32 %v2883, %v3039
        %v3068 = vmax.f32 %v2888, %v3044
        %v3069 = vmax.f32 %v2893, %v3049
        %v3070 = vmax.f32 %v2898, %v3054
        %v3071 = vld [vmem:[%s7] sm:$0x1]
        %v3073 = vlaneseq
        %v3074 = vshrl.u32 %v3073, 7
        %v3075 = vsub.s32 0, %v3074
        %v3076 = vrot.slane %v3071, %v3075
        %v3078 = vadd.f32 %v3057, %v3076
        %v3079 = vadd.f32 %v3058, %v3076
        %v3080 = vadd.f32 %v3059, %v3076
        %v3081 = vadd.f32 %v3060, %v3076
        %v3082 = vadd.f32 %v3061, %v3076
        %v3083 = vadd.f32 %v3062, %v3076
        %v3084 = vadd.f32 %v3063, %v3076
        %v3085 = vadd.f32 %v3064, %v3076
        %v3086 = vadd.f32 %v3065, %v3076
        %v3087 = vadd.f32 %v3066, %v3076
        %v3088 = vadd.f32 %v3067, %v3076
        %v3089 = vadd.f32 %v3068, %v3076
        %v3090 = vadd.f32 %v3069, %v3076
        %v3091 = vadd.f32 %v3070, %v3076
        %v3092 = vmax.f32 %v3078, 0.0
        %v3093 = vmax.f32 %v3079, 0.0
        %v3094 = vmax.f32 %v3080, 0.0
        %v3095 = vmax.f32 %v3081, 0.0
        %v3096 = vmax.f32 %v3082, 0.0
        %v3097 = vmax.f32 %v3083, 0.0
        %v3098 = vmax.f32 %v3084, 0.0
        %v3099 = vmax.f32 %v3085, 0.0
        %v3100 = vmax.f32 %v3086, 0.0
        %v3101 = vmax.f32 %v3087, 0.0
        %v3102 = vmax.f32 %v3088, 0.0
        %v3103 = vmax.f32 %v3089, 0.0
        %v3104 = vmax.f32 %v3090, 0.0
        %v3105 = vmax.f32 %v3091, 0.0
        %v3106 = vld [vmem:[%s2] sm:$0xff]
        %v3107 = vld [vmem:[%s2 + $0x8] sm:$0xff]
        %v3108 = vld [vmem:[%s2 + $0x10] sm:$0xff]
        %v3109 = vld [vmem:[%s2 + $0x18] sm:$0xff]
        %v3110 = vld [vmem:[%s2 + $0x20] sm:$0xff]
        %v3111 = vld [vmem:[%s2 + $0x28] sm:$0xff]
        %v3112 = vld [vmem:[%s2 + $0x30] sm:$0xff]
        %v3113 = vld [vmem:[%s2 + $0x38] sm:$0xff]
        %v3114 = vld [vmem:[%s2 + $0x40] sm:$0xff]
        %v3115 = vld [vmem:[%s2 + $0x48] sm:$0xff]
        %v3116 = vld [vmem:[%s2 + $0x50] sm:$0xff]
        %v3117 = vld [vmem:[%s2 + $0x58] sm:$0xff]
        %v3118 = vld [vmem:[%s2 + $0x60] sm:$0xff]
        %v3119 = vld [vmem:[%s2 + $0x68] sm:$0xff]
        %v3120 = vld [vmem:[%s2 + $0x70] sm:$0xff]
        %v3121 = vld [vmem:[%s2 + $0x78] sm:$0xff]
        %v3122 = vld [vmem:[%s2 + $0x80] sm:$0xff]
        %v3123 = vld [vmem:[%s2 + $0x88] sm:$0xff]
        %v3124 = vld [vmem:[%s2 + $0x90] sm:$0xff]
        %v3125 = vld [vmem:[%s2 + $0x98] sm:$0xff]
        %v3126 = vld [vmem:[%s2 + $0xa0] sm:$0xf]
        %v3127 = vld [vmem:[%s2 + $0xa8] sm:$0xf]
        %s3128 = scalar_lea.vmem %s2, 176
        %v3129 = vld [vmem:[%s3128] sm:$0xff]
        %v3130 = vld [vmem:[%s3128 + $0x8] sm:$0xff]
        %v3131 = vld [vmem:[%s3128 + $0x10] sm:$0xff]
        %v3132 = vld [vmem:[%s3128 + $0x18] sm:$0xff]
        %v3133 = vld [vmem:[%s3128 + $0x20] sm:$0xff]
        %v3134 = vld [vmem:[%s3128 + $0x28] sm:$0xff]
        %v3135 = vld [vmem:[%s3128 + $0x30] sm:$0xff]
        %v3136 = vld [vmem:[%s3128 + $0x38] sm:$0xff]
        %v3137 = vld [vmem:[%s3128 + $0x40] sm:$0xff]
        %v3138 = vld [vmem:[%s3128 + $0x48] sm:$0xff]
        %v3139 = vld [vmem:[%s3128 + $0x50] sm:$0xff]
        %v3140 = vld [vmem:[%s3128 + $0x58] sm:$0xff]
        %v3141 = vld [vmem:[%s3128 + $0x60] sm:$0xff]
        %v3142 = vld [vmem:[%s3128 + $0x68] sm:$0xff]
        %v3143 = vld [vmem:[%s3128 + $0x70] sm:$0xff]
        %v3144 = vld [vmem:[%s3128 + $0x78] sm:$0xff]
        %v3145 = vld [vmem:[%s3128 + $0x80] sm:$0xff]
        %v3146 = vld [vmem:[%s3128 + $0x88] sm:$0xff]
        %v3147 = vld [vmem:[%s3128 + $0x90] sm:$0xff]
        %v3148 = vld [vmem:[%s3128 + $0x98] sm:$0xff]
        %v3149 = vld [vmem:[%s3128 + $0xa0] sm:$0xf]
        %v3150 = vld [vmem:[%s3128 + $0xa8] sm:$0xf]
        %vm3151 = vcmask 687104
        %v3153 = vsel %vm3151, %v3093, 0
        %v3156 = vsel %vm3151, %v3094, 0
        %v3159 = vsel %vm3151, %v3095, 0
        %v3162 = vsel %vm3151, %v3096, 0
        %v3165 = vsel %vm3151, %v3097, 0
        %v3168 = vsel %vm3151, %v3098, 0
        %v3171 = vsel %vm3151, %v3099, 0
        %v3174 = vsel %vm3151, %v3100, 0
        %v3177 = vsel %vm3151, %v3101, 0
        %v3180 = vsel %vm3151, %v3102, 0
        %vm3182 = vcmask 1043456
        %v3184 = vsel %vm3182, %v3149, 0
        %v3187 = vsel %vm3182, %v3150, 0
        %3189 = vmatprep.subr.mxu0 0.0
        %3190 = vmatpush1.msra.mxu0 0.0
        %3191 = vmatprep.subr.mxu0 0.0
        %3192 = vmatpush1.msra.mxu0 0.0
        %3193 = vmatprep.subr.mxu0 0.0
        %3194 = vmatpush1.msra.mxu0 0.0
        %3195 = vmatprep.subr.mxu0 0.0
        %3196 = vmatpush1.msra.mxu0 0.0
        %3197 = vmatprep.subr.mxu0 0.0
        %3198 = vmatpush1.msra.mxu0 0.0
        %3199 = vmatprep.subr.mxu0 %v3187
        %3200 = vmatpush1.msra.mxu0 %v3184
        %3201 = vmatprep.subr.mxu0 %v3148
        %3202 = vmatpush1.msra.mxu0 %v3147
        %3203 = vmatprep.subr.mxu0 %v3146
        %3204 = vmatpush1.msra.mxu0 %v3145
        %3205 = vmatprep.subr.mxu0 %v3144
        %3206 = vmatpush1.msra.mxu0 %v3143
        %3207 = vmatprep.subr.mxu0 %v3142
        %3208 = vmatpush1.msra.mxu0 %v3141
        %3209 = vmatprep.subr.mxu0 %v3140
        %3210 = vmatpush1.msra.mxu0 %v3139
        %3211 = vmatprep.subr.mxu0 %v3138
        %3212 = vmatpush1.msra.mxu0 %v3137
        %3213 = vmatprep.subr.mxu0 %v3136
        %3214 = vmatpush1.msra.mxu0 %v3135
        %3215 = vmatprep.subr.mxu0 %v3134
        %3216 = vmatpush1.msra.mxu0 %v3133
        %3217 = vmatprep.subr.mxu0 %v3132
        %3218 = vmatpush1.msra.mxu0 %v3131
        %3219 = vmatprep.subr.mxu0 %v3130
        %3220 = vmatpush1.msra.mxu0 %v3129
        %3221 = vmatprep.subr.mxu0 0.0
        %3222 = vmatpush2.msra.mxu0 0.0
        %3223 = vmatprep.subr.mxu0 0.0
        %3224 = vmatpush2.msra.mxu0 0.0
        %3225 = vmatprep.subr.mxu0 0.0
        %3226 = vmatpush2.msra.mxu0 0.0
        %3227 = vmatprep.subr.mxu0 0.0
        %3228 = vmatpush2.msra.mxu0 0.0
        %3229 = vmatprep.subr.mxu0 0.0
        %3230 = vmatpush2.msra.mxu0 0.0
        %3231 = vmatprep.subr.mxu0 0.0
        %3232 = vmatpush2.msra.mxu0 0.0
        %3233 = vmatprep.subr.mxu0 0.0
        %3234 = vmatpush2.msra.mxu0 0.0
        %3235 = vmatprep.subr.mxu0 0.0
        %3236 = vmatpush2.msra.mxu0 0.0
        %3237 = vmatprep.subr.mxu0 0.0
        %3238 = vmatpush2.msra.mxu0 0.0
        %3239 = vmatprep.subr.mxu0 0.0
        %3240 = vmatpush2.msra.mxu0 0.0
        %3241 = vmatprep.subr.mxu0 0.0
        %3242 = vmatpush2.msra.mxu0 0.0
        %3243 = vmatprep.subr.mxu0 0.0
        %3244 = vmatpush2.msra.mxu0 0.0
        %3245 = vmatprep.subr.mxu0 0.0
        %3246 = vmatpush2.msra.mxu0 0.0
        %3247 = vmatprep.subr.mxu0 0.0
        %3248 = vmatpush2.msra.mxu0 0.0
        %3249 = vmatprep.subr.mxu0 0.0
        %3250 = vmatpush2.msra.mxu0 0.0
        %3251 = vmatprep.subr.mxu0 0.0
        %3252 = vmatpush2.msra.mxu0 0.0
        %3253 = vmatprep.mubr.f32.mxu0 0.0
        %3254 = vmatmul.mubr.f32.gmra.mxu0 %v3153
        %v3255 = vpop.f32.mrf.mxu0
        %v3256 = vadd.f32 0.0, %v3255
        %v3257 = vpop.f32.mrf.mxu0
        %v3258 = vadd.f32 0.0, %v3257
        %3259 = vmatprep.mubr.f32.mxu0 0.0
        %3260 = vmatmul.mubr.f32.gmra.mxu0 %v3156
        %v3261 = vpop.f32.mrf.mxu0
        %v3262 = vadd.f32 0.0, %v3261
        %v3263 = vpop.f32.mrf.mxu0
        %v3264 = vadd.f32 0.0, %v3263
        %3265 = vmatprep.mubr.f32.mxu0 0.0
        %3266 = vmatmul.mubr.f32.gmra.mxu0 %v3159
        %v3267 = vpop.f32.mrf.mxu0
        %v3268 = vadd.f32 0.0, %v3267
        %v3269 = vpop.f32.mrf.mxu0
        %v3270 = vadd.f32 0.0, %v3269
        %3271 = vmatprep.mubr.f32.mxu0 0.0
        %3272 = vmatmul.mubr.f32.gmra.mxu0 %v3162
        %v3273 = vpop.f32.mrf.mxu0
        %v3274 = vadd.f32 0.0, %v3273
        %v3275 = vpop.f32.mrf.mxu0
        %v3276 = vadd.f32 0.0, %v3275
        %3277 = vmatprep.mubr.f32.mxu0 0.0
        %3278 = vmatmul.mubr.f32.gmra.mxu0 %v3165
        %v3279 = vpop.f32.mrf.mxu0
        %v3280 = vadd.f32 0.0, %v3279
        %v3281 = vpop.f32.mrf.mxu0
        %v3282 = vadd.f32 0.0, %v3281
        %3283 = vmatprep.mubr.f32.mxu0 0.0
        %3284 = vmatmul.mubr.f32.gmra.mxu0 %v3168
        %v3285 = vpop.f32.mrf.mxu0
        %v3286 = vadd.f32 0.0, %v3285
        %v3287 = vpop.f32.mrf.mxu0
        %v3288 = vadd.f32 0.0, %v3287
        %3289 = vmatprep.mubr.f32.mxu0 0.0
        %3290 = vmatmul.mubr.f32.gmra.mxu0 %v3171
        %v3291 = vpop.f32.mrf.mxu0
        %v3292 = vadd.f32 0.0, %v3291
        %v3293 = vpop.f32.mrf.mxu0
        %v3294 = vadd.f32 0.0, %v3293
        %3295 = vmatprep.mubr.f32.mxu0 0.0
        %3296 = vmatmul.mubr.f32.gmra.mxu0 %v3174
        %v3297 = vpop.f32.mrf.mxu0
        %v3298 = vadd.f32 0.0, %v3297
        %v3299 = vpop.f32.mrf.mxu0
        %v3300 = vadd.f32 0.0, %v3299
        %3301 = vmatprep.mubr.f32.mxu0 0.0
        %3302 = vmatmul.mubr.f32.gmra.mxu0 %v3177
        %v3303 = vpop.f32.mrf.mxu0
        %v3304 = vadd.f32 0.0, %v3303
        %v3305 = vpop.f32.mrf.mxu0
        %v3306 = vadd.f32 0.0, %v3305
        %3307 = vmatprep.mubr.f32.mxu0 0.0
        %3308 = vmatmul.mubr.f32.gmra.mxu0 %v3180
        %v3309 = vpop.f32.mrf.mxu0
        %v3310 = vadd.f32 0.0, %v3309
        %v3311 = vpop.f32.mrf.mxu0
        %v3312 = vadd.f32 0.0, %v3311
        %3313 = vdwg.mxu0
        %v3315 = vsel %vm3151, %v3092, 0
        %v3318 = vsel %vm3182, %v3126, 0
        %v3321 = vsel %vm3182, %v3127, 0
        %3323 = vmatprep.subr.mxu0 0.0
        %3324 = vmatpush1.msra.mxu0 0.0
        %3325 = vmatprep.subr.mxu0 0.0
        %3326 = vmatpush1.msra.mxu0 0.0
        %3327 = vmatprep.subr.mxu0 0.0
        %3328 = vmatpush1.msra.mxu0 0.0
        %3329 = vmatprep.subr.mxu0 0.0
        %3330 = vmatpush1.msra.mxu0 0.0
        %3331 = vmatprep.subr.mxu0 0.0
        %3332 = vmatpush1.msra.mxu0 0.0
        %3333 = vmatprep.subr.mxu0 %v3321
        %3334 = vmatpush1.msra.mxu0 %v3318
        %3335 = vmatprep.subr.mxu0 %v3125
        %3336 = vmatpush1.msra.mxu0 %v3124
        %3337 = vmatprep.subr.mxu0 %v3123
        %3338 = vmatpush1.msra.mxu0 %v3122
        %3339 = vmatprep.subr.mxu0 %v3121
        %3340 = vmatpush1.msra.mxu0 %v3120
        %3341 = vmatprep.subr.mxu0 %v3119
        %3342 = vmatpush1.msra.mxu0 %v3118
        %3343 = vmatprep.subr.mxu0 %v3117
        %3344 = vmatpush1.msra.mxu0 %v3116
        %3345 = vmatprep.subr.mxu0 %v3115
        %3346 = vmatpush1.msra.mxu0 %v3114
        %3347 = vmatprep.subr.mxu0 %v3113
        %3348 = vmatpush1.msra.mxu0 %v3112
        %3349 = vmatprep.subr.mxu0 %v3111
        %3350 = vmatpush1.msra.mxu0 %v3110
        %3351 = vmatprep.subr.mxu0 %v3109
        %3352 = vmatpush1.msra.mxu0 %v3108
        %3353 = vmatprep.subr.mxu0 %v3107
        %3354 = vmatpush1.msra.mxu0 %v3106
        %3355 = vmatprep.subr.mxu0 0.0
        %3356 = vmatpush2.msra.mxu0 0.0
        %3357 = vmatprep.subr.mxu0 0.0
        %3358 = vmatpush2.msra.mxu0 0.0
        %3359 = vmatprep.subr.mxu0 0.0
        %3360 = vmatpush2.msra.mxu0 0.0
        %3361 = vmatprep.subr.mxu0 0.0
        %3362 = vmatpush2.msra.mxu0 0.0
        %3363 = vmatprep.subr.mxu0 0.0
        %3364 = vmatpush2.msra.mxu0 0.0
        %3365 = vmatprep.subr.mxu0 0.0
        %3366 = vmatpush2.msra.mxu0 0.0
        %3367 = vmatprep.subr.mxu0 0.0
        %3368 = vmatpush2.msra.mxu0 0.0
        %3369 = vmatprep.subr.mxu0 0.0
        %3370 = vmatpush2.msra.mxu0 0.0
        %3371 = vmatprep.subr.mxu0 0.0
        %3372 = vmatpush2.msra.mxu0 0.0
        %3373 = vmatprep.subr.mxu0 0.0
        %3374 = vmatpush2.msra.mxu0 0.0
        %3375 = vmatprep.subr.mxu0 0.0
        %3376 = vmatpush2.msra.mxu0 0.0
        %3377 = vmatprep.subr.mxu0 0.0
        %3378 = vmatpush2.msra.mxu0 0.0
        %3379 = vmatprep.subr.mxu0 0.0
        %3380 = vmatpush2.msra.mxu0 0.0
        %3381 = vmatprep.subr.mxu0 0.0
        %3382 = vmatpush2.msra.mxu0 0.0
        %3383 = vmatprep.subr.mxu0 0.0
        %3384 = vmatpush2.msra.mxu0 0.0
        %3385 = vmatprep.subr.mxu0 0.0
        %3386 = vmatpush2.msra.mxu0 0.0
        %3387 = vmatprep.mubr.f32.mxu0 0.0
        %3388 = vmatmul.mubr.f32.gmra.mxu0 %v3315
        %v3389 = vpop.f32.mrf.mxu0
        %v3390 = vadd.f32 %v3256, %v3389
        %v3391 = vpop.f32.mrf.mxu0
        %v3392 = vadd.f32 %v3258, %v3391
        %3393 = vmatprep.mubr.f32.mxu0 0.0
        %3394 = vmatmul.mubr.f32.gmra.mxu0 %v3153
        %v3395 = vpop.f32.mrf.mxu0
        %v3396 = vadd.f32 %v3262, %v3395
        %v3397 = vpop.f32.mrf.mxu0
        %v3398 = vadd.f32 %v3264, %v3397
        %3399 = vmatprep.mubr.f32.mxu0 0.0
        %3400 = vmatmul.mubr.f32.gmra.mxu0 %v3156
        %v3401 = vpop.f32.mrf.mxu0
        %v3402 = vadd.f32 %v3268, %v3401
        %v3403 = vpop.f32.mrf.mxu0
        %v3404 = vadd.f32 %v3270, %v3403
        %3405 = vmatprep.mubr.f32.mxu0 0.0
        %3406 = vmatmul.mubr.f32.gmra.mxu0 %v3159
        %v3407 = vpop.f32.mrf.mxu0
        %v3408 = vadd.f32 %v3274, %v3407
        %v3409 = vpop.f32.mrf.mxu0
        %v3410 = vadd.f32 %v3276, %v3409
        %3411 = vmatprep.mubr.f32.mxu0 0.0
        %3412 = vmatmul.mubr.f32.gmra.mxu0 %v3162
        %v3413 = vpop.f32.mrf.mxu0
        %v3414 = vadd.f32 %v3280, %v3413
        %v3415 = vpop.f32.mrf.mxu0
        %v3416 = vadd.f32 %v3282, %v3415
        %3417 = vmatprep.mubr.f32.mxu0 0.0
        %3418 = vmatmul.mubr.f32.gmra.mxu0 %v3165
        %v3419 = vpop.f32.mrf.mxu0
        %v3420 = vadd.f32 %v3286, %v3419
        %v3421 = vpop.f32.mrf.mxu0
        %v3422 = vadd.f32 %v3288, %v3421
        %3423 = vmatprep.mubr.f32.mxu0 0.0
        %3424 = vmatmul.mubr.f32.gmra.mxu0 %v3168
        %v3425 = vpop.f32.mrf.mxu0
        %v3426 = vadd.f32 %v3292, %v3425
        %v3427 = vpop.f32.mrf.mxu0
        %v3428 = vadd.f32 %v3294, %v3427
        %3429 = vmatprep.mubr.f32.mxu0 0.0
        %3430 = vmatmul.mubr.f32.gmra.mxu0 %v3171
        %v3431 = vpop.f32.mrf.mxu0
        %v3432 = vadd.f32 %v3298, %v3431
        %v3433 = vpop.f32.mrf.mxu0
        %v3434 = vadd.f32 %v3300, %v3433
        %3435 = vmatprep.mubr.f32.mxu0 0.0
        %3436 = vmatmul.mubr.f32.gmra.mxu0 %v3174
        %v3437 = vpop.f32.mrf.mxu0
        %v3438 = vadd.f32 %v3304, %v3437
        %v3439 = vpop.f32.mrf.mxu0
        %v3440 = vadd.f32 %v3306, %v3439
        %3441 = vmatprep.mubr.f32.mxu0 0.0
        %3442 = vmatmul.mubr.f32.gmra.mxu0 %v3177
        %v3443 = vpop.f32.mrf.mxu0
        %v3444 = vadd.f32 %v3310, %v3443
        %v3445 = vpop.f32.mrf.mxu0
        %v3446 = vadd.f32 %v3312, %v3445
        %3447 = vdwg.mxu0
        %s3448 = scalar_lea.vmem %s2, 352
        %v3449 = vld [vmem:[%s3448] sm:$0xff]
        %v3450 = vld [vmem:[%s3448 + $0x8] sm:$0xff]
        %v3451 = vld [vmem:[%s3448 + $0x10] sm:$0xff]
        %v3452 = vld [vmem:[%s3448 + $0x18] sm:$0xff]
        %v3453 = vld [vmem:[%s3448 + $0x20] sm:$0xff]
        %v3454 = vld [vmem:[%s3448 + $0x28] sm:$0xff]
        %v3455 = vld [vmem:[%s3448 + $0x30] sm:$0xff]
        %v3456 = vld [vmem:[%s3448 + $0x38] sm:$0xff]
        %v3457 = vld [vmem:[%s3448 + $0x40] sm:$0xff]
        %v3458 = vld [vmem:[%s3448 + $0x48] sm:$0xff]
        %v3459 = vld [vmem:[%s3448 + $0x50] sm:$0xff]
        %v3460 = vld [vmem:[%s3448 + $0x58] sm:$0xff]
        %v3461 = vld [vmem:[%s3448 + $0x60] sm:$0xff]
        %v3462 = vld [vmem:[%s3448 + $0x68] sm:$0xff]
        %v3463 = vld [vmem:[%s3448 + $0x70] sm:$0xff]
        %v3464 = vld [vmem:[%s3448 + $0x78] sm:$0xff]
        %v3465 = vld [vmem:[%s3448 + $0x80] sm:$0xff]
        %v3466 = vld [vmem:[%s3448 + $0x88] sm:$0xff]
        %v3467 = vld [vmem:[%s3448 + $0x90] sm:$0xff]
        %v3468 = vld [vmem:[%s3448 + $0x98] sm:$0xff]
        %v3469 = vld [vmem:[%s3448 + $0xa0] sm:$0xf]
        %v3470 = vld [vmem:[%s3448 + $0xa8] sm:$0xf]
        %v3472 = vsel %vm3151, %v3103, 0
        %v3475 = vsel %vm3182, %v3469, 0
        %v3478 = vsel %vm3182, %v3470, 0
        %3480 = vmatprep.subr.mxu0 0.0
        %3481 = vmatpush1.msra.mxu0 0.0
        %3482 = vmatprep.subr.mxu0 0.0
        %3483 = vmatpush1.msra.mxu0 0.0
        %3484 = vmatprep.subr.mxu0 0.0
        %3485 = vmatpush1.msra.mxu0 0.0
        %3486 = vmatprep.subr.mxu0 0.0
        %3487 = vmatpush1.msra.mxu0 0.0
        %3488 = vmatprep.subr.mxu0 0.0
        %3489 = vmatpush1.msra.mxu0 0.0
        %3490 = vmatprep.subr.mxu0 %v3478
        %3491 = vmatpush1.msra.mxu0 %v3475
        %3492 = vmatprep.subr.mxu0 %v3468
        %3493 = vmatpush1.msra.mxu0 %v3467
        %3494 = vmatprep.subr.mxu0 %v3466
        %3495 = vmatpush1.msra.mxu0 %v3465
        %3496 = vmatprep.subr.mxu0 %v3464
        %3497 = vmatpush1.msra.mxu0 %v3463
        %3498 = vmatprep.subr.mxu0 %v3462
        %3499 = vmatpush1.msra.mxu0 %v3461
        %3500 = vmatprep.subr.mxu0 %v3460
        %3501 = vmatpush1.msra.mxu0 %v3459
        %3502 = vmatprep.subr.mxu0 %v3458
        %3503 = vmatpush1.msra.mxu0 %v3457
        %3504 = vmatprep.subr.mxu0 %v3456
        %3505 = vmatpush1.msra.mxu0 %v3455
        %3506 = vmatprep.subr.mxu0 %v3454
        %3507 = vmatpush1.msra.mxu0 %v3453
        %3508 = vmatprep.subr.mxu0 %v3452
        %3509 = vmatpush1.msra.mxu0 %v3451
        %3510 = vmatprep.subr.mxu0 %v3450
        %3511 = vmatpush1.msra.mxu0 %v3449
        %3512 = vmatprep.subr.mxu0 0.0
        %3513 = vmatpush2.msra.mxu0 0.0
        %3514 = vmatprep.subr.mxu0 0.0
        %3515 = vmatpush2.msra.mxu0 0.0
        %3516 = vmatprep.subr.mxu0 0.0
        %3517 = vmatpush2.msra.mxu0 0.0
        %3518 = vmatprep.subr.mxu0 0.0
        %3519 = vmatpush2.msra.mxu0 0.0
        %3520 = vmatprep.subr.mxu0 0.0
        %3521 = vmatpush2.msra.mxu0 0.0
        %3522 = vmatprep.subr.mxu0 0.0
        %3523 = vmatpush2.msra.mxu0 0.0
        %3524 = vmatprep.subr.mxu0 0.0
        %3525 = vmatpush2.msra.mxu0 0.0
        %3526 = vmatprep.subr.mxu0 0.0
        %3527 = vmatpush2.msra.mxu0 0.0
        %3528 = vmatprep.subr.mxu0 0.0
        %3529 = vmatpush2.msra.mxu0 0.0
        %3530 = vmatprep.subr.mxu0 0.0
        %3531 = vmatpush2.msra.mxu0 0.0
        %3532 = vmatprep.subr.mxu0 0.0
        %3533 = vmatpush2.msra.mxu0 0.0
        %3534 = vmatprep.subr.mxu0 0.0
        %3535 = vmatpush2.msra.mxu0 0.0
        %3536 = vmatprep.subr.mxu0 0.0
        %3537 = vmatpush2.msra.mxu0 0.0
        %3538 = vmatprep.subr.mxu0 0.0
        %3539 = vmatpush2.msra.mxu0 0.0
        %3540 = vmatprep.subr.mxu0 0.0
        %3541 = vmatpush2.msra.mxu0 0.0
        %3542 = vmatprep.subr.mxu0 0.0
        %3543 = vmatpush2.msra.mxu0 0.0
        %3544 = vmatprep.mubr.f32.mxu0 0.0
        %3545 = vmatmul.mubr.f32.gmra.mxu0 %v3156
        %v3546 = vpop.f32.mrf.mxu0
        %v3547 = vadd.f32 0.0, %v3546
        %v3548 = vpop.f32.mrf.mxu0
        %v3549 = vadd.f32 0.0, %v3548
        %3550 = vmatprep.mubr.f32.mxu0 0.0
        %3551 = vmatmul.mubr.f32.gmra.mxu0 %v3159
        %v3552 = vpop.f32.mrf.mxu0
        %v3553 = vadd.f32 0.0, %v3552
        %v3554 = vpop.f32.mrf.mxu0
        %v3555 = vadd.f32 0.0, %v3554
        %3556 = vmatprep.mubr.f32.mxu0 0.0
        %3557 = vmatmul.mubr.f32.gmra.mxu0 %v3162
        %v3558 = vpop.f32.mrf.mxu0
        %v3559 = vadd.f32 0.0, %v3558
        %v3560 = vpop.f32.mrf.mxu0
        %v3561 = vadd.f32 0.0, %v3560
        %3562 = vmatprep.mubr.f32.mxu0 0.0
        %3563 = vmatmul.mubr.f32.gmra.mxu0 %v3165
        %v3564 = vpop.f32.mrf.mxu0
        %v3565 = vadd.f32 0.0, %v3564
        %v3566 = vpop.f32.mrf.mxu0
        %v3567 = vadd.f32 0.0, %v3566
        %3568 = vmatprep.mubr.f32.mxu0 0.0
        %3569 = vmatmul.mubr.f32.gmra.mxu0 %v3168
        %v3570 = vpop.f32.mrf.mxu0
        %v3571 = vadd.f32 0.0, %v3570
        %v3572 = vpop.f32.mrf.mxu0
        %v3573 = vadd.f32 0.0, %v3572
        %3574 = vmatprep.mubr.f32.mxu0 0.0
        %3575 = vmatmul.mubr.f32.gmra.mxu0 %v3171
        %v3576 = vpop.f32.mrf.mxu0
        %v3577 = vadd.f32 0.0, %v3576
        %v3578 = vpop.f32.mrf.mxu0
        %v3579 = vadd.f32 0.0, %v3578
        %3580 = vmatprep.mubr.f32.mxu0 0.0
        %3581 = vmatmul.mubr.f32.gmra.mxu0 %v3174
        %v3582 = vpop.f32.mrf.mxu0
        %v3583 = vadd.f32 0.0, %v3582
        %v3584 = vpop.f32.mrf.mxu0
        %v3585 = vadd.f32 0.0, %v3584
        %3586 = vmatprep.mubr.f32.mxu0 0.0
        %3587 = vmatmul.mubr.f32.gmra.mxu0 %v3177
        %v3588 = vpop.f32.mrf.mxu0
        %v3589 = vadd.f32 0.0, %v3588
        %v3590 = vpop.f32.mrf.mxu0
        %v3591 = vadd.f32 0.0, %v3590
        %3592 = vmatprep.mubr.f32.mxu0 0.0
        %3593 = vmatmul.mubr.f32.gmra.mxu0 %v3180
        %v3594 = vpop.f32.mrf.mxu0
        %v3595 = vadd.f32 0.0, %v3594
        %v3596 = vpop.f32.mrf.mxu0
        %v3597 = vadd.f32 0.0, %v3596
        %3598 = vmatprep.mubr.f32.mxu0 0.0
        %3599 = vmatmul.mubr.f32.gmra.mxu0 %v3472
        %v3600 = vpop.f32.mrf.mxu0
        %v3601 = vadd.f32 0.0, %v3600
        %v3602 = vpop.f32.mrf.mxu0
        %v3603 = vadd.f32 0.0, %v3602
        %3604 = vdwg.mxu0
        %v3605 = vadd.f32 %v3390, %v3547
        %v3606 = vadd.f32 %v3392, %v3549
        %v3607 = vadd.f32 %v3396, %v3553
        %v3608 = vadd.f32 %v3398, %v3555
        %v3609 = vadd.f32 %v3402, %v3559
        %v3610 = vadd.f32 %v3404, %v3561
        %v3611 = vadd.f32 %v3408, %v3565
        %v3612 = vadd.f32 %v3410, %v3567
        %v3613 = vadd.f32 %v3414, %v3571
        %v3614 = vadd.f32 %v3416, %v3573
        %v3615 = vadd.f32 %v3420, %v3577
        %v3616 = vadd.f32 %v3422, %v3579
        %v3617 = vadd.f32 %v3426, %v3583
        %v3618 = vadd.f32 %v3428, %v3585
        %v3619 = vadd.f32 %v3432, %v3589
        %v3620 = vadd.f32 %v3434, %v3591
        %v3621 = vadd.f32 %v3438, %v3595
        %v3622 = vadd.f32 %v3440, %v3597
        %v3623 = vadd.f32 %v3444, %v3601
        %v3624 = vadd.f32 %v3446, %v3603
        %s3625 = scalar_lea.vmem %s2, 528
        %v3626 = vld [vmem:[%s3625] sm:$0xff]
        %v3627 = vld [vmem:[%s3625 + $0x8] sm:$0xff]
        %v3628 = vld [vmem:[%s3625 + $0x10] sm:$0xff]
        %v3629 = vld [vmem:[%s3625 + $0x18] sm:$0xff]
        %v3630 = vld [vmem:[%s3625 + $0x20] sm:$0xff]
        %v3631 = vld [vmem:[%s3625 + $0x28] sm:$0xff]
        %v3632 = vld [vmem:[%s3625 + $0x30] sm:$0xff]
        %v3633 = vld [vmem:[%s3625 + $0x38] sm:$0xff]
        %v3634 = vld [vmem:[%s3625 + $0x40] sm:$0xff]
        %v3635 = vld [vmem:[%s3625 + $0x48] sm:$0xff]
        %v3636 = vld [vmem:[%s3625 + $0x50] sm:$0xff]
        %v3637 = vld [vmem:[%s3625 + $0x58] sm:$0xff]
        %v3638 = vld [vmem:[%s3625 + $0x60] sm:$0xff]
        %v3639 = vld [vmem:[%s3625 + $0x68] sm:$0xff]
        %v3640 = vld [vmem:[%s3625 + $0x70] sm:$0xff]
        %v3641 = vld [vmem:[%s3625 + $0x78] sm:$0xff]
        %v3642 = vld [vmem:[%s3625 + $0x80] sm:$0xff]
        %v3643 = vld [vmem:[%s3625 + $0x88] sm:$0xff]
        %v3644 = vld [vmem:[%s3625 + $0x90] sm:$0xff]
        %v3645 = vld [vmem:[%s3625 + $0x98] sm:$0xff]
        %v3646 = vld [vmem:[%s3625 + $0xa0] sm:$0xf]
        %v3647 = vld [vmem:[%s3625 + $0xa8] sm:$0xf]
        %v3649 = vsel %vm3151, %v3104, 0
        %v3652 = vsel %vm3182, %v3646, 0
        %v3655 = vsel %vm3182, %v3647, 0
        %3657 = vmatprep.subr.mxu0 0.0
        %3658 = vmatpush1.msra.mxu0 0.0
        %3659 = vmatprep.subr.mxu0 0.0
        %3660 = vmatpush1.msra.mxu0 0.0
        %3661 = vmatprep.subr.mxu0 0.0
        %3662 = vmatpush1.msra.mxu0 0.0
        %3663 = vmatprep.subr.mxu0 0.0
        %3664 = vmatpush1.msra.mxu0 0.0
        %3665 = vmatprep.subr.mxu0 0.0
        %3666 = vmatpush1.msra.mxu0 0.0
        %3667 = vmatprep.subr.mxu0 %v3655
        %3668 = vmatpush1.msra.mxu0 %v3652
        %3669 = vmatprep.subr.mxu0 %v3645
        %3670 = vmatpush1.msra.mxu0 %v3644
        %3671 = vmatprep.subr.mxu0 %v3643
        %3672 = vmatpush1.msra.mxu0 %v3642
        %3673 = vmatprep.subr.mxu0 %v3641
        %3674 = vmatpush1.msra.mxu0 %v3640
        %3675 = vmatprep.subr.mxu0 %v3639
        %3676 = vmatpush1.msra.mxu0 %v3638
        %3677 = vmatprep.subr.mxu0 %v3637
        %3678 = vmatpush1.msra.mxu0 %v3636
        %3679 = vmatprep.subr.mxu0 %v3635
        %3680 = vmatpush1.msra.mxu0 %v3634
        %3681 = vmatprep.subr.mxu0 %v3633
        %3682 = vmatpush1.msra.mxu0 %v3632
        %3683 = vmatprep.subr.mxu0 %v3631
        %3684 = vmatpush1.msra.mxu0 %v3630
        %3685 = vmatprep.subr.mxu0 %v3629
        %3686 = vmatpush1.msra.mxu0 %v3628
        %3687 = vmatprep.subr.mxu0 %v3627
        %3688 = vmatpush1.msra.mxu0 %v3626
        %3689 = vmatprep.subr.mxu0 0.0
        %3690 = vmatpush2.msra.mxu0 0.0
        %3691 = vmatprep.subr.mxu0 0.0
        %3692 = vmatpush2.msra.mxu0 0.0
        %3693 = vmatprep.subr.mxu0 0.0
        %3694 = vmatpush2.msra.mxu0 0.0
        %3695 = vmatprep.subr.mxu0 0.0
        %3696 = vmatpush2.msra.mxu0 0.0
        %3697 = vmatprep.subr.mxu0 0.0
        %3698 = vmatpush2.msra.mxu0 0.0
        %3699 = vmatprep.subr.mxu0 0.0
        %3700 = vmatpush2.msra.mxu0 0.0
        %3701 = vmatprep.subr.mxu0 0.0
        %3702 = vmatpush2.msra.mxu0 0.0
        %3703 = vmatprep.subr.mxu0 0.0
        %3704 = vmatpush2.msra.mxu0 0.0
        %3705 = vmatprep.subr.mxu0 0.0
        %3706 = vmatpush2.msra.mxu0 0.0
        %3707 = vmatprep.subr.mxu0 0.0
        %3708 = vmatpush2.msra.mxu0 0.0
        %3709 = vmatprep.subr.mxu0 0.0
        %3710 = vmatpush2.msra.mxu0 0.0
        %3711 = vmatprep.subr.mxu0 0.0
        %3712 = vmatpush2.msra.mxu0 0.0
        %3713 = vmatprep.subr.mxu0 0.0
        %3714 = vmatpush2.msra.mxu0 0.0
        %3715 = vmatprep.subr.mxu0 0.0
        %3716 = vmatpush2.msra.mxu0 0.0
        %3717 = vmatprep.subr.mxu0 0.0
        %3718 = vmatpush2.msra.mxu0 0.0
        %3719 = vmatprep.subr.mxu0 0.0
        %3720 = vmatpush2.msra.mxu0 0.0
        %3721 = vmatprep.mubr.f32.mxu0 0.0
        %3722 = vmatmul.mubr.f32.gmra.mxu0 %v3159
        %v3723 = vpop.f32.mrf.mxu0
        %v3724 = vadd.f32 0.0, %v3723
        %v3725 = vpop.f32.mrf.mxu0
        %v3726 = vadd.f32 0.0, %v3725
        %3727 = vmatprep.mubr.f32.mxu0 0.0
        %3728 = vmatmul.mubr.f32.gmra.mxu0 %v3162
        %v3729 = vpop.f32.mrf.mxu0
        %v3730 = vadd.f32 0.0, %v3729
        %v3731 = vpop.f32.mrf.mxu0
        %v3732 = vadd.f32 0.0, %v3731
        %3733 = vmatprep.mubr.f32.mxu0 0.0
        %3734 = vmatmul.mubr.f32.gmra.mxu0 %v3165
        %v3735 = vpop.f32.mrf.mxu0
        %v3736 = vadd.f32 0.0, %v3735
        %v3737 = vpop.f32.mrf.mxu0
        %v3738 = vadd.f32 0.0, %v3737
        %3739 = vmatprep.mubr.f32.mxu0 0.0
        %3740 = vmatmul.mubr.f32.gmra.mxu0 %v3168
        %v3741 = vpop.f32.mrf.mxu0
        %v3742 = vadd.f32 0.0, %v3741
        %v3743 = vpop.f32.mrf.mxu0
        %v3744 = vadd.f32 0.0, %v3743
        %3745 = vmatprep.mubr.f32.mxu0 0.0
        %3746 = vmatmul.mubr.f32.gmra.mxu0 %v3171
        %v3747 = vpop.f32.mrf.mxu0
        %v3748 = vadd.f32 0.0, %v3747
        %v3749 = vpop.f32.mrf.mxu0
        %v3750 = vadd.f32 0.0, %v3749
        %3751 = vmatprep.mubr.f32.mxu0 0.0
        %3752 = vmatmul.mubr.f32.gmra.mxu0 %v3174
        %v3753 = vpop.f32.mrf.mxu0
        %v3754 = vadd.f32 0.0, %v3753
        %v3755 = vpop.f32.mrf.mxu0
        %v3756 = vadd.f32 0.0, %v3755
        %3757 = vmatprep.mubr.f32.mxu0 0.0
        %3758 = vmatmul.mubr.f32.gmra.mxu0 %v3177
        %v3759 = vpop.f32.mrf.mxu0
        %v3760 = vadd.f32 0.0, %v3759
        %v3761 = vpop.f32.mrf.mxu0
        %v3762 = vadd.f32 0.0, %v3761
        %3763 = vmatprep.mubr.f32.mxu0 0.0
        %3764 = vmatmul.mubr.f32.gmra.mxu0 %v3180
        %v3765 = vpop.f32.mrf.mxu0
        %v3766 = vadd.f32 0.0, %v3765
        %v3767 = vpop.f32.mrf.mxu0
        %v3768 = vadd.f32 0.0, %v3767
        %3769 = vmatprep.mubr.f32.mxu0 0.0
        %3770 = vmatmul.mubr.f32.gmra.mxu0 %v3472
        %v3771 = vpop.f32.mrf.mxu0
        %v3772 = vadd.f32 0.0, %v3771
        %v3773 = vpop.f32.mrf.mxu0
        %v3774 = vadd.f32 0.0, %v3773
        %3775 = vmatprep.mubr.f32.mxu0 0.0
        %3776 = vmatmul.mubr.f32.gmra.mxu0 %v3649
        %v3777 = vpop.f32.mrf.mxu0
        %v3778 = vadd.f32 0.0, %v3777
        %v3779 = vpop.f32.mrf.mxu0
        %v3780 = vadd.f32 0.0, %v3779
        %3781 = vdwg.mxu0
        %v3782 = vadd.f32 %v3605, %v3724
        %v3783 = vadd.f32 %v3606, %v3726
        %v3784 = vadd.f32 %v3607, %v3730
        %v3785 = vadd.f32 %v3608, %v3732
        %v3786 = vadd.f32 %v3609, %v3736
        %v3787 = vadd.f32 %v3610, %v3738
        %v3788 = vadd.f32 %v3611, %v3742
        %v3789 = vadd.f32 %v3612, %v3744
        %v3790 = vadd.f32 %v3613, %v3748
        %v3791 = vadd.f32 %v3614, %v3750
        %v3792 = vadd.f32 %v3615, %v3754
        %v3793 = vadd.f32 %v3616, %v3756
        %v3794 = vadd.f32 %v3617, %v3760
        %v3795 = vadd.f32 %v3618, %v3762
        %v3796 = vadd.f32 %v3619, %v3766
        %v3797 = vadd.f32 %v3620, %v3768
        %v3798 = vadd.f32 %v3621, %v3772
        %v3799 = vadd.f32 %v3622, %v3774
        %v3800 = vadd.f32 %v3623, %v3778
        %v3801 = vadd.f32 %v3624, %v3780
        %s3802 = scalar_lea.vmem %s2, 704
        %v3803 = vld [vmem:[%s3802] sm:$0xff]
        %v3804 = vld [vmem:[%s3802 + $0x8] sm:$0xff]
        %v3805 = vld [vmem:[%s3802 + $0x10] sm:$0xff]
        %v3806 = vld [vmem:[%s3802 + $0x18] sm:$0xff]
        %v3807 = vld [vmem:[%s3802 + $0x20] sm:$0xff]
        %v3808 = vld [vmem:[%s3802 + $0x28] sm:$0xff]
        %v3809 = vld [vmem:[%s3802 + $0x30] sm:$0xff]
        %v3810 = vld [vmem:[%s3802 + $0x38] sm:$0xff]
        %v3811 = vld [vmem:[%s3802 + $0x40] sm:$0xff]
        %v3812 = vld [vmem:[%s3802 + $0x48] sm:$0xff]
        %v3813 = vld [vmem:[%s3802 + $0x50] sm:$0xff]
        %v3814 = vld [vmem:[%s3802 + $0x58] sm:$0xff]
        %v3815 = vld [vmem:[%s3802 + $0x60] sm:$0xff]
        %v3816 = vld [vmem:[%s3802 + $0x68] sm:$0xff]
        %v3817 = vld [vmem:[%s3802 + $0x70] sm:$0xff]
        %v3818 = vld [vmem:[%s3802 + $0x78] sm:$0xff]
        %v3819 = vld [vmem:[%s3802 + $0x80] sm:$0xff]
        %v3820 = vld [vmem:[%s3802 + $0x88] sm:$0xff]
        %v3821 = vld [vmem:[%s3802 + $0x90] sm:$0xff]
        %v3822 = vld [vmem:[%s3802 + $0x98] sm:$0xff]
        %v3823 = vld [vmem:[%s3802 + $0xa0] sm:$0xf]
        %v3824 = vld [vmem:[%s3802 + $0xa8] sm:$0xf]
        %v3826 = vsel %vm3151, %v3105, 0
        %v3829 = vsel %vm3182, %v3823, 0
        %v3832 = vsel %vm3182, %v3824, 0
        %3834 = vmatprep.subr.mxu0 0.0
        %3835 = vmatpush1.msra.mxu0 0.0
        %3836 = vmatprep.subr.mxu0 0.0
        %3837 = vmatpush1.msra.mxu0 0.0
        %3838 = vmatprep.subr.mxu0 0.0
        %3839 = vmatpush1.msra.mxu0 0.0
        %3840 = vmatprep.subr.mxu0 0.0
        %3841 = vmatpush1.msra.mxu0 0.0
        %3842 = vmatprep.subr.mxu0 0.0
        %3843 = vmatpush1.msra.mxu0 0.0
        %3844 = vmatprep.subr.mxu0 %v3832
        %3845 = vmatpush1.msra.mxu0 %v3829
        %3846 = vmatprep.subr.mxu0 %v3822
        %3847 = vmatpush1.msra.mxu0 %v3821
        %3848 = vmatprep.subr.mxu0 %v3820
        %3849 = vmatpush1.msra.mxu0 %v3819
        %3850 = vmatprep.subr.mxu0 %v3818
        %3851 = vmatpush1.msra.mxu0 %v3817
        %3852 = vmatprep.subr.mxu0 %v3816
        %3853 = vmatpush1.msra.mxu0 %v3815
        %3854 = vmatprep.subr.mxu0 %v3814
        %3855 = vmatpush1.msra.mxu0 %v3813
        %3856 = vmatprep.subr.mxu0 %v3812
        %3857 = vmatpush1.msra.mxu0 %v3811
        %3858 = vmatprep.subr.mxu0 %v3810
        %3859 = vmatpush1.msra.mxu0 %v3809
        %3860 = vmatprep.subr.mxu0 %v3808
        %3861 = vmatpush1.msra.mxu0 %v3807
        %3862 = vmatprep.subr.mxu0 %v3806
        %3863 = vmatpush1.msra.mxu0 %v3805
        %3864 = vmatprep.subr.mxu0 %v3804
        %3865 = vmatpush1.msra.mxu0 %v3803
        %3866 = vmatprep.subr.mxu0 0.0
        %3867 = vmatpush2.msra.mxu0 0.0
        %3868 = vmatprep.subr.mxu0 0.0
        %3869 = vmatpush2.msra.mxu0 0.0
        %3870 = vmatprep.subr.mxu0 0.0
        %3871 = vmatpush2.msra.mxu0 0.0
        %3872 = vmatprep.subr.mxu0 0.0
        %3873 = vmatpush2.msra.mxu0 0.0
        %3874 = vmatprep.subr.mxu0 0.0
        %3875 = vmatpush2.msra.mxu0 0.0
        %3876 = vmatprep.subr.mxu0 0.0
        %3877 = vmatpush2.msra.mxu0 0.0
        %3878 = vmatprep.subr.mxu0 0.0
        %3879 = vmatpush2.msra.mxu0 0.0
        %3880 = vmatprep.subr.mxu0 0.0
        %3881 = vmatpush2.msra.mxu0 0.0
        %3882 = vmatprep.subr.mxu0 0.0
        %3883 = vmatpush2.msra.mxu0 0.0
        %3884 = vmatprep.subr.mxu0 0.0
        %3885 = vmatpush2.msra.mxu0 0.0
        %3886 = vmatprep.subr.mxu0 0.0
        %3887 = vmatpush2.msra.mxu0 0.0
        %3888 = vmatprep.subr.mxu0 0.0
        %3889 = vmatpush2.msra.mxu0 0.0
        %3890 = vmatprep.subr.mxu0 0.0
        %3891 = vmatpush2.msra.mxu0 0.0
        %3892 = vmatprep.subr.mxu0 0.0
        %3893 = vmatpush2.msra.mxu0 0.0
        %3894 = vmatprep.subr.mxu0 0.0
        %3895 = vmatpush2.msra.mxu0 0.0
        %3896 = vmatprep.subr.mxu0 0.0
        %3897 = vmatpush2.msra.mxu0 0.0
        %3898 = vmatprep.mubr.f32.mxu0 0.0
        %3899 = vmatmul.mubr.f32.gmra.mxu0 %v3162
        %v3900 = vpop.f32.mrf.mxu0
        %v3901 = vadd.f32 0.0, %v3900
        %v3902 = vpop.f32.mrf.mxu0
        %v3903 = vadd.f32 0.0, %v3902
        %3904 = vmatprep.mubr.f32.mxu0 0.0
        %3905 = vmatmul.mubr.f32.gmra.mxu0 %v3165
        %v3906 = vpop.f32.mrf.mxu0
        %v3907 = vadd.f32 0.0, %v3906
        %v3908 = vpop.f32.mrf.mxu0
        %v3909 = vadd.f32 0.0, %v3908
        %3910 = vmatprep.mubr.f32.mxu0 0.0
        %3911 = vmatmul.mubr.f32.gmra.mxu0 %v3168
        %v3912 = vpop.f32.mrf.mxu0
        %v3913 = vadd.f32 0.0, %v3912
        %v3914 = vpop.f32.mrf.mxu0
        %v3915 = vadd.f32 0.0, %v3914
        %3916 = vmatprep.mubr.f32.mxu0 0.0
        %3917 = vmatmul.mubr.f32.gmra.mxu0 %v3171
        %v3918 = vpop.f32.mrf.mxu0
        %v3919 = vadd.f32 0.0, %v3918
        %v3920 = vpop.f32.mrf.mxu0
        %v3921 = vadd.f32 0.0, %v3920
        %3922 = vmatprep.mubr.f32.mxu0 0.0
        %3923 = vmatmul.mubr.f32.gmra.mxu0 %v3174
        %v3924 = vpop.f32.mrf.mxu0
        %v3925 = vadd.f32 0.0, %v3924
        %v3926 = vpop.f32.mrf.mxu0
        %v3927 = vadd.f32 0.0, %v3926
        %3928 = vmatprep.mubr.f32.mxu0 0.0
        %3929 = vmatmul.mubr.f32.gmra.mxu0 %v3177
        %v3930 = vpop.f32.mrf.mxu0
        %v3931 = vadd.f32 0.0, %v3930
        %v3932 = vpop.f32.mrf.mxu0
        %v3933 = vadd.f32 0.0, %v3932
        %3934 = vmatprep.mubr.f32.mxu0 0.0
        %3935 = vmatmul.mubr.f32.gmra.mxu0 %v3180
        %v3936 = vpop.f32.mrf.mxu0
        %v3937 = vadd.f32 0.0, %v3936
        %v3938 = vpop.f32.mrf.mxu0
        %v3939 = vadd.f32 0.0, %v3938
        %3940 = vmatprep.mubr.f32.mxu0 0.0
        %3941 = vmatmul.mubr.f32.gmra.mxu0 %v3472
        %v3942 = vpop.f32.mrf.mxu0
        %v3943 = vadd.f32 0.0, %v3942
        %v3944 = vpop.f32.mrf.mxu0
        %v3945 = vadd.f32 0.0, %v3944
        %3946 = vmatprep.mubr.f32.mxu0 0.0
        %3947 = vmatmul.mubr.f32.gmra.mxu0 %v3649
        %v3948 = vpop.f32.mrf.mxu0
        %v3949 = vadd.f32 0.0, %v3948
        %v3950 = vpop.f32.mrf.mxu0
        %v3951 = vadd.f32 0.0, %v3950
        %3952 = vmatprep.mubr.f32.mxu0 0.0
        %3953 = vmatmul.mubr.f32.gmra.mxu0 %v3826
        %v3954 = vpop.f32.mrf.mxu0
        %v3955 = vadd.f32 0.0, %v3954
        %v3956 = vpop.f32.mrf.mxu0
        %v3957 = vadd.f32 0.0, %v3956
        %3958 = vdwg.mxu0
        %v3959 = vadd.f32 %v3782, %v3901
        %v3960 = vadd.f32 %v3783, %v3903
        %v3961 = vadd.f32 %v3784, %v3907
        %v3962 = vadd.f32 %v3785, %v3909
        %v3963 = vadd.f32 %v3786, %v3913
        %v3964 = vadd.f32 %v3787, %v3915
        %v3965 = vadd.f32 %v3788, %v3919
        %v3966 = vadd.f32 %v3789, %v3921
        %v3967 = vadd.f32 %v3790, %v3925
        %v3968 = vadd.f32 %v3791, %v3927
        %v3969 = vadd.f32 %v3792, %v3931
        %v3970 = vadd.f32 %v3793, %v3933
        %v3971 = vadd.f32 %v3794, %v3937
        %v3972 = vadd.f32 %v3795, %v3939
        %v3973 = vadd.f32 %v3796, %v3943
        %v3974 = vadd.f32 %v3797, %v3945
        %v3975 = vadd.f32 %v3798, %v3949
        %v3976 = vadd.f32 %v3799, %v3951
        %v3977 = vadd.f32 %v3800, %v3955
        %v3978 = vadd.f32 %v3801, %v3957
        %v3979 = vmax.f32 %v3959, %v3961
        %v3980 = vmax.f32 %v3960, %v3962
        %v3981 = vmax.f32 %v3963, %v3965
        %v3982 = vmax.f32 %v3964, %v3966
        %v3983 = vmax.f32 %v3967, %v3969
        %v3984 = vmax.f32 %v3968, %v3970
        %v3985 = vmax.f32 %v3971, %v3973
        %v3986 = vmax.f32 %v3972, %v3974
        %v3987 = vmax.f32 %v3975, %v3977
        %v3988 = vmax.f32 %v3976, %v3978
        %v3989 = vld [vmem:[%s5] sm:$0xff]
        %v3990 = vld [vmem:[%s5 + $0x8] sm:$0xff]
        %v3991 = vld [vmem:[%s5 + $0x10] sm:$0xff]
        %v3992 = vld [vmem:[%s5 + $0x18] sm:$0xff]
        %v3993 = vld [vmem:[%s5 + $0x20] sm:$0xff]
        %v3994 = vld [vmem:[%s5 + $0x28] sm:$0xff]
        %v3995 = vld [vmem:[%s5 + $0x30] sm:$0xff]
        %v3996 = vld [vmem:[%s5 + $0x38] sm:$0xff]
        %v3997 = vld [vmem:[%s5 + $0x40] sm:$0xff]
        %v3998 = vld [vmem:[%s5 + $0x48] sm:$0xff]
        %v3999 = vld [vmem:[%s5 + $0x50] sm:$0xff]
        %v4000 = vld [vmem:[%s5 + $0x58] sm:$0xff]
        %v4001 = vld [vmem:[%s5 + $0x60] sm:$0xff]
        %v4002 = vld [vmem:[%s5 + $0x68] sm:$0xff]
        %v4003 = vld [vmem:[%s5 + $0x70] sm:$0xff]
        %v4004 = vld [vmem:[%s5 + $0x78] sm:$0xff]
        %v4005 = vld [vmem:[%s5 + $0x80] sm:$0xff]
        %v4006 = vld [vmem:[%s5 + $0x88] sm:$0xff]
        %v4007 = vld [vmem:[%s5 + $0x90] sm:$0xff]
        %v4008 = vld [vmem:[%s5 + $0x98] sm:$0xff]
        %vm4009 = vcmask 261120
        %v4011 = vsel %vm4009, %v3980, 0
        %v4014 = vsel %vm4009, %v3982, 0
        %v4017 = vsel %vm4009, %v3984, 0
        %v4020 = vsel %vm4009, %v3986, 0
        %v4023 = vsel %vm4009, %v3988, 0
        %4025 = vmatprep.subr.mxu0 0.0
        %4026 = vmatpush1.msra.mxu0 %v4004
        %4027 = vmatprep.subr.mxu0 0.0
        %4028 = vmatpush1.msra.mxu0 %v4003
        %4029 = vmatprep.subr.mxu0 0.0
        %4030 = vmatpush1.msra.mxu0 %v4002
        %4031 = vmatprep.subr.mxu0 0.0
        %4032 = vmatpush1.msra.mxu0 %v4001
        %4033 = vmatprep.subr.mxu0 0.0
        %4034 = vmatpush1.msra.mxu0 %v4000
        %4035 = vmatprep.subr.mxu0 0.0
        %4036 = vmatpush1.msra.mxu0 %v3999
        %4037 = vmatprep.subr.mxu0 0.0
        %4038 = vmatpush1.msra.mxu0 %v3998
        %4039 = vmatprep.subr.mxu0 0.0
        %4040 = vmatpush1.msra.mxu0 %v3997
        %4041 = vmatprep.subr.mxu0 0.0
        %4042 = vmatpush1.msra.mxu0 %v3996
        %4043 = vmatprep.subr.mxu0 0.0
        %4044 = vmatpush1.msra.mxu0 %v3995
        %4045 = vmatprep.subr.mxu0 0.0
        %4046 = vmatpush1.msra.mxu0 %v3994
        %4047 = vmatprep.subr.mxu0 0.0
        %4048 = vmatpush1.msra.mxu0 %v3993
        %4049 = vmatprep.subr.mxu0 0.0
        %4050 = vmatpush1.msra.mxu0 %v3992
        %4051 = vmatprep.subr.mxu0 0.0
        %4052 = vmatpush1.msra.mxu0 %v3991
        %4053 = vmatprep.subr.mxu0 0.0
        %4054 = vmatpush1.msra.mxu0 %v3990
        %4055 = vmatprep.subr.mxu0 0.0
        %4056 = vmatpush1.msra.mxu0 %v3989
        %4057 = vmatprep.subr.mxu0 0.0
        %4058 = vmatpush2.msra.mxu0 0.0
        %4059 = vmatprep.subr.mxu0 0.0
        %4060 = vmatpush2.msra.mxu0 0.0
        %4061 = vmatprep.subr.mxu0 0.0
        %4062 = vmatpush2.msra.mxu0 0.0
        %4063 = vmatprep.subr.mxu0 0.0
        %4064 = vmatpush2.msra.mxu0 0.0
        %4065 = vmatprep.subr.mxu0 0.0
        %4066 = vmatpush2.msra.mxu0 0.0
        %4067 = vmatprep.subr.mxu0 0.0
        %4068 = vmatpush2.msra.mxu0 0.0
        %4069 = vmatprep.subr.mxu0 0.0
        %4070 = vmatpush2.msra.mxu0 0.0
        %4071 = vmatprep.subr.mxu0 0.0
        %4072 = vmatpush2.msra.mxu0 0.0
        %4073 = vmatprep.subr.mxu0 0.0
        %4074 = vmatpush2.msra.mxu0 0.0
        %4075 = vmatprep.subr.mxu0 0.0
        %4076 = vmatpush2.msra.mxu0 0.0
        %4077 = vmatprep.subr.mxu0 0.0
        %4078 = vmatpush2.msra.mxu0 0.0
        %4079 = vmatprep.subr.mxu0 0.0
        %4080 = vmatpush2.msra.mxu0 0.0
        %4081 = vmatprep.subr.mxu0 0.0
        %4082 = vmatpush2.msra.mxu0 %v4008
        %4083 = vmatprep.subr.mxu0 0.0
        %4084 = vmatpush2.msra.mxu0 %v4007
        %4085 = vmatprep.subr.mxu0 0.0
        %4086 = vmatpush2.msra.mxu0 %v4006
        %4087 = vmatprep.subr.mxu0 0.0
        %4088 = vmatpush2.msra.mxu0 %v4005
        %4089 = vmatprep.mubr.f32.mxu0 %v4011
        %4090 = vmatmul.mubr.f32.gmra.mxu0 %v3979
        %v4091 = vpop.f32.mrf.mxu0
        %v4092 = vadd.f32 0.0, %v4091
        %v4093 = vpop.f32.mrf.mxu0
        %4094 = vmatprep.mubr.f32.mxu0 %v4014
        %4095 = vmatmul.mubr.f32.gmra.mxu0 %v3981
        %v4096 = vpop.f32.mrf.mxu0
        %v4097 = vadd.f32 0.0, %v4096
        %v4098 = vpop.f32.mrf.mxu0
        %4099 = vmatprep.mubr.f32.mxu0 %v4017
        %4100 = vmatmul.mubr.f32.gmra.mxu0 %v3983
        %v4101 = vpop.f32.mrf.mxu0
        %v4102 = vadd.f32 0.0, %v4101
        %v4103 = vpop.f32.mrf.mxu0
        %4104 = vmatprep.mubr.f32.mxu0 %v4020
        %4105 = vmatmul.mubr.f32.gmra.mxu0 %v3985
        %v4106 = vpop.f32.mrf.mxu0
        %v4107 = vadd.f32 0.0, %v4106
        %v4108 = vpop.f32.mrf.mxu0
        %4109 = vmatprep.mubr.f32.mxu0 %v4023
        %4110 = vmatmul.mubr.f32.gmra.mxu0 %v3987
        %v4111 = vpop.f32.mrf.mxu0
        %v4112 = vadd.f32 0.0, %v4111
        %v4113 = vpop.f32.mrf.mxu0
        %4114 = vdwg.mxu0
        %v4115 = vld [vmem:[%s6] sm:$0xff]
        %v4116 = vld [vmem:[%s6 + $0x8] sm:$0xff]
        %v4117 = vld [vmem:[%s6 + $0x10] sm:$0xff]
        %v4118 = vld [vmem:[%s6 + $0x18] sm:$0xff]
        %v4119 = vld [vmem:[%s6 + $0x20] sm:$0xff]
        %v4120 = vld [vmem:[%s6 + $0x28] sm:$0xff]
        %v4121 = vld [vmem:[%s6 + $0x30] sm:$0xff]
        %v4122 = vld [vmem:[%s6 + $0x38] sm:$0xff]
        %v4123 = vld [vmem:[%s6 + $0x40] sm:$0xff]
        %v4124 = vld [vmem:[%s6 + $0x48] sm:$0xff]
        %v4125 = vld [vmem:[%s6 + $0x50] sm:$0xff]
        %v4126 = vld [vmem:[%s6 + $0x58] sm:$0xff]
        %v4127 = vld [vmem:[%s6 + $0x60] sm:$0xff]
        %v4128 = vld [vmem:[%s6 + $0x68] sm:$0xff]
        %v4129 = vld [vmem:[%s6 + $0x70] sm:$0xff]
        %v4130 = vld [vmem:[%s6 + $0x78] sm:$0xff]
        %v4131 = vld [vmem:[%s6 + $0x80] sm:$0xff]
        %v4132 = vld [vmem:[%s6 + $0x88] sm:$0xff]
        %v4133 = vld [vmem:[%s6 + $0x90] sm:$0xff]
        %v4134 = vld [vmem:[%s6 + $0x98] sm:$0xff]
        %4135 = vmatprep.subr.mxu0 0.0
        %4136 = vmatpush1.msra.mxu0 %v4130
        %4137 = vmatprep.subr.mxu0 0.0
        %4138 = vmatpush1.msra.mxu0 %v4129
        %4139 = vmatprep.subr.mxu0 0.0
        %4140 = vmatpush1.msra.mxu0 %v4128
        %4141 = vmatprep.subr.mxu0 0.0
        %4142 = vmatpush1.msra.mxu0 %v4127
        %4143 = vmatprep.subr.mxu0 0.0
        %4144 = vmatpush1.msra.mxu0 %v4126
        %4145 = vmatprep.subr.mxu0 0.0
        %4146 = vmatpush1.msra.mxu0 %v4125
        %4147 = vmatprep.subr.mxu0 0.0
        %4148 = vmatpush1.msra.mxu0 %v4124
        %4149 = vmatprep.subr.mxu0 0.0
        %4150 = vmatpush1.msra.mxu0 %v4123
        %4151 = vmatprep.subr.mxu0 0.0
        %4152 = vmatpush1.msra.mxu0 %v4122
        %4153 = vmatprep.subr.mxu0 0.0
        %4154 = vmatpush1.msra.mxu0 %v4121
        %4155 = vmatprep.subr.mxu0 0.0
        %4156 = vmatpush1.msra.mxu0 %v4120
        %4157 = vmatprep.subr.mxu0 0.0
        %4158 = vmatpush1.msra.mxu0 %v4119
        %4159 = vmatprep.subr.mxu0 0.0
        %4160 = vmatpush1.msra.mxu0 %v4118
        %4161 = vmatprep.subr.mxu0 0.0
        %4162 = vmatpush1.msra.mxu0 %v4117
        %4163 = vmatprep.subr.mxu0 0.0
        %4164 = vmatpush1.msra.mxu0 %v4116
        %4165 = vmatprep.subr.mxu0 0.0
        %4166 = vmatpush1.msra.mxu0 %v4115
        %4167 = vmatprep.subr.mxu0 0.0
        %4168 = vmatpush2.msra.mxu0 0.0
        %4169 = vmatprep.subr.mxu0 0.0
        %4170 = vmatpush2.msra.mxu0 0.0
        %4171 = vmatprep.subr.mxu0 0.0
        %4172 = vmatpush2.msra.mxu0 0.0
        %4173 = vmatprep.subr.mxu0 0.0
        %4174 = vmatpush2.msra.mxu0 0.0
        %4175 = vmatprep.subr.mxu0 0.0
        %4176 = vmatpush2.msra.mxu0 0.0
        %4177 = vmatprep.subr.mxu0 0.0
        %4178 = vmatpush2.msra.mxu0 0.0
        %4179 = vmatprep.subr.mxu0 0.0
        %4180 = vmatpush2.msra.mxu0 0.0
        %4181 = vmatprep.subr.mxu0 0.0
        %4182 = vmatpush2.msra.mxu0 0.0
        %4183 = vmatprep.subr.mxu0 0.0
        %4184 = vmatpush2.msra.mxu0 0.0
        %4185 = vmatprep.subr.mxu0 0.0
        %4186 = vmatpush2.msra.mxu0 0.0
        %4187 = vmatprep.subr.mxu0 0.0
        %4188 = vmatpush2.msra.mxu0 0.0
        %4189 = vmatprep.subr.mxu0 0.0
        %4190 = vmatpush2.msra.mxu0 0.0
        %4191 = vmatprep.subr.mxu0 0.0
        %4192 = vmatpush2.msra.mxu0 %v4134
        %4193 = vmatprep.subr.mxu0 0.0
        %4194 = vmatpush2.msra.mxu0 %v4133
        %4195 = vmatprep.subr.mxu0 0.0
        %4196 = vmatpush2.msra.mxu0 %v4132
        %4197 = vmatprep.subr.mxu0 0.0
        %4198 = vmatpush2.msra.mxu0 %v4131
        %4199 = vmatprep.mubr.f32.mxu0 %v4011
        %4200 = vmatmul.mubr.f32.gmra.mxu0 %v3979
        %v4201 = vpop.f32.mrf.mxu0
        %v4202 = vadd.f32 0.0, %v4201
        %v4203 = vpop.f32.mrf.mxu0
        %4204 = vmatprep.mubr.f32.mxu0 %v4014
        %4205 = vmatmul.mubr.f32.gmra.mxu0 %v3981
        %v4206 = vpop.f32.mrf.mxu0
        %v4207 = vadd.f32 0.0, %v4206
        %v4208 = vpop.f32.mrf.mxu0
        %4209 = vmatprep.mubr.f32.mxu0 %v4017
        %4210 = vmatmul.mubr.f32.gmra.mxu0 %v3983
        %v4211 = vpop.f32.mrf.mxu0
        %v4212 = vadd.f32 0.0, %v4211
        %v4213 = vpop.f32.mrf.mxu0
        %4214 = vmatprep.mubr.f32.mxu0 %v4020
        %4215 = vmatmul.mubr.f32.gmra.mxu0 %v3985
        %v4216 = vpop.f32.mrf.mxu0
        %v4217 = vadd.f32 0.0, %v4216
        %v4218 = vpop.f32.mrf.mxu0
        %4219 = vmatprep.mubr.f32.mxu0 %v4023
        %4220 = vmatmul.mubr.f32.gmra.mxu0 %v3987
        %v4221 = vpop.f32.mrf.mxu0
        %v4222 = vadd.f32 0.0, %v4221
        %v4223 = vpop.f32.mrf.mxu0
        %4224 = vdwg.mxu0
        %v4225 = vmax.f32 %v4092, %v4202
        %v4226 = vmax.f32 %v4097, %v4207
        %v4227 = vmax.f32 %v4102, %v4212
        %v4228 = vmax.f32 %v4107, %v4217
        %v4229 = vmax.f32 %v4112, %v4222
        %v4230 = vld [vmem:[%s8] sm:$0x1]
        %v4232 = vlaneseq
        %v4233 = vshrl.u32 %v4232, 7
        %v4234 = vsub.s32 0, %v4233
        %v4235 = vrot.slane %v4230, %v4234
        %v4237 = vadd.f32 %v4225, %v4235
        %v4238 = vadd.f32 %v4226, %v4235
        %v4239 = vadd.f32 %v4227, %v4235
        %v4240 = vadd.f32 %v4228, %v4235
        %v4241 = vadd.f32 %v4229, %v4235
        %v4242 = vmax.f32 %v4237, 0.0
        %v4243 = vmax.f32 %v4238, 0.0
        %v4244 = vmax.f32 %v4239, 0.0
        %v4245 = vmax.f32 %v4240, 0.0
        %v4246 = vmax.f32 %v4241, 0.0
        %v4247 = vld [vmem:[%s9] sm:$0xff]
        %v4248 = vld [vmem:[%s9 + $0x8] sm:$0xff]
        %v4249 = vld [vmem:[%s9 + $0x10] sm:$0xff]
        %v4250 = vld [vmem:[%s9 + $0x18] sm:$0xff]
        %v4251 = vld [vmem:[%s9 + $0x20] sm:$0xff]
        %v4252 = vld [vmem:[%s9 + $0x28] sm:$0xff]
        %v4253 = vld [vmem:[%s9 + $0x30] sm:$0xff]
        %v4254 = vld [vmem:[%s9 + $0x38] sm:$0xff]
        %v4255 = vld [vmem:[%s9 + $0x40] sm:$0xff]
        %v4256 = vld [vmem:[%s9 + $0x48] sm:$0xff]
        %s4257 = scalar_lea.vmem %s9, 80
        %v4258 = vld [vmem:[%s4257] sm:$0xff]
        %v4259 = vld [vmem:[%s4257 + $0x8] sm:$0xff]
        %v4260 = vld [vmem:[%s4257 + $0x10] sm:$0xff]
        %v4261 = vld [vmem:[%s4257 + $0x18] sm:$0xff]
        %v4262 = vld [vmem:[%s4257 + $0x20] sm:$0xff]
        %v4263 = vld [vmem:[%s4257 + $0x28] sm:$0xff]
        %v4264 = vld [vmem:[%s4257 + $0x30] sm:$0xff]
        %v4265 = vld [vmem:[%s4257 + $0x38] sm:$0xff]
        %v4266 = vld [vmem:[%s4257 + $0x40] sm:$0xff]
        %v4267 = vld [vmem:[%s4257 + $0x48] sm:$0xff]
        %vm4268 = vcmask 654336
        %v4270 = vsel %vm4268, %v4243, 0
        %4272 = vmatprep.subr.mxu0 0.0
        %4273 = vmatpush1.msra.mxu0 0.0
        %4274 = vmatprep.subr.mxu0 0.0
        %4275 = vmatpush1.msra.mxu0 0.0
        %4276 = vmatprep.subr.mxu0 0.0
        %4277 = vmatpush1.msra.mxu0 0.0
        %4278 = vmatprep.subr.mxu0 0.0
        %4279 = vmatpush1.msra.mxu0 0.0
        %4280 = vmatprep.subr.mxu0 0.0
        %4281 = vmatpush1.msra.mxu0 0.0
        %4282 = vmatprep.subr.mxu0 0.0
        %4283 = vmatpush1.msra.mxu0 0.0
        %4284 = vmatprep.subr.mxu0 0.0
        %4285 = vmatpush1.msra.mxu0 %v4267
        %4286 = vmatprep.subr.mxu0 0.0
        %4287 = vmatpush1.msra.mxu0 %v4266
        %4288 = vmatprep.subr.mxu0 0.0
        %4289 = vmatpush1.msra.mxu0 %v4265
        %4290 = vmatprep.subr.mxu0 0.0
        %4291 = vmatpush1.msra.mxu0 %v4264
        %4292 = vmatprep.subr.mxu0 0.0
        %4293 = vmatpush1.msra.mxu0 %v4263
        %4294 = vmatprep.subr.mxu0 0.0
        %4295 = vmatpush1.msra.mxu0 %v4262
        %4296 = vmatprep.subr.mxu0 0.0
        %4297 = vmatpush1.msra.mxu0 %v4261
        %4298 = vmatprep.subr.mxu0 0.0
        %4299 = vmatpush1.msra.mxu0 %v4260
        %4300 = vmatprep.subr.mxu0 0.0
        %4301 = vmatpush1.msra.mxu0 %v4259
        %4302 = vmatprep.subr.mxu0 0.0
        %4303 = vmatpush1.msra.mxu0 %v4258
        %4304 = vmatprep.subr.mxu0 0.0
        %4305 = vmatpush2.msra.mxu0 0.0
        %4306 = vmatprep.subr.mxu0 0.0
        %4307 = vmatpush2.msra.mxu0 0.0
        %4308 = vmatprep.subr.mxu0 0.0
        %4309 = vmatpush2.msra.mxu0 0.0
        %4310 = vmatprep.subr.mxu0 0.0
        %4311 = vmatpush2.msra.mxu0 0.0
        %4312 = vmatprep.subr.mxu0 0.0
        %4313 = vmatpush2.msra.mxu0 0.0
        %4314 = vmatprep.subr.mxu0 0.0
        %4315 = vmatpush2.msra.mxu0 0.0
        %4316 = vmatprep.subr.mxu0 0.0
        %4317 = vmatpush2.msra.mxu0 0.0
        %4318 = vmatprep.subr.mxu0 0.0
        %4319 = vmatpush2.msra.mxu0 0.0
        %4320 = vmatprep.subr.mxu0 0.0
        %4321 = vmatpush2.msra.mxu0 0.0
        %4322 = vmatprep.subr.mxu0 0.0
        %4323 = vmatpush2.msra.mxu0 0.0
        %4324 = vmatprep.subr.mxu0 0.0
        %4325 = vmatpush2.msra.mxu0 0.0
        %4326 = vmatprep.subr.mxu0 0.0
        %4327 = vmatpush2.msra.mxu0 0.0
        %4328 = vmatprep.subr.mxu0 0.0
        %4329 = vmatpush2.msra.mxu0 0.0
        %4330 = vmatprep.subr.mxu0 0.0
        %4331 = vmatpush2.msra.mxu0 0.0
        %4332 = vmatprep.subr.mxu0 0.0
        %4333 = vmatpush2.msra.mxu0 0.0
        %4334 = vmatprep.subr.mxu0 0.0
        %4335 = vmatpush2.msra.mxu0 0.0
        %4336 = vmatprep.mubr.f32.mxu0 0.0
        %4337 = vmatmul.mubr.f32.gmra.mxu0 %v4270
        %v4338 = vpop.f32.mrf.mxu0
        %v4339 = vadd.f32 0.0, %v4338
        %v4340 = vpop.f32.mrf.mxu0
        %4341 = vdwg.mxu0
        %v4343 = vsel %vm4268, %v4242, 0
        %4345 = vmatprep.subr.mxu0 0.0
        %4346 = vmatpush1.msra.mxu0 0.0
        %4347 = vmatprep.subr.mxu0 0.0
        %4348 = vmatpush1.msra.mxu0 0.0
        %4349 = vmatprep.subr.mxu0 0.0
        %4350 = vmatpush1.msra.mxu0 0.0
        %4351 = vmatprep.subr.mxu0 0.0
        %4352 = vmatpush1.msra.mxu0 0.0
        %4353 = vmatprep.subr.mxu0 0.0
        %4354 = vmatpush1.msra.mxu0 0.0
        %4355 = vmatprep.subr.mxu0 0.0
        %4356 = vmatpush1.msra.mxu0 0.0
        %4357 = vmatprep.subr.mxu0 0.0
        %4358 = vmatpush1.msra.mxu0 %v4256
        %4359 = vmatprep.subr.mxu0 0.0
        %4360 = vmatpush1.msra.mxu0 %v4255
        %4361 = vmatprep.subr.mxu0 0.0
        %4362 = vmatpush1.msra.mxu0 %v4254
        %4363 = vmatprep.subr.mxu0 0.0
        %4364 = vmatpush1.msra.mxu0 %v4253
        %4365 = vmatprep.subr.mxu0 0.0
        %4366 = vmatpush1.msra.mxu0 %v4252
        %4367 = vmatprep.subr.mxu0 0.0
        %4368 = vmatpush1.msra.mxu0 %v4251
        %4369 = vmatprep.subr.mxu0 0.0
        %4370 = vmatpush1.msra.mxu0 %v4250
        %4371 = vmatprep.subr.mxu0 0.0
        %4372 = vmatpush1.msra.mxu0 %v4249
        %4373 = vmatprep.subr.mxu0 0.0
        %4374 = vmatpush1.msra.mxu0 %v4248
        %4375 = vmatprep.subr.mxu0 0.0
        %4376 = vmatpush1.msra.mxu0 %v4247
        %4377 = vmatprep.subr.mxu0 0.0
        %4378 = vmatpush2.msra.mxu0 0.0
        %4379 = vmatprep.subr.mxu0 0.0
        %4380 = vmatpush2.msra.mxu0 0.0
        %4381 = vmatprep.subr.mxu0 0.0
        %4382 = vmatpush2.msra.mxu0 0.0
        %4383 = vmatprep.subr.mxu0 0.0
        %4384 = vmatpush2.msra.mxu0 0.0
        %4385 = vmatprep.subr.mxu0 0.0
        %4386 = vmatpush2.msra.mxu0 0.0
        %4387 = vmatprep.subr.mxu0 0.0
        %4388 = vmatpush2.msra.mxu0 0.0
        %4389 = vmatprep.subr.mxu0 0.0
        %4390 = vmatpush2.msra.mxu0 0.0
        %4391 = vmatprep.subr.mxu0 0.0
        %4392 = vmatpush2.msra.mxu0 0.0
        %4393 = vmatprep.subr.mxu0 0.0
        %4394 = vmatpush2.msra.mxu0 0.0
        %4395 = vmatprep.subr.mxu0 0.0
        %4396 = vmatpush2.msra.mxu0 0.0
        %4397 = vmatprep.subr.mxu0 0.0
        %4398 = vmatpush2.msra.mxu0 0.0
        %4399 = vmatprep.subr.mxu0 0.0
        %4400 = vmatpush2.msra.mxu0 0.0
        %4401 = vmatprep.subr.mxu0 0.0
        %4402 = vmatpush2.msra.mxu0 0.0
        %4403 = vmatprep.subr.mxu0 0.0
        %4404 = vmatpush2.msra.mxu0 0.0
        %4405 = vmatprep.subr.mxu0 0.0
        %4406 = vmatpush2.msra.mxu0 0.0
        %4407 = vmatprep.subr.mxu0 0.0
        %4408 = vmatpush2.msra.mxu0 0.0
        %4409 = vmatprep.mubr.f32.mxu0 0.0
        %4410 = vmatmul.mubr.f32.gmra.mxu0 %v4343
        %v4411 = vpop.f32.mrf.mxu0
        %v4412 = vadd.f32 %v4339, %v4411
        %v4413 = vpop.f32.mrf.mxu0
        %4414 = vdwg.mxu0
        %s4415 = scalar_lea.vmem %s9, 160
        %v4416 = vld [vmem:[%s4415] sm:$0xff]
        %v4417 = vld [vmem:[%s4415 + $0x8] sm:$0xff]
        %v4418 = vld [vmem:[%s4415 + $0x10] sm:$0xff]
        %v4419 = vld [vmem:[%s4415 + $0x18] sm:$0xff]
        %v4420 = vld [vmem:[%s4415 + $0x20] sm:$0xff]
        %v4421 = vld [vmem:[%s4415 + $0x28] sm:$0xff]
        %v4422 = vld [vmem:[%s4415 + $0x30] sm:$0xff]
        %v4423 = vld [vmem:[%s4415 + $0x38] sm:$0xff]
        %v4424 = vld [vmem:[%s4415 + $0x40] sm:$0xff]
        %v4425 = vld [vmem:[%s4415 + $0x48] sm:$0xff]
        %v4427 = vsel %vm4268, %v4244, 0
        %4429 = vmatprep.subr.mxu0 0.0
        %4430 = vmatpush1.msra.mxu0 0.0
        %4431 = vmatprep.subr.mxu0 0.0
        %4432 = vmatpush1.msra.mxu0 0.0
        %4433 = vmatprep.subr.mxu0 0.0
        %4434 = vmatpush1.msra.mxu0 0.0
        %4435 = vmatprep.subr.mxu0 0.0
        %4436 = vmatpush1.msra.mxu0 0.0
        %4437 = vmatprep.subr.mxu0 0.0
        %4438 = vmatpush1.msra.mxu0 0.0
        %4439 = vmatprep.subr.mxu0 0.0
        %4440 = vmatpush1.msra.mxu0 0.0
        %4441 = vmatprep.subr.mxu0 0.0
        %4442 = vmatpush1.msra.mxu0 %v4425
        %4443 = vmatprep.subr.mxu0 0.0
        %4444 = vmatpush1.msra.mxu0 %v4424
        %4445 = vmatprep.subr.mxu0 0.0
        %4446 = vmatpush1.msra.mxu0 %v4423
        %4447 = vmatprep.subr.mxu0 0.0
        %4448 = vmatpush1.msra.mxu0 %v4422
        %4449 = vmatprep.subr.mxu0 0.0
        %4450 = vmatpush1.msra.mxu0 %v4421
        %4451 = vmatprep.subr.mxu0 0.0
        %4452 = vmatpush1.msra.mxu0 %v4420
        %4453 = vmatprep.subr.mxu0 0.0
        %4454 = vmatpush1.msra.mxu0 %v4419
        %4455 = vmatprep.subr.mxu0 0.0
        %4456 = vmatpush1.msra.mxu0 %v4418
        %4457 = vmatprep.subr.mxu0 0.0
        %4458 = vmatpush1.msra.mxu0 %v4417
        %4459 = vmatprep.subr.mxu0 0.0
        %4460 = vmatpush1.msra.mxu0 %v4416
        %4461 = vmatprep.subr.mxu0 0.0
        %4462 = vmatpush2.msra.mxu0 0.0
        %4463 = vmatprep.subr.mxu0 0.0
        %4464 = vmatpush2.msra.mxu0 0.0
        %4465 = vmatprep.subr.mxu0 0.0
        %4466 = vmatpush2.msra.mxu0 0.0
        %4467 = vmatprep.subr.mxu0 0.0
        %4468 = vmatpush2.msra.mxu0 0.0
        %4469 = vmatprep.subr.mxu0 0.0
        %4470 = vmatpush2.msra.mxu0 0.0
        %4471 = vmatprep.subr.mxu0 0.0
        %4472 = vmatpush2.msra.mxu0 0.0
        %4473 = vmatprep.subr.mxu0 0.0
        %4474 = vmatpush2.msra.mxu0 0.0
        %4475 = vmatprep.subr.mxu0 0.0
        %4476 = vmatpush2.msra.mxu0 0.0
        %4477 = vmatprep.subr.mxu0 0.0
        %4478 = vmatpush2.msra.mxu0 0.0
        %4479 = vmatprep.subr.mxu0 0.0
        %4480 = vmatpush2.msra.mxu0 0.0
        %4481 = vmatprep.subr.mxu0 0.0
        %4482 = vmatpush2.msra.mxu0 0.0
        %4483 = vmatprep.subr.mxu0 0.0
        %4484 = vmatpush2.msra.mxu0 0.0
        %4485 = vmatprep.subr.mxu0 0.0
        %4486 = vmatpush2.msra.mxu0 0.0
        %4487 = vmatprep.subr.mxu0 0.0
        %4488 = vmatpush2.msra.mxu0 0.0
        %4489 = vmatprep.subr.mxu0 0.0
        %4490 = vmatpush2.msra.mxu0 0.0
        %4491 = vmatprep.subr.mxu0 0.0
        %4492 = vmatpush2.msra.mxu0 0.0
        %4493 = vmatprep.mubr.f32.mxu0 0.0
        %4494 = vmatmul.mubr.f32.gmra.mxu0 %v4427
        %v4495 = vpop.f32.mrf.mxu0
        %v4496 = vadd.f32 0.0, %v4495
        %v4497 = vpop.f32.mrf.mxu0
        %4498 = vdwg.mxu0
        %v4499 = vadd.f32 %v4412, %v4496
        %s4500 = scalar_lea.vmem %s9, 240
        %v4501 = vld [vmem:[%s4500] sm:$0xff]
        %v4502 = vld [vmem:[%s4500 + $0x8] sm:$0xff]
        %v4503 = vld [vmem:[%s4500 + $0x10] sm:$0xff]
        %v4504 = vld [vmem:[%s4500 + $0x18] sm:$0xff]
        %v4505 = vld [vmem:[%s4500 + $0x20] sm:$0xff]
        %v4506 = vld [vmem:[%s4500 + $0x28] sm:$0xff]
        %v4507 = vld [vmem:[%s4500 + $0x30] sm:$0xff]
        %v4508 = vld [vmem:[%s4500 + $0x38] sm:$0xff]
        %v4509 = vld [vmem:[%s4500 + $0x40] sm:$0xff]
        %v4510 = vld [vmem:[%s4500 + $0x48] sm:$0xff]
        %v4512 = vsel %vm4268, %v4245, 0
        %4514 = vmatprep.subr.mxu0 0.0
        %4515 = vmatpush1.msra.mxu0 0.0
        %4516 = vmatprep.subr.mxu0 0.0
        %4517 = vmatpush1.msra.mxu0 0.0
        %4518 = vmatprep.subr.mxu0 0.0
        %4519 = vmatpush1.msra.mxu0 0.0
        %4520 = vmatprep.subr.mxu0 0.0
        %4521 = vmatpush1.msra.mxu0 0.0
        %4522 = vmatprep.subr.mxu0 0.0
        %4523 = vmatpush1.msra.mxu0 0.0
        %4524 = vmatprep.subr.mxu0 0.0
        %4525 = vmatpush1.msra.mxu0 0.0
        %4526 = vmatprep.subr.mxu0 0.0
        %4527 = vmatpush1.msra.mxu0 %v4510
        %4528 = vmatprep.subr.mxu0 0.0
        %4529 = vmatpush1.msra.mxu0 %v4509
        %4530 = vmatprep.subr.mxu0 0.0
        %4531 = vmatpush1.msra.mxu0 %v4508
        %4532 = vmatprep.subr.mxu0 0.0
        %4533 = vmatpush1.msra.mxu0 %v4507
        %4534 = vmatprep.subr.mxu0 0.0
        %4535 = vmatpush1.msra.mxu0 %v4506
        %4536 = vmatprep.subr.mxu0 0.0
        %4537 = vmatpush1.msra.mxu0 %v4505
        %4538 = vmatprep.subr.mxu0 0.0
        %4539 = vmatpush1.msra.mxu0 %v4504
        %4540 = vmatprep.subr.mxu0 0.0
        %4541 = vmatpush1.msra.mxu0 %v4503
        %4542 = vmatprep.subr.mxu0 0.0
        %4543 = vmatpush1.msra.mxu0 %v4502
        %4544 = vmatprep.subr.mxu0 0.0
        %4545 = vmatpush1.msra.mxu0 %v4501
        %4546 = vmatprep.subr.mxu0 0.0
        %4547 = vmatpush2.msra.mxu0 0.0
        %4548 = vmatprep.subr.mxu0 0.0
        %4549 = vmatpush2.msra.mxu0 0.0
        %4550 = vmatprep.subr.mxu0 0.0
        %4551 = vmatpush2.msra.mxu0 0.0
        %4552 = vmatprep.subr.mxu0 0.0
        %4553 = vmatpush2.msra.mxu0 0.0
        %4554 = vmatprep.subr.mxu0 0.0
        %4555 = vmatpush2.msra.mxu0 0.0
        %4556 = vmatprep.subr.mxu0 0.0
        %4557 = vmatpush2.msra.mxu0 0.0
        %4558 = vmatprep.subr.mxu0 0.0
        %4559 = vmatpush2.msra.mxu0 0.0
        %4560 = vmatprep.subr.mxu0 0.0
        %4561 = vmatpush2.msra.mxu0 0.0
        %4562 = vmatprep.subr.mxu0 0.0
        %4563 = vmatpush2.msra.mxu0 0.0
        %4564 = vmatprep.subr.mxu0 0.0
        %4565 = vmatpush2.msra.mxu0 0.0
        %4566 = vmatprep.subr.mxu0 0.0
        %4567 = vmatpush2.msra.mxu0 0.0
        %4568 = vmatprep.subr.mxu0 0.0
        %4569 = vmatpush2.msra.mxu0 0.0
        %4570 = vmatprep.subr.mxu0 0.0
        %4571 = vmatpush2.msra.mxu0 0.0
        %4572 = vmatprep.subr.mxu0 0.0
        %4573 = vmatpush2.msra.mxu0 0.0
        %4574 = vmatprep.subr.mxu0 0.0
        %4575 = vmatpush2.msra.mxu0 0.0
        %4576 = vmatprep.subr.mxu0 0.0
        %4577 = vmatpush2.msra.mxu0 0.0
        %4578 = vmatprep.mubr.f32.mxu0 0.0
        %4579 = vmatmul.mubr.f32.gmra.mxu0 %v4512
        %v4580 = vpop.f32.mrf.mxu0
        %v4581 = vadd.f32 0.0, %v4580
        %v4582 = vpop.f32.mrf.mxu0
        %4583 = vdwg.mxu0
        %v4584 = vadd.f32 %v4499, %v4581
        %s4585 = scalar_lea.vmem %s9, 320
        %v4586 = vld [vmem:[%s4585] sm:$0xff]
        %v4587 = vld [vmem:[%s4585 + $0x8] sm:$0xff]
        %v4588 = vld [vmem:[%s4585 + $0x10] sm:$0xff]
        %v4589 = vld [vmem:[%s4585 + $0x18] sm:$0xff]
        %v4590 = vld [vmem:[%s4585 + $0x20] sm:$0xff]
        %v4591 = vld [vmem:[%s4585 + $0x28] sm:$0xff]
        %v4592 = vld [vmem:[%s4585 + $0x30] sm:$0xff]
        %v4593 = vld [vmem:[%s4585 + $0x38] sm:$0xff]
        %v4594 = vld [vmem:[%s4585 + $0x40] sm:$0xff]
        %v4595 = vld [vmem:[%s4585 + $0x48] sm:$0xff]
        %v4597 = vsel %vm4268, %v4246, 0
        %4599 = vmatprep.subr.mxu0 0.0
        %4600 = vmatpush1.msra.mxu0 0.0
        %4601 = vmatprep.subr.mxu0 0.0
        %4602 = vmatpush1.msra.mxu0 0.0
        %4603 = vmatprep.subr.mxu0 0.0
        %4604 = vmatpush1.msra.mxu0 0.0
        %4605 = vmatprep.subr.mxu0 0.0
        %4606 = vmatpush1.msra.mxu0 0.0
        %4607 = vmatprep.subr.mxu0 0.0
        %4608 = vmatpush1.msra.mxu0 0.0
        %4609 = vmatprep.subr.mxu0 0.0
        %4610 = vmatpush1.msra.mxu0 0.0
        %4611 = vmatprep.subr.mxu0 0.0
        %4612 = vmatpush1.msra.mxu0 %v4595
        %4613 = vmatprep.subr.mxu0 0.0
        %4614 = vmatpush1.msra.mxu0 %v4594
        %4615 = vmatprep.subr.mxu0 0.0
        %4616 = vmatpush1.msra.mxu0 %v4593
        %4617 = vmatprep.subr.mxu0 0.0
        %4618 = vmatpush1.msra.mxu0 %v4592
        %4619 = vmatprep.subr.mxu0 0.0
        %4620 = vmatpush1.msra.mxu0 %v4591
        %4621 = vmatprep.subr.mxu0 0.0
        %4622 = vmatpush1.msra.mxu0 %v4590
        %4623 = vmatprep.subr.mxu0 0.0
        %4624 = vmatpush1.msra.mxu0 %v4589
        %4625 = vmatprep.subr.mxu0 0.0
        %4626 = vmatpush1.msra.mxu0 %v4588
        %4627 = vmatprep.subr.mxu0 0.0
        %4628 = vmatpush1.msra.mxu0 %v4587
        %4629 = vmatprep.subr.mxu0 0.0
        %4630 = vmatpush1.msra.mxu0 %v4586
        %4631 = vmatprep.subr.mxu0 0.0
        %4632 = vmatpush2.msra.mxu0 0.0
        %4633 = vmatprep.subr.mxu0 0.0
        %4634 = vmatpush2.msra.mxu0 0.0
        %4635 = vmatprep.subr.mxu0 0.0
        %4636 = vmatpush2.msra.mxu0 0.0
        %4637 = vmatprep.subr.mxu0 0.0
        %4638 = vmatpush2.msra.mxu0 0.0
        %4639 = vmatprep.subr.mxu0 0.0
        %4640 = vmatpush2.msra.mxu0 0.0
        %4641 = vmatprep.subr.mxu0 0.0
        %4642 = vmatpush2.msra.mxu0 0.0
        %4643 = vmatprep.subr.mxu0 0.0
        %4644 = vmatpush2.msra.mxu0 0.0
        %4645 = vmatprep.subr.mxu0 0.0
        %4646 = vmatpush2.msra.mxu0 0.0
        %4647 = vmatprep.subr.mxu0 0.0
        %4648 = vmatpush2.msra.mxu0 0.0
        %4649 = vmatprep.subr.mxu0 0.0
        %4650 = vmatpush2.msra.mxu0 0.0
        %4651 = vmatprep.subr.mxu0 0.0
        %4652 = vmatpush2.msra.mxu0 0.0
        %4653 = vmatprep.subr.mxu0 0.0
        %4654 = vmatpush2.msra.mxu0 0.0
        %4655 = vmatprep.subr.mxu0 0.0
        %4656 = vmatpush2.msra.mxu0 0.0
        %4657 = vmatprep.subr.mxu0 0.0
        %4658 = vmatpush2.msra.mxu0 0.0
        %4659 = vmatprep.subr.mxu0 0.0
        %4660 = vmatpush2.msra.mxu0 0.0
        %4661 = vmatprep.subr.mxu0 0.0
        %4662 = vmatpush2.msra.mxu0 0.0
        %4663 = vmatprep.mubr.f32.mxu0 0.0
        %4664 = vmatmul.mubr.f32.gmra.mxu0 %v4597
        %v4665 = vpop.f32.mrf.mxu0
        %v4666 = vadd.f32 0.0, %v4665
        %v4667 = vpop.f32.mrf.mxu0
        %4668 = vdwg.mxu0
        %v4669 = vadd.f32 %v4584, %v4666
        %v4670 = vld [vmem:[%s10] sm:$0x1]
        %v4672 = vlaneseq
        %v4673 = vshrl.u32 %v4672, 7
        %v4674 = vsub.s32 0, %v4673
        %v4675 = vrot.slane %v4670, %v4674
        %v4677 = vadd.f32 %v4669, %v4675
        %v4678 = vmax.f32 %v4677, 0.0
        %v4679 = vld [vmem:[%s11] sm:$0xff]
        %v4680 = vld [vmem:[%s11 + $0x8] sm:$0xff]
        %v4681 = vld [vmem:[%s11 + $0x10] sm:$0xff]
        %v4682 = vld [vmem:[%s11 + $0x18] sm:$0xff]
        %v4683 = vld [vmem:[%s11 + $0x20] sm:$0xff]
        %v4684 = vld [vmem:[%s11 + $0x28] sm:$0xff]
        %v4685 = vld [vmem:[%s11 + $0x30] sm:$0xff]
        %v4686 = vld [vmem:[%s11 + $0x38] sm:$0xff]
        %v4687 = vld [vmem:[%s11 + $0x40] sm:$0xff]
        %v4688 = vld [vmem:[%s11 + $0x48] sm:$0xff]
        %v4689 = vld [vmem:[%s11 + $0x50] sm:$0xff]
        %v4690 = vld [vmem:[%s11 + $0x58] sm:$0xff]
        %v4691 = vld [vmem:[%s11 + $0x60] sm:$0xff]
        %v4692 = vld [vmem:[%s11 + $0x68] sm:$0xff]
        %v4693 = vld [vmem:[%s11 + $0x70] sm:$0xff]
        %v4694 = vld [vmem:[%s11 + $0x78] sm:$0xff]
        %v4695 = vld [vmem:[%s12] sm:$0x1]
        %v4697 = vlaneseq
        %v4698 = vshrl.u32 %v4697, 7
        %v4699 = vsub.s32 0, %v4698
        %v4700 = vrot.slane %v4695, %v4699
        %4702 = vmatprep.subr.mxu0 0.0
        %4703 = vmatpush1.msra.mxu0 %v4694
        %4704 = vmatprep.subr.mxu0 0.0
        %4705 = vmatpush1.msra.mxu0 %v4693
        %4706 = vmatprep.subr.mxu0 0.0
        %4707 = vmatpush1.msra.mxu0 %v4692
        %4708 = vmatprep.subr.mxu0 0.0
        %4709 = vmatpush1.msra.mxu0 %v4691
        %4710 = vmatprep.subr.mxu0 0.0
        %4711 = vmatpush1.msra.mxu0 %v4690
        %4712 = vmatprep.subr.mxu0 0.0
        %4713 = vmatpush1.msra.mxu0 %v4689
        %4714 = vmatprep.subr.mxu0 0.0
        %4715 = vmatpush1.msra.mxu0 %v4688
        %4716 = vmatprep.subr.mxu0 0.0
        %4717 = vmatpush1.msra.mxu0 %v4687
        %4718 = vmatprep.subr.mxu0 0.0
        %4719 = vmatpush1.msra.mxu0 %v4686
        %4720 = vmatprep.subr.mxu0 0.0
        %4721 = vmatpush1.msra.mxu0 %v4685
        %4722 = vmatprep.subr.mxu0 0.0
        %4723 = vmatpush1.msra.mxu0 %v4684
        %4724 = vmatprep.subr.mxu0 0.0
        %4725 = vmatpush1.msra.mxu0 %v4683
        %4726 = vmatprep.subr.mxu0 0.0
        %4727 = vmatpush1.msra.mxu0 %v4682
        %4728 = vmatprep.subr.mxu0 0.0
        %4729 = vmatpush1.msra.mxu0 %v4681
        %4730 = vmatprep.subr.mxu0 0.0
        %4731 = vmatpush1.msra.mxu0 %v4680
        %4732 = vmatprep.subr.mxu0 0.0
        %4733 = vmatpush1.msra.mxu0 %v4679
        %4734 = vmatprep.subr.mxu0 0.0
        %4735 = vmatpush2.msra.mxu0 0.0
        %4736 = vmatprep.subr.mxu0 0.0
        %4737 = vmatpush2.msra.mxu0 0.0
        %4738 = vmatprep.subr.mxu0 0.0
        %4739 = vmatpush2.msra.mxu0 0.0
        %4740 = vmatprep.subr.mxu0 0.0
        %4741 = vmatpush2.msra.mxu0 0.0
        %4742 = vmatprep.subr.mxu0 0.0
        %4743 = vmatpush2.msra.mxu0 0.0
        %4744 = vmatprep.subr.mxu0 0.0
        %4745 = vmatpush2.msra.mxu0 0.0
        %4746 = vmatprep.subr.mxu0 0.0
        %4747 = vmatpush2.msra.mxu0 0.0
        %4748 = vmatprep.subr.mxu0 0.0
        %4749 = vmatpush2.msra.mxu0 0.0
        %4750 = vmatprep.subr.mxu0 0.0
        %4751 = vmatpush2.msra.mxu0 0.0
        %4752 = vmatprep.subr.mxu0 0.0
        %4753 = vmatpush2.msra.mxu0 0.0
        %4754 = vmatprep.subr.mxu0 0.0
        %4755 = vmatpush2.msra.mxu0 0.0
        %4756 = vmatprep.subr.mxu0 0.0
        %4757 = vmatpush2.msra.mxu0 0.0
        %4758 = vmatprep.subr.mxu0 0.0
        %4759 = vmatpush2.msra.mxu0 0.0
        %4760 = vmatprep.subr.mxu0 0.0
        %4761 = vmatpush2.msra.mxu0 0.0
        %4762 = vmatprep.subr.mxu0 0.0
        %4763 = vmatpush2.msra.mxu0 0.0
        %4764 = vmatprep.subr.mxu0 0.0
        %4765 = vmatpush2.msra.mxu0 0.0
        %4766 = vmatprep.mubr.f32.mxu0 0.0
        %4767 = vmatmul.mubr.f32.gmra.mxu0 %v4678
        %v4768 = vpop.f32.mrf.mxu0
        %v4769 = vadd.f32 %v4700, %v4768
        %v4770 = vpop.f32.mrf.mxu0
        %4771 = vdwg.mxu0
        %v4772 = vmax.f32 %v4769, 0.0
        %v4773 = vld [vmem:[%s13] sm:$0xff]
        %v4774 = vld [vmem:[%s13 + $0x8] sm:$0xff]
        %v4775 = vld [vmem:[%s13 + $0x10] sm:$0xff]
        %v4776 = vld [vmem:[%s13 + $0x18] sm:$0xff]
        %v4777 = vld [vmem:[%s13 + $0x20] sm:$0xff]
        %v4778 = vld [vmem:[%s13 + $0x28] sm:$0xff]
        %v4779 = vld [vmem:[%s13 + $0x30] sm:$0xff]
        %v4780 = vld [vmem:[%s13 + $0x38] sm:$0xff]
        %v4781 = vld [vmem:[%s13 + $0x40] sm:$0xff]
        %v4782 = vld [vmem:[%s13 + $0x48] sm:$0xff]
        %v4783 = vld [vmem:[%s13 + $0x50] sm:$0xff]
        %v4784 = vld [vmem:[%s13 + $0x58] sm:$0xff]
        %v4785 = vld [vmem:[%s13 + $0x60] sm:$0xff]
        %v4786 = vld [vmem:[%s13 + $0x68] sm:$0xff]
        %v4787 = vld [vmem:[%s13 + $0x70] sm:$0xff]
        %v4788 = vld [vmem:[%s13 + $0x78] sm:$0xff]
        %v4789 = vld [vmem:[%s14] sm:$0x1]
        %v4791 = vlaneseq
        %v4792 = vshrl.u32 %v4791, 7
        %v4793 = vsub.s32 0, %v4792
        %v4794 = vrot.slane %v4789, %v4793
        %4796 = vmatprep.subr.mxu0 0.0
        %4797 = vmatpush1.msra.mxu0 %v4788
        %4798 = vmatprep.subr.mxu0 0.0
        %4799 = vmatpush1.msra.mxu0 %v4787
        %4800 = vmatprep.subr.mxu0 0.0
        %4801 = vmatpush1.msra.mxu0 %v4786
        %4802 = vmatprep.subr.mxu0 0.0
        %4803 = vmatpush1.msra.mxu0 %v4785
        %4804 = vmatprep.subr.mxu0 0.0
        %4805 = vmatpush1.msra.mxu0 %v4784
        %4806 = vmatprep.subr.mxu0 0.0
        %4807 = vmatpush1.msra.mxu0 %v4783
        %4808 = vmatprep.subr.mxu0 0.0
        %4809 = vmatpush1.msra.mxu0 %v4782
        %4810 = vmatprep.subr.mxu0 0.0
        %4811 = vmatpush1.msra.mxu0 %v4781
        %4812 = vmatprep.subr.mxu0 0.0
        %4813 = vmatpush1.msra.mxu0 %v4780
        %4814 = vmatprep.subr.mxu0 0.0
        %4815 = vmatpush1.msra.mxu0 %v4779
        %4816 = vmatprep.subr.mxu0 0.0
        %4817 = vmatpush1.msra.mxu0 %v4778
        %4818 = vmatprep.subr.mxu0 0.0
        %4819 = vmatpush1.msra.mxu0 %v4777
        %4820 = vmatprep.subr.mxu0 0.0
        %4821 = vmatpush1.msra.mxu0 %v4776
        %4822 = vmatprep.subr.mxu0 0.0
        %4823 = vmatpush1.msra.mxu0 %v4775
        %4824 = vmatprep.subr.mxu0 0.0
        %4825 = vmatpush1.msra.mxu0 %v4774
        %4826 = vmatprep.subr.mxu0 0.0
        %4827 = vmatpush1.msra.mxu0 %v4773
        %4828 = vmatprep.subr.mxu0 0.0
        %4829 = vmatpush2.msra.mxu0 0.0
        %4830 = vmatprep.subr.mxu0 0.0
        %4831 = vmatpush2.msra.mxu0 0.0
        %4832 = vmatprep.subr.mxu0 0.0
        %4833 = vmatpush2.msra.mxu0 0.0
        %4834 = vmatprep.subr.mxu0 0.0
        %4835 = vmatpush2.msra.mxu0 0.0
        %4836 = vmatprep.subr.mxu0 0.0
        %4837 = vmatpush2.msra.mxu0 0.0
        %4838 = vmatprep.subr.mxu0 0.0
        %4839 = vmatpush2.msra.mxu0 0.0
        %4840 = vmatprep.subr.mxu0 0.0
        %4841 = vmatpush2.msra.mxu0 0.0
        %4842 = vmatprep.subr.mxu0 0.0
        %4843 = vmatpush2.msra.mxu0 0.0
        %4844 = vmatprep.subr.mxu0 0.0
        %4845 = vmatpush2.msra.mxu0 0.0
        %4846 = vmatprep.subr.mxu0 0.0
        %4847 = vmatpush2.msra.mxu0 0.0
        %4848 = vmatprep.subr.mxu0 0.0
        %4849 = vmatpush2.msra.mxu0 0.0
        %4850 = vmatprep.subr.mxu0 0.0
        %4851 = vmatpush2.msra.mxu0 0.0
        %4852 = vmatprep.subr.mxu0 0.0
        %4853 = vmatpush2.msra.mxu0 0.0
        %4854 = vmatprep.subr.mxu0 0.0
        %4855 = vmatpush2.msra.mxu0 0.0
        %4856 = vmatprep.subr.mxu0 0.0
        %4857 = vmatpush2.msra.mxu0 0.0
        %4858 = vmatprep.subr.mxu0 0.0
        %4859 = vmatpush2.msra.mxu0 0.0
        %4860 = vmatprep.mubr.f32.mxu0 0.0
        %4861 = vmatmul.mubr.f32.gmra.mxu0 %v4772
        %v4862 = vpop.f32.mrf.mxu0
        %v4863 = vadd.f32 %v4794, %v4862
        %v4864 = vpop.f32.mrf.mxu0
        %4865 = vdwg.mxu0
        %4866 = vst [vmem:[%s651] sm:$0xff] %v4863
        %s4867 = sand.u32 %s357, 1
        %s4868 = scalar_lea.sflag [#allocation4], %s4867
        %s4869 = sand.u32 %s357, 1
        %s4870 = smul.addr %s4869, 8
        %s4871 = scalar_lea.vmem [#allocation3], %s4870
        // Predicated region
        $region119: #{net_forward.1} parent=113 // pred_check
          %p4872 = pneg %p367
        $region120: #{net_forward.1} parent=113 // pred_check_branch
          %4874 = sbr.rel (%p4872) target = $region122
        $region121: #{net_forward.1} parent=113 // pred_region
          %s4876 = ssub.s32 128, 128
          %4877 = vsyncadd %s4868, %s4876
          %s4878 = smul.addr %s29, 128
          %s4879 = scalar_lea.hbm %s15, %s4878
          %s4881 = sshll.u32 %s4871, 4
          %s4882 = int_to_ptr.vmem [resolvable:$true] %s4881
          %4884 = dma.vmem_to_hbm [thread:$0]  %s4882, 128, %s4879, %s4868
        $region122: #{net_forward.1} parent=113 // pred_fallthru
          _
      $region114: #{net_forward.1} parent=5 // pred_fallthru
        _
      %p4885 = scmp.le.s32.totalorder 2, %s24
      // Predicated region
      $region123: #{net_forward.1} parent=5 // pred_check
        %p4886 = pneg %p4885
      $region124: #{net_forward.1} parent=5 // pred_check_branch
        %4888 = sbr.rel (%p4886) target = $region126
      $region125: #{net_forward.1} parent=5 // pred_region
        %s4889 = ssub.s32 %s24, 2
        // Predicated region
        $region127: #{net_forward.1} parent=125 // pred_check
          %p4890 = pneg %p373
        $region128: #{net_forward.1} parent=125 // pred_check_branch
          %4892 = sbr.rel (%p4890) target = $region130
        $region129: #{net_forward.1} parent=125 // pred_region
          %s4893 = sand.u32 %s358, 1
          %s4894 = scalar_lea.sflag [#allocation4], %s4893
          %s4895 = sand.u32 %s358, 1
          %s4896 = smul.addr %s4895, 8
          %s4897 = scalar_lea.vmem [#allocation3], %s4896
          %4898 = dma.done %s4894, 128
        $region130: #{net_forward.1} parent=125 // pred_fallthru
          _
      $region126: #{net_forward.1} parent=5 // pred_fallthru
        _
    $region6: #{net_forward.1} parent=1 // loop_footer
      %s28 = sadd.s32 1, %s24
    $region7: #{net_forward.1} parent=1 // loop_footer_branch
      %23 = sbr.rel target = $region3
    $region8: #{net_forward.1} parent=1 // loop_exit
      _
    %4899 = vsyncpa [#allocation4], 1
    %s4900 = scalar_lea.sflag [#allocation4], 1
    %4901 = vsyncpa %s4900, 1

</llo_original>
